<compile_context>
chip_gen: v5e
topology: v5e:2x2
jax: 0.10.0
libtpu: 0.0.40
codegen_flags: <defaults>
</compile_context>

<pallas_src>
import functools

import jax
import jax.numpy as jnp
from jax import lax
from jax.experimental import pallas as pl
from jax.experimental.pallas import tpu as pltpu


# ----------------------------------------------------------------------------
# Shared fused encoder-layer math on one (S, D) tile (post-LN, PyTorch style)
# ----------------------------------------------------------------------------
def _mha_ffn_block(x, mask, wqkv, bqkv, wo_ref, bo,
                   ln1g, ln1b, w1, b1, w2, b2, ln2g, ln2b, *, nhead, eps):
    S, D = x.shape
    Dh = D // nhead
    scale = 1.0 / (Dh ** 0.5)
    bf16 = jnp.bfloat16

    # fused QKV projection (bf16 MXU, f32 accumulate)
    qkv = jnp.dot(x.astype(bf16), wqkv, preferred_element_type=jnp.float32) + bqkv
    q = qkv[:, :D]
    k = qkv[:, D:2 * D]
    v = qkv[:, 2 * D:]

    # multi-head attention; head-merge folded into the out-projection
    ctx = jnp.zeros((S, D), jnp.float32)
    for h in range(nhead):                                  # static unroll (nhead small)
        qh = q[:, h * Dh:(h + 1) * Dh].astype(bf16)
        kh = k[:, h * Dh:(h + 1) * Dh].astype(bf16)
        vh = v[:, h * Dh:(h + 1) * Dh].astype(bf16)
        s = lax.dot_general(qh, kh, (((1,), (1,)), ((), ())),
                            preferred_element_type=jnp.float32) * scale  # (S, S)
        s = jnp.where(mask, s, -1e9)
        s = s - jnp.max(s, axis=-1, keepdims=True)
        p = jnp.exp(s)
        p = p * pl.reciprocal(jnp.sum(p, axis=-1, keepdims=True), approx=True)
        oh = jnp.dot(p.astype(bf16), vh, preferred_element_type=jnp.float32)  # (S, Dh)
        ctx = ctx + jnp.dot(oh.astype(bf16), wo_ref[h],
                            preferred_element_type=jnp.float32)               # (S, D)
    attn = ctx + bo

    # residual + LayerNorm 1 (f32)
    h1 = x + attn
    mu = jnp.mean(h1, axis=-1, keepdims=True)
    var = jnp.mean((h1 - mu) ** 2, axis=-1, keepdims=True)
    h1 = (h1 - mu) * lax.rsqrt(var + eps) * ln1g + ln1b

    # fused FFN: (S, dff) intermediate stays in VMEM
    ff = jnp.dot(h1.astype(bf16), w1, preferred_element_type=jnp.float32) + b1
    ff = jnp.maximum(ff, 0.0)
    ff = jnp.dot(ff.astype(bf16), w2, preferred_element_type=jnp.float32) + b2

    # residual + LayerNorm 2 (f32)
    h2 = h1 + ff
    mu = jnp.mean(h2, axis=-1, keepdims=True)
    var = jnp.mean((h2 - mu) ** 2, axis=-1, keepdims=True)
    return (h2 - mu) * lax.rsqrt(var + eps) * ln2g + ln2b


def _prep_encoder_params(p, nhead):
    D = p["wq"].shape[0]
    Dh = D // nhead
    bf16 = jnp.bfloat16
    wqkv = jnp.concatenate([p["wq"], p["wk"], p["wv"]], axis=1).astype(bf16)  # (D, 3D)
    bqkv = jnp.concatenate([p["bq"], p["bk"], p["bv"]]).reshape(1, 3 * D)
    wo = p["wo"].reshape(nhead, Dh, D).astype(bf16)                            # (H, Dh, D)
    return wqkv, bqkv, wo


# ----------------------------------------------------------------------------
# Kernel 1: fused encoder layer with key-padding mask (audio self-attention)
# ----------------------------------------------------------------------------
def _encoder_layer_kernel(
    lens_ref,                                   # scalar-prefetch: (B,) int32 in SMEM
    x_ref, wqkv_ref, bqkv_ref, wo_ref, bo_ref,
    ln1g_ref, ln1b_ref, w1_ref, b1_ref, w2_ref, b2_ref,
    ln2g_ref, ln2b_ref,
    o_ref,
    *, nhead, eps,
):
    b = pl.program_id(0)
    x = x_ref[0]                                            # (S, D) f32
    S = x.shape[0]
    col = lax.broadcasted_iota(jnp.int32, (S, S), 1)
    mask = col < lens_ref[b]                                # key-padding mask, in-kernel
    y = _mha_ffn_block(
        x, mask, wqkv_ref[...], bqkv_ref[...], wo_ref, bo_ref[...],
        ln1g_ref[...], ln1b_ref[...], w1_ref[...], b1_ref[...],
        w2_ref[...], b2_ref[...], ln2g_ref[...], ln2b_ref[...],
        nhead=nhead, eps=eps)
    o_ref[0] = y.astype(o_ref.dtype)


def encoder_layer_pallas(x, lens, p, nhead, *, eps=1e-5):
    """Fused post-LN transformer encoder layer over (B, S, D). One grid step per batch."""
    B, S, D = x.shape
    F_ = p["w1"].shape[1]
    Dh = D // nhead
    wqkv, bqkv, wo = _prep_encoder_params(p, nhead)

    kernel = functools.partial(_encoder_layer_kernel, nhead=nhead, eps=eps)
    c2 = lambda b, lens: (0, 0)
    grid_spec = pltpu.PrefetchScalarGridSpec(
        num_scalar_prefetch=1,                      # lens -> SMEM
        grid=(B,),
        in_specs=[
            pl.BlockSpec((1, S, D), lambda b, lens: (b, 0, 0)),
            pl.BlockSpec((D, 3 * D), c2),
            pl.BlockSpec((1, 3 * D), c2),
            pl.BlockSpec((nhead, Dh, D), lambda b, lens: (0, 0, 0)),
            pl.BlockSpec((1, D), c2),
            pl.BlockSpec((1, D), c2),
            pl.BlockSpec((1, D), c2),
            pl.BlockSpec((D, F_), c2),
            pl.BlockSpec((1, F_), c2),
            pl.BlockSpec((F_, D), c2),
            pl.BlockSpec((1, D), c2),
            pl.BlockSpec((1, D), c2),
            pl.BlockSpec((1, D), c2),
        ],
        out_specs=pl.BlockSpec((1, S, D), lambda b, lens: (b, 0, 0)),
    )
    return pl.pallas_call(
        kernel,
        out_shape=jax.ShapeDtypeStruct((B, S, D), jnp.float32),
        grid_spec=grid_spec,
        compiler_params=pltpu.CompilerParams(dimension_semantics=("parallel",)),
    )(
        lens.astype(jnp.int32),
        x, wqkv, bqkv, wo,
        p["bo"].reshape(1, D),
        p["ln1_g"].reshape(1, D), p["ln1_b"].reshape(1, D),
        p["w1"].astype(jnp.bfloat16), p["b1"].reshape(1, F_),
        p["w2"].astype(jnp.bfloat16), p["b2"].reshape(1, D),
        p["ln2_g"].reshape(1, D), p["ln2_b"].reshape(1, D),
    )


# ----------------------------------------------------------------------------
# Kernel 2: keyword projection + cosine-sim VQ + subword_prob @ embedding
# ----------------------------------------------------------------------------
def _proj_vq_kernel(kw_ref, pw_ref, pb_ref, emb_ref, embn_ref,
                    cos_ref, prob_ref, out_ref, *, temp, eps):
    bf16 = jnp.bfloat16
    kw = jnp.dot(kw_ref[0].astype(bf16), pw_ref[...],
                 preferred_element_type=jnp.float32) + pb_ref[...]        # (K, Dt)
    kw_n = kw * lax.rsqrt(jnp.maximum(
        jnp.sum(kw * kw, axis=-1, keepdims=True), eps * eps))             # F.normalize
    cos = lax.dot_general(kw_n.astype(bf16), embn_ref[...],
                          (((1,), (1,)), ((), ())),
                          preferred_element_type=jnp.float32)             # (K, V)
    logits = cos * (1.0 / temp)
    logits = logits - jnp.max(logits, axis=-1, keepdims=True)
    p = jnp.exp(logits)
    p = p * pl.reciprocal(jnp.sum(p, axis=-1, keepdims=True), approx=True)
    cos_ref[0] = cos.astype(cos_ref.dtype)
    prob_ref[0] = p.astype(prob_ref.dtype)
    out_ref[0] = jnp.dot(p.astype(bf16), emb_ref[...],
                         preferred_element_type=jnp.float32).astype(out_ref.dtype)


def proj_vq_pallas(keywords, proj_w, proj_b, emb, *, temp=0.1, eps=1e-8):
    """linear_proj + cosine sim vs vocab + softmax VQ + prob @ embedding, fused."""
    B, K, Da = keywords.shape
    V, Dt = emb.shape
    bf16 = jnp.bfloat16
    # Embedding normalization hoisted out of the per-batch grid (frozen CLIP embedding).
    emb_n = (emb * lax.rsqrt(jnp.maximum(
        jnp.sum(emb * emb, axis=-1, keepdims=True), eps * eps))).astype(bf16)
    # TODO(synk): at real CLIP vocab (49408 x 512) tile V with a grid axis
    #             (online-softmax accumulation) so the block fits v7x's 64 MiB VMEM.
    kernel = functools.partial(_proj_vq_kernel, temp=temp, eps=eps)
    grid_spec = pltpu.PrefetchScalarGridSpec(
        num_scalar_prefetch=0,
        grid=(B,),
        in_specs=[
            pl.BlockSpec((1, K, Da), lambda b: (b, 0, 0)),
            pl.BlockSpec((Da, Dt), lambda b: (0, 0)),
            pl.BlockSpec((1, Dt), lambda b: (0, 0)),
            pl.BlockSpec((V, Dt), lambda b: (0, 0)),
            pl.BlockSpec((V, Dt), lambda b: (0, 0)),
        ],
        out_specs=(
            pl.BlockSpec((1, K, V), lambda b: (b, 0, 0)),
            pl.BlockSpec((1, K, V), lambda b: (b, 0, 0)),
            pl.BlockSpec((1, K, Dt), lambda b: (b, 0, 0)),
        ),
    )
    return pl.pallas_call(
        kernel,
        out_shape=(
            jax.ShapeDtypeStruct((B, K, V), jnp.float32),   # cos_score
            jax.ShapeDtypeStruct((B, K, V), jnp.float32),   # subword_prob
            jax.ShapeDtypeStruct((B, K, Dt), jnp.float32),  # prob @ embedding
        ),
        grid_spec=grid_spec,
        compiler_params=pltpu.CompilerParams(dimension_semantics=("parallel",)),
    )(keywords, proj_w.astype(bf16), proj_b.reshape(1, Dt), emb.astype(bf16), emb_n)


# ----------------------------------------------------------------------------
# Kernel 3: CLIP text encode keywords (causal encoder layer + final LN + EOT + proj)
# ----------------------------------------------------------------------------
def _clip_text_kernel(
    x_ref, wqkv_ref, bqkv_ref, wo_ref, bo_ref,
    ln1g_ref, ln1b_ref, w1_ref, b1_ref, w2_ref, b2_ref,
    ln2g_ref, ln2b_ref, lnfg_ref, lnfb_ref, tproj_ref,
    o_ref,
    *, nhead, eps,
):
    x = x_ref[0]                                            # (S, Dt) f32
    S = x.shape[0]
    row = lax.broadcasted_iota(jnp.int32, (S, S), 0)
    col = lax.broadcasted_iota(jnp.int32, (S, S), 1)
    mask = col <= row                                       # causal mask, in-kernel
    y = _mha_ffn_block(
        x, mask, wqkv_ref[...], bqkv_ref[...], wo_ref, bo_ref[...],
        ln1g_ref[...], ln1b_ref[...], w1_ref[...], b1_ref[...],
        w2_ref[...], b2_ref[...], ln2g_ref[...], ln2b_ref[...],
        nhead=nhead, eps=eps)
    # final LayerNorm on the EOT row only, then text projection
    xe = y[S - 1:S, :]                                      # (1, Dt)
    mu = jnp.mean(xe, axis=-1, keepdims=True)
    var = jnp.mean((xe - mu) ** 2, axis=-1, keepdims=True)
    z = (xe - mu) * lax.rsqrt(var + eps) * lnfg_ref[...] + lnfb_ref[...]
    o_ref[0] = jnp.dot(z.astype(jnp.bfloat16), tproj_ref[...],
                       preferred_element_type=jnp.float32).astype(o_ref.dtype)


def clip_text_pallas(x, enc, lnf_g, lnf_b, text_proj, nhead, *, eps=1e-5):
    """Fused causal encoder layer + final LN + EOT select + text projection."""
    B, S, D = x.shape
    F_ = enc["w1"].shape[1]
    Dh = D // nhead
    De = text_proj.shape[1]
    wqkv, bqkv, wo = _prep_encoder_params(enc, nhead)

    kernel = functools.partial(_clip_text_kernel, nhead=nhead, eps=eps)
    c0 = lambda b: (0, 0)
    grid_spec = pltpu.PrefetchScalarGridSpec(
        num_scalar_prefetch=0,
        grid=(B,),
        in_specs=[
            pl.BlockSpec((1, S, D), lambda b: (b, 0, 0)),
            pl.BlockSpec((D, 3 * D), c0),
            pl.BlockSpec((1, 3 * D), c0),
            pl.BlockSpec((nhead, Dh, D), lambda b: (0, 0, 0)),
            pl.BlockSpec((1, D), c0),
            pl.BlockSpec((1, D), c0),
            pl.BlockSpec((1, D), c0),
            pl.BlockSpec((D, F_), c0),
            pl.BlockSpec((1, F_), c0),
            pl.BlockSpec((F_, D), c0),
            pl.BlockSpec((1, D), c0),
            pl.BlockSpec((1, D), c0),
            pl.BlockSpec((1, D), c0),
            pl.BlockSpec((1, D), c0),
            pl.BlockSpec((1, D), c0),
            pl.BlockSpec((D, De), c0),
        ],
        out_specs=pl.BlockSpec((1, 1, De), lambda b: (b, 0, 0)),
    )
    out = pl.pallas_call(
        kernel,
        out_shape=jax.ShapeDtypeStruct((B, 1, De), jnp.float32),
        grid_spec=grid_spec,
        compiler_params=pltpu.CompilerParams(dimension_semantics=("parallel",)),
    )(
        x, wqkv, bqkv, wo,
        enc["bo"].reshape(1, D),
        enc["ln1_g"].reshape(1, D), enc["ln1_b"].reshape(1, D),
        enc["w1"].astype(jnp.bfloat16), enc["b1"].reshape(1, F_),
        enc["w2"].astype(jnp.bfloat16), enc["b2"].reshape(1, D),
        enc["ln2_g"].reshape(1, D), enc["ln2_b"].reshape(1, D),
        lnf_g.reshape(1, D), lnf_b.reshape(1, D),
        text_proj.astype(jnp.bfloat16),
    )
    return out[:, 0, :]                                     # (B, embed_dim)


# ----------------------------------------------------------------------------
# Composite forward
# ----------------------------------------------------------------------------
def clip_encode_keywords(cp, keywords, keyword_num, nhead):
    """Synthetic CLIP-style text encoding of [SOT, kw_1..kw_K, EOT]."""
    # TODO(synk): the pretrained multi-layer CLIP text transformer is reduced to one
    #             synthetic layer built from the same fused encoder kernel.
    B, K, D = keywords.shape
    sot = jnp.broadcast_to(cp["sot"], (B, 1, D))
    eot = jnp.broadcast_to(cp["eot"], (B, 1, D))
    x = jnp.concatenate([sot, keywords, eot], axis=1)       # (B, K+2, D)
    x = x + cp["pos_emb"][None, :, :]
    return clip_text_pallas(x, cp["enc"], cp["lnf_g"], cp["lnf_b"],
                            cp["text_proj"], nhead)


def kw_cascaded_branch_forward(params, audio_feat, audio_len, keyword_num, nhead):
    """Mirrors KW_CascadedBranch.forward: returns (audio_feat, vq_results, keywords)."""
    B, T, D = audio_feat.shape

    # prepend learnable CLS / keyword tokens
    cls = jnp.broadcast_to(params["cls"], (B, keyword_num, D))
    src = jnp.concatenate([cls, audio_feat], axis=1)        # (B, K+T, D)

    # self-attention transformer over [CLS..., audio...]; key-padding mask built
    # in-kernel from scalar-prefetched lengths (audio_len + keyword_num).
    lens = (audio_len + keyword_num).astype(jnp.int32)
    x = encoder_layer_pallas(src, lens, params["enc"], nhead)

    # keyword slots -> text-dim projection -> cosine VQ -> re-embed (one fused kernel)
    keywords = x[:, :keyword_num, :]                        # (B, K, audio_dim)
    # TODO(synk): Kw_BatchNorm only exists when config specifies `batchnorms`; omitted.
    cos, prob, kw_emb = proj_vq_pallas(
        keywords, params["proj_w"], params["proj_b"], params["token_emb"], temp=0.1)
    vq_results = {"cos_score": cos, "subword_prob": prob}

    # CLIP text-encode the quantized keyword sequence (fully fused kernel)
    audio_out = clip_encode_keywords(params["clip"], kw_emb, keyword_num, nhead)
    return audio_out, vq_results, kw_emb


# ----------------------------------------------------------------------------
# Deterministic parameter init
# ----------------------------------------------------------------------------
def _init_linear(key, din, dout, scale=0.05):
    w = scale * jax.random.normal(key, (din, dout), jnp.float32)
    b = jnp.zeros((dout,), jnp.float32)
    return w, b


def _init_encoder_layer(key, d_model, dff):
    ks = jax.random.split(key, 6)
    p = {}
    p["wq"], p["bq"] = _init_linear(ks[0], d_model, d_model)
    p["wk"], p["bk"] = _init_linear(ks[1], d_model, d_model)
    p["wv"], p["bv"] = _init_linear(ks[2], d_model, d_model)
    p["wo"], p["bo"] = _init_linear(ks[3], d_model, d_model)
    p["w1"], p["b1"] = _init_linear(ks[4], d_model, dff)
    p["w2"], p["b2"] = _init_linear(ks[5], dff, d_model)
    p["ln1_g"] = jnp.ones((d_model,), jnp.float32)
    p["ln1_b"] = jnp.zeros((d_model,), jnp.float32)
    p["ln2_g"] = jnp.ones((d_model,), jnp.float32)
    p["ln2_b"] = jnp.zeros((d_model,), jnp.float32)
    return p


def init_params(key, keyword_num, d_model, text_dim, dff, vocab, embed_dim):
    ks = jax.random.split(key, 8)
    params = {}
    params["cls"] = jax.random.normal(ks[0], (1, keyword_num, d_model), jnp.float32)
    params["enc"] = _init_encoder_layer(ks[1], d_model, dff)
    params["proj_w"], params["proj_b"] = _init_linear(ks[2], d_model, text_dim)
    params["token_emb"] = 0.1 * jax.random.normal(ks[3], (vocab, text_dim), jnp.float32)
    clip = {}
    clip["sot"] = 0.1 * jax.random.normal(ks[4], (1, text_dim), jnp.float32)
    clip["eot"] = 0.1 * jax.random.normal(ks[5], (1, text_dim), jnp.float32)
    clip["pos_emb"] = 0.02 * jax.random.normal(
        ks[6], (keyword_num + 2, text_dim), jnp.float32
    )
    clip["enc"] = _init_encoder_layer(ks[7], text_dim, dff)
    clip["lnf_g"] = jnp.ones((text_dim,), jnp.float32)
    clip["lnf_b"] = jnp.zeros((text_dim,), jnp.float32)
    clip["text_proj"] = 0.05 * jax.random.normal(
        jax.random.PRNGKey(123), (text_dim, embed_dim), jnp.float32
    )
    params["clip"] = clip
    return params


# ----------------------------------------------------------------------------
# Main
# ----------------------------------------------------------------------------
if __name__ == "__main__":
    B, T = 2, 8
    keyword_num = 4
    d_model = audio_dim = 32
    text_dim = 32
    embed_dim = 32
    nhead = 4
    dff = 64
    vocab = 64

    key = jax.random.PRNGKey(0)
    k_param, k_audio = jax.random.split(key)

    params = init_params(k_param, keyword_num, d_model, text_dim, dff, vocab, embed_dim)
    audio_feat = jax.random.normal(k_audio, (B, T, d_model), jnp.float32)
    audio_len = jnp.array([8, 6], dtype=jnp.int32)

    fwd = jax.jit(
        functools.partial(
            kw_cascaded_branch_forward, keyword_num=keyword_num, nhead=nhead
        )
    )
    audio_out, vq_results, keywords = fwd(params, audio_feat, audio_len)
    jax.block_until_ready((audio_out, vq_results, keywords))

    assert audio_out.shape == (B, embed_dim)
    assert vq_results["cos_score"].shape == (B, keyword_num, vocab)
    assert vq_results["subword_prob"].shape == (B, keyword_num, vocab)
    assert keywords.shape == (B, keyword_num, text_dim)
    print("KERNEL_OK")
</pallas_src>

<mosaic_0001>
module attributes {stable_mosaic.version = 11 : i64} {
  func.func @_encoder_layer_kernel(%arg0: i32, %arg1: memref<2xi32, #tpu.memory_space<smem>>, %arg2: memref<1x12x32xf32, #tpu.memory_space<vmem>>, %arg3: memref<32x96xbf16, #tpu.memory_space<vmem>>, %arg4: memref<1x96xf32, #tpu.memory_space<vmem>>, %arg5: memref<4x8x32xbf16, #tpu.memory_space<vmem>>, %arg6: memref<1x32xf32, #tpu.memory_space<vmem>>, %arg7: memref<1x32xf32, #tpu.memory_space<vmem>>, %arg8: memref<1x32xf32, #tpu.memory_space<vmem>>, %arg9: memref<32x64xbf16, #tpu.memory_space<vmem>>, %arg10: memref<1x64xf32, #tpu.memory_space<vmem>>, %arg11: memref<64x32xbf16, #tpu.memory_space<vmem>>, %arg12: memref<1x32xf32, #tpu.memory_space<vmem>>, %arg13: memref<1x32xf32, #tpu.memory_space<vmem>>, %arg14: memref<1x32xf32, #tpu.memory_space<vmem>>, %arg15: memref<1x12x32xf32, #tpu.memory_space<vmem>>) attributes {dimension_semantics = [#tpu.dimension_semantics<parallel>], iteration_bounds = array<i64: 2>, scalar_prefetch = 1 : i64, scratch_operands = 0 : i64, tpu.core_type = #tpu.core_type<tc>, window_params = [{transform_indices = @transform_0, window_bounds = array<i64: 1, 12, 32>}, {pipeline_mode = #tpu.pipeline_mode<synchronous>, transform_indices = @transform_1, window_bounds = array<i64: 32, 96>}, {pipeline_mode = #tpu.pipeline_mode<synchronous>, transform_indices = @transform_2, window_bounds = array<i64: 1, 96>}, {pipeline_mode = #tpu.pipeline_mode<synchronous>, transform_indices = @transform_3, window_bounds = array<i64: 4, 8, 32>}, {pipeline_mode = #tpu.pipeline_mode<synchronous>, transform_indices = @transform_4, window_bounds = array<i64: 1, 32>}, {pipeline_mode = #tpu.pipeline_mode<synchronous>, transform_indices = @transform_5, window_bounds = array<i64: 1, 32>}, {pipeline_mode = #tpu.pipeline_mode<synchronous>, transform_indices = @transform_6, window_bounds = array<i64: 1, 32>}, {pipeline_mode = #tpu.pipeline_mode<synchronous>, transform_indices = @transform_7, window_bounds = array<i64: 32, 64>}, {pipeline_mode = #tpu.pipeline_mode<synchronous>, transform_indices = @transform_8, window_bounds = array<i64: 1, 64>}, {pipeline_mode = #tpu.pipeline_mode<synchronous>, transform_indices = @transform_9, window_bounds = array<i64: 64, 32>}, {pipeline_mode = #tpu.pipeline_mode<synchronous>, transform_indices = @transform_10, window_bounds = array<i64: 1, 32>}, {pipeline_mode = #tpu.pipeline_mode<synchronous>, transform_indices = @transform_11, window_bounds = array<i64: 1, 32>}, {pipeline_mode = #tpu.pipeline_mode<synchronous>, transform_indices = @transform_12, window_bounds = array<i64: 1, 32>}, {transform_indices = @transform_13, window_bounds = array<i64: 1, 12, 32>}]} {
    %c0 = arith.constant 0 : index
    %c0_0 = arith.constant 0 : index
    %c0_1 = arith.constant 0 : index
    %0 = vector.load %arg2[%c0, %c0_0, %c0_1] : memref<1x12x32xf32, #tpu.memory_space<vmem>>, vector<1x12x32xf32>
    %1 = vector.shape_cast %0 : vector<1x12x32xf32> to vector<12x32xf32>
    %2 = tpu.iota {dimensions = array<i32: 1>} : vector<12x12xi32>
    %3 = arith.index_cast %arg0 : i32 to index
    %4 = memref.load %arg1[%3] : memref<2xi32, #tpu.memory_space<smem>>
    %5 = vector.broadcast %4 : i32 to vector<12x12xi32>
    %6 = arith.cmpi slt, %2, %5 : vector<12x12xi32>
    %c0_2 = arith.constant 0 : index
    %c0_3 = arith.constant 0 : index
    %7 = vector.load %arg3[%c0_2, %c0_3] : memref<32x96xbf16, #tpu.memory_space<vmem>>, vector<32x96xbf16>
    %c0_4 = arith.constant 0 : index
    %c0_5 = arith.constant 0 : index
    %8 = vector.load %arg4[%c0_4, %c0_5] : memref<1x96xf32, #tpu.memory_space<vmem>>, vector<1x96xf32>
    %c0_6 = arith.constant 0 : index
    %c0_7 = arith.constant 0 : index
    %9 = vector.load %arg6[%c0_6, %c0_7] : memref<1x32xf32, #tpu.memory_space<vmem>>, vector<1x32xf32>
    %c0_8 = arith.constant 0 : index
    %c0_9 = arith.constant 0 : index
    %10 = vector.load %arg7[%c0_8, %c0_9] : memref<1x32xf32, #tpu.memory_space<vmem>>, vector<1x32xf32>
    %c0_10 = arith.constant 0 : index
    %c0_11 = arith.constant 0 : index
    %11 = vector.load %arg8[%c0_10, %c0_11] : memref<1x32xf32, #tpu.memory_space<vmem>>, vector<1x32xf32>
    %c0_12 = arith.constant 0 : index
    %c0_13 = arith.constant 0 : index
    %12 = vector.load %arg9[%c0_12, %c0_13] : memref<32x64xbf16, #tpu.memory_space<vmem>>, vector<32x64xbf16>
    %c0_14 = arith.constant 0 : index
    %c0_15 = arith.constant 0 : index
    %13 = vector.load %arg10[%c0_14, %c0_15] : memref<1x64xf32, #tpu.memory_space<vmem>>, vector<1x64xf32>
    %c0_16 = arith.constant 0 : index
    %c0_17 = arith.constant 0 : index
    %14 = vector.load %arg11[%c0_16, %c0_17] : memref<64x32xbf16, #tpu.memory_space<vmem>>, vector<64x32xbf16>
    %c0_18 = arith.constant 0 : index
    %c0_19 = arith.constant 0 : index
    %15 = vector.load %arg12[%c0_18, %c0_19] : memref<1x32xf32, #tpu.memory_space<vmem>>, vector<1x32xf32>
    %c0_20 = arith.constant 0 : index
    %c0_21 = arith.constant 0 : index
    %16 = vector.load %arg13[%c0_20, %c0_21] : memref<1x32xf32, #tpu.memory_space<vmem>>, vector<1x32xf32>
    %c0_22 = arith.constant 0 : index
    %c0_23 = arith.constant 0 : index
    %17 = vector.load %arg14[%c0_22, %c0_23] : memref<1x32xf32, #tpu.memory_space<vmem>>, vector<1x32xf32>
    %18 = arith.truncf %1 : vector<12x32xf32> to vector<12x32xbf16>
    %cst = arith.constant dense<0.000000e+00> : vector<12x96xf32>
    %19 = tpu.matmul %18, %7, %cst {dimension_numbers = #tpu.dot_dimension_numbers<[1], [0], [0], [1], [0, 0, 1, 1], [], []>} : vector<12x32xbf16>, vector<32x96xbf16>, vector<12x96xf32> -> vector<12x96xf32>
    %20 = vector.broadcast %8 : vector<1x96xf32> to vector<12x96xf32>
    %21 = arith.addf %19, %20 : vector<12x96xf32>
    %22 = vector.extract_strided_slice %21 {offsets = [0, 0], sizes = [12, 32], strides = [1, 1]} : vector<12x96xf32> to vector<12x32xf32>
    %23 = vector.extract_strided_slice %21 {offsets = [0, 32], sizes = [12, 32], strides = [1, 1]} : vector<12x96xf32> to vector<12x32xf32>
    %24 = vector.extract_strided_slice %21 {offsets = [0, 64], sizes = [12, 32], strides = [1, 1]} : vector<12x96xf32> to vector<12x32xf32>
    %cst_24 = arith.constant 0.000000e+00 : f32
    %25 = vector.broadcast %cst_24 : f32 to vector<12x32xf32>
    %26 = vector.extract_strided_slice %22 {offsets = [0, 0], sizes = [12, 8], strides = [1, 1]} : vector<12x32xf32> to vector<12x8xf32>
    %27 = arith.truncf %26 : vector<12x8xf32> to vector<12x8xbf16>
    %28 = vector.extract_strided_slice %23 {offsets = [0, 0], sizes = [12, 8], strides = [1, 1]} : vector<12x32xf32> to vector<12x8xf32>
    %29 = arith.truncf %28 : vector<12x8xf32> to vector<12x8xbf16>
    %30 = vector.extract_strided_slice %24 {offsets = [0, 0], sizes = [12, 8], strides = [1, 1]} : vector<12x32xf32> to vector<12x8xf32>
    %31 = arith.truncf %30 : vector<12x8xf32> to vector<12x8xbf16>
    %cst_25 = arith.constant dense<0.000000e+00> : vector<12x12xf32>
    %32 = tpu.matmul %27, %29, %cst_25 {dimension_numbers = #tpu.dot_dimension_numbers<[1], [1], [0], [0], [0, 0, 1, 0], [], []>} : vector<12x8xbf16>, vector<12x8xbf16>, vector<12x12xf32> -> vector<12x12xf32>
    %cst_26 = arith.constant 0.353553385 : f32
    %33 = vector.broadcast %cst_26 : f32 to vector<12x12xf32>
    %34 = arith.mulf %32, %33 : vector<12x12xf32>
    %cst_27 = arith.constant -1.000000e+09 : f32
    %35 = vector.broadcast %cst_27 : f32 to vector<12x12xf32>
    %36 = arith.select %6, %34, %35 : vector<12x12xi1>, vector<12x12xf32>
    %cst_28 = arith.constant dense<0xFF800000> : vector<12xf32>
    %37 = vector.multi_reduction <maximumf>, %36, %cst_28 [1] : vector<12x12xf32> to vector<12xf32>
    %38 = vector.shape_cast %37 : vector<12xf32> to vector<12x1xf32>
    %39 = vector.broadcast %38 : vector<12x1xf32> to vector<12x12xf32>
    %40 = arith.subf %36, %39 : vector<12x12xf32>
    %41 = math.exp %40 : vector<12x12xf32>
    %cst_29 = arith.constant dense<0.000000e+00> : vector<12xf32>
    %42 = vector.multi_reduction <add>, %41, %cst_29 [1] : vector<12x12xf32> to vector<12xf32>
    %43 = vector.shape_cast %42 : vector<12xf32> to vector<12x1xf32>
    %44 = tpu.reciprocal %43 {approx = true} : vector<12x1xf32> -> vector<12x1xf32>
    %45 = vector.broadcast %44 : vector<12x1xf32> to vector<12x12xf32>
    %46 = arith.mulf %41, %45 : vector<12x12xf32>
    %47 = arith.truncf %46 : vector<12x12xf32> to vector<12x12xbf16>
    %cst_30 = arith.constant dense<0.000000e+00> : vector<12x8xf32>
    %48 = tpu.matmul %47, %31, %cst_30 {dimension_numbers = #tpu.dot_dimension_numbers<[1], [0], [0], [1], [0, 0, 1, 1], [], []>} : vector<12x12xbf16>, vector<12x8xbf16>, vector<12x8xf32> -> vector<12x8xf32>
    %49 = arith.truncf %48 : vector<12x8xf32> to vector<12x8xbf16>
    %c0_31 = arith.constant 0 : index
    %c0_32 = arith.constant 0 : index
    %c0_33 = arith.constant 0 : index
    %50 = vector.load %arg5[%c0_31, %c0_32, %c0_33] : memref<4x8x32xbf16, #tpu.memory_space<vmem>>, vector<1x8x32xbf16>
    %51 = vector.shape_cast %50 : vector<1x8x32xbf16> to vector<8x32xbf16>
    %cst_34 = arith.constant dense<0.000000e+00> : vector<12x32xf32>
    %52 = tpu.matmul %49, %51, %cst_34 {dimension_numbers = #tpu.dot_dimension_numbers<[1], [0], [0], [1], [0, 0, 1, 1], [], []>} : vector<12x8xbf16>, vector<8x32xbf16>, vector<12x32xf32> -> vector<12x32xf32>
    %53 = arith.addf %25, %52 : vector<12x32xf32>
    %54 = vector.extract_strided_slice %22 {offsets = [0, 8], sizes = [12, 8], strides = [1, 1]} : vector<12x32xf32> to vector<12x8xf32>
    %55 = arith.truncf %54 : vector<12x8xf32> to vector<12x8xbf16>
    %56 = vector.extract_strided_slice %23 {offsets = [0, 8], sizes = [12, 8], strides = [1, 1]} : vector<12x32xf32> to vector<12x8xf32>
    %57 = arith.truncf %56 : vector<12x8xf32> to vector<12x8xbf16>
    %58 = vector.extract_strided_slice %24 {offsets = [0, 8], sizes = [12, 8], strides = [1, 1]} : vector<12x32xf32> to vector<12x8xf32>
    %59 = arith.truncf %58 : vector<12x8xf32> to vector<12x8xbf16>
    %cst_35 = arith.constant dense<0.000000e+00> : vector<12x12xf32>
    %60 = tpu.matmul %55, %57, %cst_35 {dimension_numbers = #tpu.dot_dimension_numbers<[1], [1], [0], [0], [0, 0, 1, 0], [], []>} : vector<12x8xbf16>, vector<12x8xbf16>, vector<12x12xf32> -> vector<12x12xf32>
    %cst_36 = arith.constant 0.353553385 : f32
    %61 = vector.broadcast %cst_36 : f32 to vector<12x12xf32>
    %62 = arith.mulf %60, %61 : vector<12x12xf32>
    %cst_37 = arith.constant -1.000000e+09 : f32
    %63 = vector.broadcast %cst_37 : f32 to vector<12x12xf32>
    %64 = arith.select %6, %62, %63 : vector<12x12xi1>, vector<12x12xf32>
    %cst_38 = arith.constant dense<0xFF800000> : vector<12xf32>
    %65 = vector.multi_reduction <maximumf>, %64, %cst_38 [1] : vector<12x12xf32> to vector<12xf32>
    %66 = vector.shape_cast %65 : vector<12xf32> to vector<12x1xf32>
    %67 = vector.broadcast %66 : vector<12x1xf32> to vector<12x12xf32>
    %68 = arith.subf %64, %67 : vector<12x12xf32>
    %69 = math.exp %68 : vector<12x12xf32>
    %cst_39 = arith.constant dense<0.000000e+00> : vector<12xf32>
    %70 = vector.multi_reduction <add>, %69, %cst_39 [1] : vector<12x12xf32> to vector<12xf32>
    %71 = vector.shape_cast %70 : vector<12xf32> to vector<12x1xf32>
    %72 = tpu.reciprocal %71 {approx = true} : vector<12x1xf32> -> vector<12x1xf32>
    %73 = vector.broadcast %72 : vector<12x1xf32> to vector<12x12xf32>
    %74 = arith.mulf %69, %73 : vector<12x12xf32>
    %75 = arith.truncf %74 : vector<12x12xf32> to vector<12x12xbf16>
    %cst_40 = arith.constant dense<0.000000e+00> : vector<12x8xf32>
    %76 = tpu.matmul %75, %59, %cst_40 {dimension_numbers = #tpu.dot_dimension_numbers<[1], [0], [0], [1], [0, 0, 1, 1], [], []>} : vector<12x12xbf16>, vector<12x8xbf16>, vector<12x8xf32> -> vector<12x8xf32>
    %77 = arith.truncf %76 : vector<12x8xf32> to vector<12x8xbf16>
    %c1 = arith.constant 1 : index
    %c0_41 = arith.constant 0 : index
    %c0_42 = arith.constant 0 : index
    %78 = vector.load %arg5[%c1, %c0_41, %c0_42] : memref<4x8x32xbf16, #tpu.memory_space<vmem>>, vector<1x8x32xbf16>
    %79 = vector.shape_cast %78 : vector<1x8x32xbf16> to vector<8x32xbf16>
    %cst_43 = arith.constant dense<0.000000e+00> : vector<12x32xf32>
    %80 = tpu.matmul %77, %79, %cst_43 {dimension_numbers = #tpu.dot_dimension_numbers<[1], [0], [0], [1], [0, 0, 1, 1], [], []>} : vector<12x8xbf16>, vector<8x32xbf16>, vector<12x32xf32> -> vector<12x32xf32>
    %81 = arith.addf %53, %80 : vector<12x32xf32>
    %82 = vector.extract_strided_slice %22 {offsets = [0, 16], sizes = [12, 8], strides = [1, 1]} : vector<12x32xf32> to vector<12x8xf32>
    %83 = arith.truncf %82 : vector<12x8xf32> to vector<12x8xbf16>
    %84 = vector.extract_strided_slice %23 {offsets = [0, 16], sizes = [12, 8], strides = [1, 1]} : vector<12x32xf32> to vector<12x8xf32>
    %85 = arith.truncf %84 : vector<12x8xf32> to vector<12x8xbf16>
    %86 = vector.extract_strided_slice %24 {offsets = [0, 16], sizes = [12, 8], strides = [1, 1]} : vector<12x32xf32> to vector<12x8xf32>
    %87 = arith.truncf %86 : vector<12x8xf32> to vector<12x8xbf16>
    %cst_44 = arith.constant dense<0.000000e+00> : vector<12x12xf32>
    %88 = tpu.matmul %83, %85, %cst_44 {dimension_numbers = #tpu.dot_dimension_numbers<[1], [1], [0], [0], [0, 0, 1, 0], [], []>} : vector<12x8xbf16>, vector<12x8xbf16>, vector<12x12xf32> -> vector<12x12xf32>
    %cst_45 = arith.constant 0.353553385 : f32
    %89 = vector.broadcast %cst_45 : f32 to vector<12x12xf32>
    %90 = arith.mulf %88, %89 : vector<12x12xf32>
    %cst_46 = arith.constant -1.000000e+09 : f32
    %91 = vector.broadcast %cst_46 : f32 to vector<12x12xf32>
    %92 = arith.select %6, %90, %91 : vector<12x12xi1>, vector<12x12xf32>
    %cst_47 = arith.constant dense<0xFF800000> : vector<12xf32>
    %93 = vector.multi_reduction <maximumf>, %92, %cst_47 [1] : vector<12x12xf32> to vector<12xf32>
    %94 = vector.shape_cast %93 : vector<12xf32> to vector<12x1xf32>
    %95 = vector.broadcast %94 : vector<12x1xf32> to vector<12x12xf32>
    %96 = arith.subf %92, %95 : vector<12x12xf32>
    %97 = math.exp %96 : vector<12x12xf32>
    %cst_48 = arith.constant dense<0.000000e+00> : vector<12xf32>
    %98 = vector.multi_reduction <add>, %97, %cst_48 [1] : vector<12x12xf32> to vector<12xf32>
    %99 = vector.shape_cast %98 : vector<12xf32> to vector<12x1xf32>
    %100 = tpu.reciprocal %99 {approx = true} : vector<12x1xf32> -> vector<12x1xf32>
    %101 = vector.broadcast %100 : vector<12x1xf32> to vector<12x12xf32>
    %102 = arith.mulf %97, %101 : vector<12x12xf32>
    %103 = arith.truncf %102 : vector<12x12xf32> to vector<12x12xbf16>
    %cst_49 = arith.constant dense<0.000000e+00> : vector<12x8xf32>
    %104 = tpu.matmul %103, %87, %cst_49 {dimension_numbers = #tpu.dot_dimension_numbers<[1], [0], [0], [1], [0, 0, 1, 1], [], []>} : vector<12x12xbf16>, vector<12x8xbf16>, vector<12x8xf32> -> vector<12x8xf32>
    %105 = arith.truncf %104 : vector<12x8xf32> to vector<12x8xbf16>
    %c2 = arith.constant 2 : index
    %c0_50 = arith.constant 0 : index
    %c0_51 = arith.constant 0 : index
    %106 = vector.load %arg5[%c2, %c0_50, %c0_51] : memref<4x8x32xbf16, #tpu.memory_space<vmem>>, vector<1x8x32xbf16>
    %107 = vector.shape_cast %106 : vector<1x8x32xbf16> to vector<8x32xbf16>
    %cst_52 = arith.constant dense<0.000000e+00> : vector<12x32xf32>
    %108 = tpu.matmul %105, %107, %cst_52 {dimension_numbers = #tpu.dot_dimension_numbers<[1], [0], [0], [1], [0, 0, 1, 1], [], []>} : vector<12x8xbf16>, vector<8x32xbf16>, vector<12x32xf32> -> vector<12x32xf32>
    %109 = arith.addf %81, %108 : vector<12x32xf32>
    %110 = vector.extract_strided_slice %22 {offsets = [0, 24], sizes = [12, 8], strides = [1, 1]} : vector<12x32xf32> to vector<12x8xf32>
    %111 = arith.truncf %110 : vector<12x8xf32> to vector<12x8xbf16>
    %112 = vector.extract_strided_slice %23 {offsets = [0, 24], sizes = [12, 8], strides = [1, 1]} : vector<12x32xf32> to vector<12x8xf32>
    %113 = arith.truncf %112 : vector<12x8xf32> to vector<12x8xbf16>
    %114 = vector.extract_strided_slice %24 {offsets = [0, 24], sizes = [12, 8], strides = [1, 1]} : vector<12x32xf32> to vector<12x8xf32>
    %115 = arith.truncf %114 : vector<12x8xf32> to vector<12x8xbf16>
    %cst_53 = arith.constant dense<0.000000e+00> : vector<12x12xf32>
    %116 = tpu.matmul %111, %113, %cst_53 {dimension_numbers = #tpu.dot_dimension_numbers<[1], [1], [0], [0], [0, 0, 1, 0], [], []>} : vector<12x8xbf16>, vector<12x8xbf16>, vector<12x12xf32> -> vector<12x12xf32>
    %cst_54 = arith.constant 0.353553385 : f32
    %117 = vector.broadcast %cst_54 : f32 to vector<12x12xf32>
    %118 = arith.mulf %116, %117 : vector<12x12xf32>
    %cst_55 = arith.constant -1.000000e+09 : f32
    %119 = vector.broadcast %cst_55 : f32 to vector<12x12xf32>
    %120 = arith.select %6, %118, %119 : vector<12x12xi1>, vector<12x12xf32>
    %cst_56 = arith.constant dense<0xFF800000> : vector<12xf32>
    %121 = vector.multi_reduction <maximumf>, %120, %cst_56 [1] : vector<12x12xf32> to vector<12xf32>
    %122 = vector.shape_cast %121 : vector<12xf32> to vector<12x1xf32>
    %123 = vector.broadcast %122 : vector<12x1xf32> to vector<12x12xf32>
    %124 = arith.subf %120, %123 : vector<12x12xf32>
    %125 = math.exp %124 : vector<12x12xf32>
    %cst_57 = arith.constant dense<0.000000e+00> : vector<12xf32>
    %126 = vector.multi_reduction <add>, %125, %cst_57 [1] : vector<12x12xf32> to vector<12xf32>
    %127 = vector.shape_cast %126 : vector<12xf32> to vector<12x1xf32>
    %128 = tpu.reciprocal %127 {approx = true} : vector<12x1xf32> -> vector<12x1xf32>
    %129 = vector.broadcast %128 : vector<12x1xf32> to vector<12x12xf32>
    %130 = arith.mulf %125, %129 : vector<12x12xf32>
    %131 = arith.truncf %130 : vector<12x12xf32> to vector<12x12xbf16>
    %cst_58 = arith.constant dense<0.000000e+00> : vector<12x8xf32>
    %132 = tpu.matmul %131, %115, %cst_58 {dimension_numbers = #tpu.dot_dimension_numbers<[1], [0], [0], [1], [0, 0, 1, 1], [], []>} : vector<12x12xbf16>, vector<12x8xbf16>, vector<12x8xf32> -> vector<12x8xf32>
    %133 = arith.truncf %132 : vector<12x8xf32> to vector<12x8xbf16>
    %c3 = arith.constant 3 : index
    %c0_59 = arith.constant 0 : index
    %c0_60 = arith.constant 0 : index
    %134 = vector.load %arg5[%c3, %c0_59, %c0_60] : memref<4x8x32xbf16, #tpu.memory_space<vmem>>, vector<1x8x32xbf16>
    %135 = vector.shape_cast %134 : vector<1x8x32xbf16> to vector<8x32xbf16>
    %cst_61 = arith.constant dense<0.000000e+00> : vector<12x32xf32>
    %136 = tpu.matmul %133, %135, %cst_61 {dimension_numbers = #tpu.dot_dimension_numbers<[1], [0], [0], [1], [0, 0, 1, 1], [], []>} : vector<12x8xbf16>, vector<8x32xbf16>, vector<12x32xf32> -> vector<12x32xf32>
    %137 = arith.addf %109, %136 : vector<12x32xf32>
    %138 = vector.broadcast %9 : vector<1x32xf32> to vector<12x32xf32>
    %139 = arith.addf %137, %138 : vector<12x32xf32>
    %140 = arith.addf %1, %139 : vector<12x32xf32>
    %cst_62 = arith.constant dense<0.000000e+00> : vector<12xf32>
    %141 = vector.multi_reduction <add>, %140, %cst_62 [1] : vector<12x32xf32> to vector<12xf32>
    %142 = vector.shape_cast %141 : vector<12xf32> to vector<12x1xf32>
    %cst_63 = arith.constant 3.200000e+01 : f32
    %143 = vector.broadcast %cst_63 : f32 to vector<12x1xf32>
    %144 = arith.divf %142, %143 : vector<12x1xf32>
    %145 = vector.broadcast %144 : vector<12x1xf32> to vector<12x32xf32>
    %146 = arith.subf %140, %145 : vector<12x32xf32>
    %147 = arith.mulf %146, %146 : vector<12x32xf32>
    %cst_64 = arith.constant dense<0.000000e+00> : vector<12xf32>
    %148 = vector.multi_reduction <add>, %147, %cst_64 [1] : vector<12x32xf32> to vector<12xf32>
    %149 = vector.shape_cast %148 : vector<12xf32> to vector<12x1xf32>
    %cst_65 = arith.constant 3.200000e+01 : f32
    %150 = vector.broadcast %cst_65 : f32 to vector<12x1xf32>
    %151 = arith.divf %149, %150 : vector<12x1xf32>
    %152 = vector.broadcast %144 : vector<12x1xf32> to vector<12x32xf32>
    %153 = arith.subf %140, %152 : vector<12x32xf32>
    %cst_66 = arith.constant 9.99999974E-6 : f32
    %154 = vector.broadcast %cst_66 : f32 to vector<12x1xf32>
    %155 = arith.addf %151, %154 : vector<12x1xf32>
    %156 = math.rsqrt %155 : vector<12x1xf32>
    %157 = vector.broadcast %156 : vector<12x1xf32> to vector<12x32xf32>
    %158 = arith.mulf %153, %157 : vector<12x32xf32>
    %159 = vector.broadcast %10 : vector<1x32xf32> to vector<12x32xf32>
    %160 = arith.mulf %158, %159 : vector<12x32xf32>
    %161 = vector.broadcast %11 : vector<1x32xf32> to vector<12x32xf32>
    %162 = arith.addf %160, %161 : vector<12x32xf32>
    %163 = arith.truncf %162 : vector<12x32xf32> to vector<12x32xbf16>
    %cst_67 = arith.constant dense<0.000000e+00> : vector<12x64xf32>
    %164 = tpu.matmul %163, %12, %cst_67 {dimension_numbers = #tpu.dot_dimension_numbers<[1], [0], [0], [1], [0, 0, 1, 1], [], []>} : vector<12x32xbf16>, vector<32x64xbf16>, vector<12x64xf32> -> vector<12x64xf32>
    %165 = vector.broadcast %13 : vector<1x64xf32> to vector<12x64xf32>
    %166 = arith.addf %164, %165 : vector<12x64xf32>
    %cst_68 = arith.constant 0.000000e+00 : f32
    %167 = vector.broadcast %cst_68 : f32 to vector<12x64xf32>
    %168 = arith.maximumf %166, %167 : vector<12x64xf32>
    %169 = arith.truncf %168 : vector<12x64xf32> to vector<12x64xbf16>
    %cst_69 = arith.constant dense<0.000000e+00> : vector<12x32xf32>
    %170 = tpu.matmul %169, %14, %cst_69 {dimension_numbers = #tpu.dot_dimension_numbers<[1], [0], [0], [1], [0, 0, 1, 1], [], []>} : vector<12x64xbf16>, vector<64x32xbf16>, vector<12x32xf32> -> vector<12x32xf32>
    %171 = vector.broadcast %15 : vector<1x32xf32> to vector<12x32xf32>
    %172 = arith.addf %170, %171 : vector<12x32xf32>
    %173 = arith.addf %162, %172 : vector<12x32xf32>
    %cst_70 = arith.constant dense<0.000000e+00> : vector<12xf32>
    %174 = vector.multi_reduction <add>, %173, %cst_70 [1] : vector<12x32xf32> to vector<12xf32>
    %175 = vector.shape_cast %174 : vector<12xf32> to vector<12x1xf32>
    %cst_71 = arith.constant 3.200000e+01 : f32
    %176 = vector.broadcast %cst_71 : f32 to vector<12x1xf32>
    %177 = arith.divf %175, %176 : vector<12x1xf32>
    %178 = vector.broadcast %177 : vector<12x1xf32> to vector<12x32xf32>
    %179 = arith.subf %173, %178 : vector<12x32xf32>
    %180 = arith.mulf %179, %179 : vector<12x32xf32>
    %cst_72 = arith.constant dense<0.000000e+00> : vector<12xf32>
    %181 = vector.multi_reduction <add>, %180, %cst_72 [1] : vector<12x32xf32> to vector<12xf32>
    %182 = vector.shape_cast %181 : vector<12xf32> to vector<12x1xf32>
    %cst_73 = arith.constant 3.200000e+01 : f32
    %183 = vector.broadcast %cst_73 : f32 to vector<12x1xf32>
    %184 = arith.divf %182, %183 : vector<12x1xf32>
    %185 = vector.broadcast %177 : vector<12x1xf32> to vector<12x32xf32>
    %186 = arith.subf %173, %185 : vector<12x32xf32>
    %cst_74 = arith.constant 9.99999974E-6 : f32
    %187 = vector.broadcast %cst_74 : f32 to vector<12x1xf32>
    %188 = arith.addf %184, %187 : vector<12x1xf32>
    %189 = math.rsqrt %188 : vector<12x1xf32>
    %190 = vector.broadcast %189 : vector<12x1xf32> to vector<12x32xf32>
    %191 = arith.mulf %186, %190 : vector<12x32xf32>
    %192 = vector.broadcast %16 : vector<1x32xf32> to vector<12x32xf32>
    %193 = arith.mulf %191, %192 : vector<12x32xf32>
    %194 = vector.broadcast %17 : vector<1x32xf32> to vector<12x32xf32>
    %195 = arith.addf %193, %194 : vector<12x32xf32>
    %c0_75 = arith.constant 0 : index
    %c0_76 = arith.constant 0 : index
    %c0_77 = arith.constant 0 : index
    %196 = vector.load %arg15[%c0_75, %c0_76, %c0_77] : memref<1x12x32xf32, #tpu.memory_space<vmem>>, vector<1x12x32xf32>
    %197 = vector.shape_cast %196 : vector<1x12x32xf32> to vector<12x32xf32>
    %198 = vector.shape_cast %195 : vector<12x32xf32> to vector<1x12x32xf32>
    tpu.vector_store %arg15[%c0_75, %c0_76, %c0_77], %198 {strides = array<i32>} : memref<1x12x32xf32, #tpu.memory_space<vmem>>, vector<1x12x32xf32>,
    return
  }
  func.func @transform_0(%arg0: i32, %arg1: memref<2xi32, #tpu.memory_space<smem>>) -> (i32, i32, i32) {
    %c0_i32 = arith.constant 0 : i32
    %c0_i32_0 = arith.constant 0 : i32
    %c0_i32_1 = arith.constant 0 : i32
    return %arg0, %c0_i32, %c0_i32_0 : i32, i32, i32
  }
  func.func @transform_1(%arg0: i32, %arg1: memref<2xi32, #tpu.memory_space<smem>>) -> (i32, i32) {
    %c0_i32 = arith.constant 0 : i32
    %c0_i32_0 = arith.constant 0 : i32
    %c0_i32_1 = arith.constant 0 : i32
    return %c0_i32, %c0_i32_0 : i32, i32
  }
  func.func @transform_2(%arg0: i32, %arg1: memref<2xi32, #tpu.memory_space<smem>>) -> (i32, i32) {
    %c0_i32 = arith.constant 0 : i32
    %c0_i32_0 = arith.constant 0 : i32
    %c0_i32_1 = arith.constant 0 : i32
    return %c0_i32, %c0_i32_0 : i32, i32
  }
  func.func @transform_3(%arg0: i32, %arg1: memref<2xi32, #tpu.memory_space<smem>>) -> (i32, i32, i32) {
    %c0_i32 = arith.constant 0 : i32
    %c0_i32_0 = arith.constant 0 : i32
    %c0_i32_1 = arith.constant 0 : i32
    %c0_i32_2 = arith.constant 0 : i32
    return %c0_i32, %c0_i32_0, %c0_i32_1 : i32, i32, i32
  }
  func.func @transform_4(%arg0: i32, %arg1: memref<2xi32, #tpu.memory_space<smem>>) -> (i32, i32) {
    %c0_i32 = arith.constant 0 : i32
    %c0_i32_0 = arith.constant 0 : i32
    %c0_i32_1 = arith.constant 0 : i32
    return %c0_i32, %c0_i32_0 : i32, i32
  }
  func.func @transform_5(%arg0: i32, %arg1: memref<2xi32, #tpu.memory_space<smem>>) -> (i32, i32) {
    %c0_i32 = arith.constant 0 : i32
    %c0_i32_0 = arith.constant 0 : i32
    %c0_i32_1 = arith.constant 0 : i32
    return %c0_i32, %c0_i32_0 : i32, i32
  }
  func.func @transform_6(%arg0: i32, %arg1: memref<2xi32, #tpu.memory_space<smem>>) -> (i32, i32) {
    %c0_i32 = arith.constant 0 : i32
    %c0_i32_0 = arith.constant 0 : i32
    %c0_i32_1 = arith.constant 0 : i32
    return %c0_i32, %c0_i32_0 : i32, i32
  }
  func.func @transform_7(%arg0: i32, %arg1: memref<2xi32, #tpu.memory_space<smem>>) -> (i32, i32) {
    %c0_i32 = arith.constant 0 : i32
    %c0_i32_0 = arith.constant 0 : i32
    %c0_i32_1 = arith.constant 0 : i32
    return %c0_i32, %c0_i32_0 : i32, i32
  }
  func.func @transform_8(%arg0: i32, %arg1: memref<2xi32, #tpu.memory_space<smem>>) -> (i32, i32) {
    %c0_i32 = arith.constant 0 : i32
    %c0_i32_0 = arith.constant 0 : i32
    %c0_i32_1 = arith.constant 0 : i32
    return %c0_i32, %c0_i32_0 : i32, i32
  }
  func.func @transform_9(%arg0: i32, %arg1: memref<2xi32, #tpu.memory_space<smem>>) -> (i32, i32) {
    %c0_i32 = arith.constant 0 : i32
    %c0_i32_0 = arith.constant 0 : i32
    %c0_i32_1 = arith.constant 0 : i32
    return %c0_i32, %c0_i32_0 : i32, i32
  }
  func.func @transform_10(%arg0: i32, %arg1: memref<2xi32, #tpu.memory_space<smem>>) -> (i32, i32) {
    %c0_i32 = arith.constant 0 : i32
    %c0_i32_0 = arith.constant 0 : i32
    %c0_i32_1 = arith.constant 0 : i32
    return %c0_i32, %c0_i32_0 : i32, i32
  }
  func.func @transform_11(%arg0: i32, %arg1: memref<2xi32, #tpu.memory_space<smem>>) -> (i32, i32) {
    %c0_i32 = arith.constant 0 : i32
    %c0_i32_0 = arith.constant 0 : i32
    %c0_i32_1 = arith.constant 0 : i32
    return %c0_i32, %c0_i32_0 : i32, i32
  }
  func.func @transform_12(%arg0: i32, %arg1: memref<2xi32, #tpu.memory_space<smem>>) -> (i32, i32) {
    %c0_i32 = arith.constant 0 : i32
    %c0_i32_0 = arith.constant 0 : i32
    %c0_i32_1 = arith.constant 0 : i32
    return %c0_i32, %c0_i32_0 : i32, i32
  }
  func.func @transform_13(%arg0: i32, %arg1: memref<2xi32, #tpu.memory_space<smem>>) -> (i32, i32, i32) {
    %c0_i32 = arith.constant 0 : i32
    %c0_i32_0 = arith.constant 0 : i32
    %c0_i32_1 = arith.constant 0 : i32
    return %arg0, %c0_i32, %c0_i32_0 : i32, i32, i32
  }
}

module attributes {stable_mosaic.version = 11 : i64} {
  func.func @_proj_vq_kernel(%arg0: i32, %arg1: memref<1x4x32xf32, #tpu.memory_space<vmem>>, %arg2: memref<32x32xbf16, #tpu.memory_space<vmem>>, %arg3: memref<1x32xf32, #tpu.memory_space<vmem>>, %arg4: memref<64x32xbf16, #tpu.memory_space<vmem>>, %arg5: memref<64x32xbf16, #tpu.memory_space<vmem>>, %arg6: memref<1x4x64xf32, #tpu.memory_space<vmem>>, %arg7: memref<1x4x64xf32, #tpu.memory_space<vmem>>, %arg8: memref<1x4x32xf32, #tpu.memory_space<vmem>>) attributes {dimension_semantics = [#tpu.dimension_semantics<parallel>], iteration_bounds = array<i64: 2>, scalar_prefetch = 0 : i64, scratch_operands = 0 : i64, tpu.core_type = #tpu.core_type<tc>, window_params = [{transform_indices = @transform_0, window_bounds = array<i64: 1, 4, 32>}, {pipeline_mode = #tpu.pipeline_mode<synchronous>, transform_indices = @transform_1, window_bounds = array<i64: 32, 32>}, {pipeline_mode = #tpu.pipeline_mode<synchronous>, transform_indices = @transform_2, window_bounds = array<i64: 1, 32>}, {pipeline_mode = #tpu.pipeline_mode<synchronous>, transform_indices = @transform_3, window_bounds = array<i64: 64, 32>}, {pipeline_mode = #tpu.pipeline_mode<synchronous>, transform_indices = @transform_4, window_bounds = array<i64: 64, 32>}, {transform_indices = @transform_5, window_bounds = array<i64: 1, 4, 64>}, {transform_indices = @transform_6, window_bounds = array<i64: 1, 4, 64>}, {transform_indices = @transform_7, window_bounds = array<i64: 1, 4, 32>}]} {
    %c0 = arith.constant 0 : index
    %c0_0 = arith.constant 0 : index
    %c0_1 = arith.constant 0 : index
    %0 = vector.load %arg1[%c0, %c0_0, %c0_1] : memref<1x4x32xf32, #tpu.memory_space<vmem>>, vector<1x4x32xf32>
    %1 = vector.shape_cast %0 : vector<1x4x32xf32> to vector<4x32xf32>
    %2 = arith.truncf %1 : vector<4x32xf32> to vector<4x32xbf16>
    %c0_2 = arith.constant 0 : index
    %c0_3 = arith.constant 0 : index
    %3 = vector.load %arg2[%c0_2, %c0_3] : memref<32x32xbf16, #tpu.memory_space<vmem>>, vector<32x32xbf16>
    %cst = arith.constant dense<0.000000e+00> : vector<4x32xf32>
    %4 = tpu.matmul %2, %3, %cst {dimension_numbers = #tpu.dot_dimension_numbers<[1], [0], [0], [1], [0, 0, 1, 1], [], []>} : vector<4x32xbf16>, vector<32x32xbf16>, vector<4x32xf32> -> vector<4x32xf32>
    %c0_4 = arith.constant 0 : index
    %c0_5 = arith.constant 0 : index
    %5 = vector.load %arg3[%c0_4, %c0_5] : memref<1x32xf32, #tpu.memory_space<vmem>>, vector<1x32xf32>
    %6 = vector.broadcast %5 : vector<1x32xf32> to vector<4x32xf32>
    %7 = arith.addf %4, %6 : vector<4x32xf32>
    %8 = arith.mulf %7, %7 : vector<4x32xf32>
    %cst_6 = arith.constant dense<0.000000e+00> : vector<4xf32>
    %9 = vector.multi_reduction <add>, %8, %cst_6 [1] : vector<4x32xf32> to vector<4xf32>
    %10 = vector.shape_cast %9 : vector<4xf32> to vector<4x1xf32>
    %cst_7 = arith.constant 1.000000e-16 : f32
    %11 = vector.broadcast %cst_7 : f32 to vector<4x1xf32>
    %12 = arith.maximumf %10, %11 : vector<4x1xf32>
    %13 = math.rsqrt %12 : vector<4x1xf32>
    %14 = vector.broadcast %13 : vector<4x1xf32> to vector<4x32xf32>
    %15 = arith.mulf %7, %14 : vector<4x32xf32>
    %16 = arith.truncf %15 : vector<4x32xf32> to vector<4x32xbf16>
    %c0_8 = arith.constant 0 : index
    %c0_9 = arith.constant 0 : index
    %17 = vector.load %arg5[%c0_8, %c0_9] : memref<64x32xbf16, #tpu.memory_space<vmem>>, vector<64x32xbf16>
    %cst_10 = arith.constant dense<0.000000e+00> : vector<4x64xf32>
    %18 = tpu.matmul %16, %17, %cst_10 {dimension_numbers = #tpu.dot_dimension_numbers<[1], [1], [0], [0], [0, 0, 1, 0], [], []>} : vector<4x32xbf16>, vector<64x32xbf16>, vector<4x64xf32> -> vector<4x64xf32>
    %cst_11 = arith.constant 1.000000e+01 : f32
    %19 = vector.broadcast %cst_11 : f32 to vector<4x64xf32>
    %20 = arith.mulf %18, %19 : vector<4x64xf32>
    %cst_12 = arith.constant dense<0xFF800000> : vector<4xf32>
    %21 = vector.multi_reduction <maximumf>, %20, %cst_12 [1] : vector<4x64xf32> to vector<4xf32>
    %22 = vector.shape_cast %21 : vector<4xf32> to vector<4x1xf32>
    %23 = vector.broadcast %22 : vector<4x1xf32> to vector<4x64xf32>
    %24 = arith.subf %20, %23 : vector<4x64xf32>
    %25 = math.exp %24 : vector<4x64xf32>
    %cst_13 = arith.constant dense<0.000000e+00> : vector<4xf32>
    %26 = vector.multi_reduction <add>, %25, %cst_13 [1] : vector<4x64xf32> to vector<4xf32>
    %27 = vector.shape_cast %26 : vector<4xf32> to vector<4x1xf32>
    %28 = tpu.reciprocal %27 {approx = true} : vector<4x1xf32> -> vector<4x1xf32>
    %29 = vector.broadcast %28 : vector<4x1xf32> to vector<4x64xf32>
    %30 = arith.mulf %25, %29 : vector<4x64xf32>
    %c0_14 = arith.constant 0 : index
    %c0_15 = arith.constant 0 : index
    %c0_16 = arith.constant 0 : index
    %31 = vector.load %arg6[%c0_14, %c0_15, %c0_16] : memref<1x4x64xf32, #tpu.memory_space<vmem>>, vector<1x4x64xf32>
    %32 = vector.shape_cast %31 : vector<1x4x64xf32> to vector<4x64xf32>
    %33 = vector.shape_cast %18 : vector<4x64xf32> to vector<1x4x64xf32>
    tpu.vector_store %arg6[%c0_14, %c0_15, %c0_16], %33 {strides = array<i32>} : memref<1x4x64xf32, #tpu.memory_space<vmem>>, vector<1x4x64xf32>,
    %c0_17 = arith.constant 0 : index
    %c0_18 = arith.constant 0 : index
    %c0_19 = arith.constant 0 : index
    %34 = vector.load %arg7[%c0_17, %c0_18, %c0_19] : memref<1x4x64xf32, #tpu.memory_space<vmem>>, vector<1x4x64xf32>
    %35 = vector.shape_cast %34 : vector<1x4x64xf32> to vector<4x64xf32>
    %36 = vector.shape_cast %30 : vector<4x64xf32> to vector<1x4x64xf32>
    tpu.vector_store %arg7[%c0_17, %c0_18, %c0_19], %36 {strides = array<i32>} : memref<1x4x64xf32, #tpu.memory_space<vmem>>, vector<1x4x64xf32>,
    %37 = arith.truncf %30 : vector<4x64xf32> to vector<4x64xbf16>
    %c0_20 = arith.constant 0 : index
    %c0_21 = arith.constant 0 : index
    %38 = vector.load %arg4[%c0_20, %c0_21] : memref<64x32xbf16, #tpu.memory_space<vmem>>, vector<64x32xbf16>
    %cst_22 = arith.constant dense<0.000000e+00> : vector<4x32xf32>
    %39 = tpu.matmul %37, %38, %cst_22 {dimension_numbers = #tpu.dot_dimension_numbers<[1], [0], [0], [1], [0, 0, 1, 1], [], []>} : vector<4x64xbf16>, vector<64x32xbf16>, vector<4x32xf32> -> vector<4x32xf32>
    %c0_23 = arith.constant 0 : index
    %c0_24 = arith.constant 0 : index
    %c0_25 = arith.constant 0 : index
    %40 = vector.load %arg8[%c0_23, %c0_24, %c0_25] : memref<1x4x32xf32, #tpu.memory_space<vmem>>, vector<1x4x32xf32>
    %41 = vector.shape_cast %40 : vector<1x4x32xf32> to vector<4x32xf32>
    %42 = vector.shape_cast %39 : vector<4x32xf32> to vector<1x4x32xf32>
    tpu.vector_store %arg8[%c0_23, %c0_24, %c0_25], %42 {strides = array<i32>} : memref<1x4x32xf32, #tpu.memory_space<vmem>>, vector<1x4x32xf32>,
    return
  }
  func.func @transform_0(%arg0: i32) -> (i32, i32, i32) {
    %c0_i32 = arith.constant 0 : i32
    %c0_i32_0 = arith.constant 0 : i32
    %c0_i32_1 = arith.constant 0 : i32
    return %arg0, %c0_i32, %c0_i32_0 : i32, i32, i32
  }
  func.func @transform_1(%arg0: i32) -> (i32, i32) {
    %c0_i32 = arith.constant 0 : i32
    %c0_i32_0 = arith.constant 0 : i32
    %c0_i32_1 = arith.constant 0 : i32
    return %c0_i32, %c0_i32_0 : i32, i32
  }
  func.func @transform_2(%arg0: i32) -> (i32, i32) {
    %c0_i32 = arith.constant 0 : i32
    %c0_i32_0 = arith.constant 0 : i32
    %c0_i32_1 = arith.constant 0 : i32
    return %c0_i32, %c0_i32_0 : i32, i32
  }
  func.func @transform_3(%arg0: i32) -> (i32, i32) {
    %c0_i32 = arith.constant 0 : i32
    %c0_i32_0 = arith.constant 0 : i32
    %c0_i32_1 = arith.constant 0 : i32
    return %c0_i32, %c0_i32_0 : i32, i32
  }
  func.func @transform_4(%arg0: i32) -> (i32, i32) {
    %c0_i32 = arith.constant 0 : i32
    %c0_i32_0 = arith.constant 0 : i32
    %c0_i32_1 = arith.constant 0 : i32
    return %c0_i32, %c0_i32_0 : i32, i32
  }
  func.func @transform_5(%arg0: i32) -> (i32, i32, i32) {
    %c0_i32 = arith.constant 0 : i32
    %c0_i32_0 = arith.constant 0 : i32
    %c0_i32_1 = arith.constant 0 : i32
    return %arg0, %c0_i32, %c0_i32_0 : i32, i32, i32
  }
  func.func @transform_6(%arg0: i32) -> (i32, i32, i32) {
    %c0_i32 = arith.constant 0 : i32
    %c0_i32_0 = arith.constant 0 : i32
    %c0_i32_1 = arith.constant 0 : i32
    return %arg0, %c0_i32, %c0_i32_0 : i32, i32, i32
  }
  func.func @transform_7(%arg0: i32) -> (i32, i32, i32) {
    %c0_i32 = arith.constant 0 : i32
    %c0_i32_0 = arith.constant 0 : i32
    %c0_i32_1 = arith.constant 0 : i32
    return %arg0, %c0_i32, %c0_i32_0 : i32, i32, i32
  }
}

module attributes {stable_mosaic.version = 11 : i64} {
  func.func @_clip_text_kernel(%arg0: i32, %arg1: memref<1x6x32xf32, #tpu.memory_space<vmem>>, %arg2: memref<32x96xbf16, #tpu.memory_space<vmem>>, %arg3: memref<1x96xf32, #tpu.memory_space<vmem>>, %arg4: memref<4x8x32xbf16, #tpu.memory_space<vmem>>, %arg5: memref<1x32xf32, #tpu.memory_space<vmem>>, %arg6: memref<1x32xf32, #tpu.memory_space<vmem>>, %arg7: memref<1x32xf32, #tpu.memory_space<vmem>>, %arg8: memref<32x64xbf16, #tpu.memory_space<vmem>>, %arg9: memref<1x64xf32, #tpu.memory_space<vmem>>, %arg10: memref<64x32xbf16, #tpu.memory_space<vmem>>, %arg11: memref<1x32xf32, #tpu.memory_space<vmem>>, %arg12: memref<1x32xf32, #tpu.memory_space<vmem>>, %arg13: memref<1x32xf32, #tpu.memory_space<vmem>>, %arg14: memref<1x32xf32, #tpu.memory_space<vmem>>, %arg15: memref<1x32xf32, #tpu.memory_space<vmem>>, %arg16: memref<32x32xbf16, #tpu.memory_space<vmem>>, %arg17: memref<1x1x32xf32, #tpu.memory_space<vmem>>) attributes {dimension_semantics = [#tpu.dimension_semantics<parallel>], iteration_bounds = array<i64: 2>, scalar_prefetch = 0 : i64, scratch_operands = 0 : i64, tpu.core_type = #tpu.core_type<tc>, window_params = [{transform_indices = @transform_0, window_bounds = array<i64: 1, 6, 32>}, {pipeline_mode = #tpu.pipeline_mode<synchronous>, transform_indices = @transform_1, window_bounds = array<i64: 32, 96>}, {pipeline_mode = #tpu.pipeline_mode<synchronous>, transform_indices = @transform_2, window_bounds = array<i64: 1, 96>}, {pipeline_mode = #tpu.pipeline_mode<synchronous>, transform_indices = @transform_3, window_bounds = array<i64: 4, 8, 32>}, {pipeline_mode = #tpu.pipeline_mode<synchronous>, transform_indices = @transform_4, window_bounds = array<i64: 1, 32>}, {pipeline_mode = #tpu.pipeline_mode<synchronous>, transform_indices = @transform_5, window_bounds = array<i64: 1, 32>}, {pipeline_mode = #tpu.pipeline_mode<synchronous>, transform_indices = @transform_6, window_bounds = array<i64: 1, 32>}, {pipeline_mode = #tpu.pipeline_mode<synchronous>, transform_indices = @transform_7, window_bounds = array<i64: 32, 64>}, {pipeline_mode = #tpu.pipeline_mode<synchronous>, transform_indices = @transform_8, window_bounds = array<i64: 1, 64>}, {pipeline_mode = #tpu.pipeline_mode<synchronous>, transform_indices = @transform_9, window_bounds = array<i64: 64, 32>}, {pipeline_mode = #tpu.pipeline_mode<synchronous>, transform_indices = @transform_10, window_bounds = array<i64: 1, 32>}, {pipeline_mode = #tpu.pipeline_mode<synchronous>, transform_indices = @transform_11, window_bounds = array<i64: 1, 32>}, {pipeline_mode = #tpu.pipeline_mode<synchronous>, transform_indices = @transform_12, window_bounds = array<i64: 1, 32>}, {pipeline_mode = #tpu.pipeline_mode<synchronous>, transform_indices = @transform_13, window_bounds = array<i64: 1, 32>}, {pipeline_mode = #tpu.pipeline_mode<synchronous>, transform_indices = @transform_14, window_bounds = array<i64: 1, 32>}, {pipeline_mode = #tpu.pipeline_mode<synchronous>, transform_indices = @transform_15, window_bounds = array<i64: 32, 32>}, {transform_indices = @transform_16, window_bounds = array<i64: 1, 1, 32>}]} {
    %c0 = arith.constant 0 : index
    %c0_0 = arith.constant 0 : index
    %c0_1 = arith.constant 0 : index
    %0 = vector.load %arg1[%c0, %c0_0, %c0_1] : memref<1x6x32xf32, #tpu.memory_space<vmem>>, vector<1x6x32xf32>
    %1 = vector.shape_cast %0 : vector<1x6x32xf32> to vector<6x32xf32>
    %2 = tpu.iota {dimensions = array<i32: 0>} : vector<6x6xi32>
    %3 = tpu.iota {dimensions = array<i32: 1>} : vector<6x6xi32>
    %4 = arith.cmpi sle, %3, %2 : vector<6x6xi32>
    %c0_2 = arith.constant 0 : index
    %c0_3 = arith.constant 0 : index
    %5 = vector.load %arg2[%c0_2, %c0_3] : memref<32x96xbf16, #tpu.memory_space<vmem>>, vector<32x96xbf16>
    %c0_4 = arith.constant 0 : index
    %c0_5 = arith.constant 0 : index
    %6 = vector.load %arg3[%c0_4, %c0_5] : memref<1x96xf32, #tpu.memory_space<vmem>>, vector<1x96xf32>
    %c0_6 = arith.constant 0 : index
    %c0_7 = arith.constant 0 : index
    %7 = vector.load %arg5[%c0_6, %c0_7] : memref<1x32xf32, #tpu.memory_space<vmem>>, vector<1x32xf32>
    %c0_8 = arith.constant 0 : index
    %c0_9 = arith.constant 0 : index
    %8 = vector.load %arg6[%c0_8, %c0_9] : memref<1x32xf32, #tpu.memory_space<vmem>>, vector<1x32xf32>
    %c0_10 = arith.constant 0 : index
    %c0_11 = arith.constant 0 : index
    %9 = vector.load %arg7[%c0_10, %c0_11] : memref<1x32xf32, #tpu.memory_space<vmem>>, vector<1x32xf32>
    %c0_12 = arith.constant 0 : index
    %c0_13 = arith.constant 0 : index
    %10 = vector.load %arg8[%c0_12, %c0_13] : memref<32x64xbf16, #tpu.memory_space<vmem>>, vector<32x64xbf16>
    %c0_14 = arith.constant 0 : index
    %c0_15 = arith.constant 0 : index
    %11 = vector.load %arg9[%c0_14, %c0_15] : memref<1x64xf32, #tpu.memory_space<vmem>>, vector<1x64xf32>
    %c0_16 = arith.constant 0 : index
    %c0_17 = arith.constant 0 : index
    %12 = vector.load %arg10[%c0_16, %c0_17] : memref<64x32xbf16, #tpu.memory_space<vmem>>, vector<64x32xbf16>
    %c0_18 = arith.constant 0 : index
    %c0_19 = arith.constant 0 : index
    %13 = vector.load %arg11[%c0_18, %c0_19] : memref<1x32xf32, #tpu.memory_space<vmem>>, vector<1x32xf32>
    %c0_20 = arith.constant 0 : index
    %c0_21 = arith.constant 0 : index
    %14 = vector.load %arg12[%c0_20, %c0_21] : memref<1x32xf32, #tpu.memory_space<vmem>>, vector<1x32xf32>
    %c0_22 = arith.constant 0 : index
    %c0_23 = arith.constant 0 : index
    %15 = vector.load %arg13[%c0_22, %c0_23] : memref<1x32xf32, #tpu.memory_space<vmem>>, vector<1x32xf32>
    %16 = arith.truncf %1 : vector<6x32xf32> to vector<6x32xbf16>
    %cst = arith.constant dense<0.000000e+00> : vector<6x96xf32>
    %17 = tpu.matmul %16, %5, %cst {dimension_numbers = #tpu.dot_dimension_numbers<[1], [0], [0], [1], [0, 0, 1, 1], [], []>} : vector<6x32xbf16>, vector<32x96xbf16>, vector<6x96xf32> -> vector<6x96xf32>
    %18 = vector.broadcast %6 : vector<1x96xf32> to vector<6x96xf32>
    %19 = arith.addf %17, %18 : vector<6x96xf32>
    %20 = vector.extract_strided_slice %19 {offsets = [0, 0], sizes = [6, 32], strides = [1, 1]} : vector<6x96xf32> to vector<6x32xf32>
    %21 = vector.extract_strided_slice %19 {offsets = [0, 32], sizes = [6, 32], strides = [1, 1]} : vector<6x96xf32> to vector<6x32xf32>
    %22 = vector.extract_strided_slice %19 {offsets = [0, 64], sizes = [6, 32], strides = [1, 1]} : vector<6x96xf32> to vector<6x32xf32>
    %cst_24 = arith.constant 0.000000e+00 : f32
    %23 = vector.broadcast %cst_24 : f32 to vector<6x32xf32>
    %24 = vector.extract_strided_slice %20 {offsets = [0, 0], sizes = [6, 8], strides = [1, 1]} : vector<6x32xf32> to vector<6x8xf32>
    %25 = arith.truncf %24 : vector<6x8xf32> to vector<6x8xbf16>
    %26 = vector.extract_strided_slice %21 {offsets = [0, 0], sizes = [6, 8], strides = [1, 1]} : vector<6x32xf32> to vector<6x8xf32>
    %27 = arith.truncf %26 : vector<6x8xf32> to vector<6x8xbf16>
    %28 = vector.extract_strided_slice %22 {offsets = [0, 0], sizes = [6, 8], strides = [1, 1]} : vector<6x32xf32> to vector<6x8xf32>
    %29 = arith.truncf %28 : vector<6x8xf32> to vector<6x8xbf16>
    %cst_25 = arith.constant dense<0.000000e+00> : vector<6x6xf32>
    %30 = tpu.matmul %25, %27, %cst_25 {dimension_numbers = #tpu.dot_dimension_numbers<[1], [1], [0], [0], [0, 0, 1, 0], [], []>} : vector<6x8xbf16>, vector<6x8xbf16>, vector<6x6xf32> -> vector<6x6xf32>
    %cst_26 = arith.constant 0.353553385 : f32
    %31 = vector.broadcast %cst_26 : f32 to vector<6x6xf32>
    %32 = arith.mulf %30, %31 : vector<6x6xf32>
    %cst_27 = arith.constant -1.000000e+09 : f32
    %33 = vector.broadcast %cst_27 : f32 to vector<6x6xf32>
    %34 = arith.select %4, %32, %33 : vector<6x6xi1>, vector<6x6xf32>
    %cst_28 = arith.constant dense<0xFF800000> : vector<6xf32>
    %35 = vector.multi_reduction <maximumf>, %34, %cst_28 [1] : vector<6x6xf32> to vector<6xf32>
    %36 = vector.shape_cast %35 : vector<6xf32> to vector<6x1xf32>
    %37 = vector.broadcast %36 : vector<6x1xf32> to vector<6x6xf32>
    %38 = arith.subf %34, %37 : vector<6x6xf32>
    %39 = math.exp %38 : vector<6x6xf32>
    %cst_29 = arith.constant dense<0.000000e+00> : vector<6xf32>
    %40 = vector.multi_reduction <add>, %39, %cst_29 [1] : vector<6x6xf32> to vector<6xf32>
    %41 = vector.shape_cast %40 : vector<6xf32> to vector<6x1xf32>
    %42 = tpu.reciprocal %41 {approx = true} : vector<6x1xf32> -> vector<6x1xf32>
    %43 = vector.broadcast %42 : vector<6x1xf32> to vector<6x6xf32>
    %44 = arith.mulf %39, %43 : vector<6x6xf32>
    %45 = arith.truncf %44 : vector<6x6xf32> to vector<6x6xbf16>
    %cst_30 = arith.constant dense<0.000000e+00> : vector<6x8xf32>
    %46 = tpu.matmul %45, %29, %cst_30 {dimension_numbers = #tpu.dot_dimension_numbers<[1], [0], [0], [1], [0, 0, 1, 1], [], []>} : vector<6x6xbf16>, vector<6x8xbf16>, vector<6x8xf32> -> vector<6x8xf32>
    %47 = arith.truncf %46 : vector<6x8xf32> to vector<6x8xbf16>
    %c0_31 = arith.constant 0 : index
    %c0_32 = arith.constant 0 : index
    %c0_33 = arith.constant 0 : index
    %48 = vector.load %arg4[%c0_31, %c0_32, %c0_33] : memref<4x8x32xbf16, #tpu.memory_space<vmem>>, vector<1x8x32xbf16>
    %49 = vector.shape_cast %48 : vector<1x8x32xbf16> to vector<8x32xbf16>
    %cst_34 = arith.constant dense<0.000000e+00> : vector<6x32xf32>
    %50 = tpu.matmul %47, %49, %cst_34 {dimension_numbers = #tpu.dot_dimension_numbers<[1], [0], [0], [1], [0, 0, 1, 1], [], []>} : vector<6x8xbf16>, vector<8x32xbf16>, vector<6x32xf32> -> vector<6x32xf32>
    %51 = arith.addf %23, %50 : vector<6x32xf32>
    %52 = vector.extract_strided_slice %20 {offsets = [0, 8], sizes = [6, 8], strides = [1, 1]} : vector<6x32xf32> to vector<6x8xf32>
    %53 = arith.truncf %52 : vector<6x8xf32> to vector<6x8xbf16>
    %54 = vector.extract_strided_slice %21 {offsets = [0, 8], sizes = [6, 8], strides = [1, 1]} : vector<6x32xf32> to vector<6x8xf32>
    %55 = arith.truncf %54 : vector<6x8xf32> to vector<6x8xbf16>
    %56 = vector.extract_strided_slice %22 {offsets = [0, 8], sizes = [6, 8], strides = [1, 1]} : vector<6x32xf32> to vector<6x8xf32>
    %57 = arith.truncf %56 : vector<6x8xf32> to vector<6x8xbf16>
    %cst_35 = arith.constant dense<0.000000e+00> : vector<6x6xf32>
    %58 = tpu.matmul %53, %55, %cst_35 {dimension_numbers = #tpu.dot_dimension_numbers<[1], [1], [0], [0], [0, 0, 1, 0], [], []>} : vector<6x8xbf16>, vector<6x8xbf16>, vector<6x6xf32> -> vector<6x6xf32>
    %cst_36 = arith.constant 0.353553385 : f32
    %59 = vector.broadcast %cst_36 : f32 to vector<6x6xf32>
    %60 = arith.mulf %58, %59 : vector<6x6xf32>
    %cst_37 = arith.constant -1.000000e+09 : f32
    %61 = vector.broadcast %cst_37 : f32 to vector<6x6xf32>
    %62 = arith.select %4, %60, %61 : vector<6x6xi1>, vector<6x6xf32>
    %cst_38 = arith.constant dense<0xFF800000> : vector<6xf32>
    %63 = vector.multi_reduction <maximumf>, %62, %cst_38 [1] : vector<6x6xf32> to vector<6xf32>
    %64 = vector.shape_cast %63 : vector<6xf32> to vector<6x1xf32>
    %65 = vector.broadcast %64 : vector<6x1xf32> to vector<6x6xf32>
    %66 = arith.subf %62, %65 : vector<6x6xf32>
    %67 = math.exp %66 : vector<6x6xf32>
    %cst_39 = arith.constant dense<0.000000e+00> : vector<6xf32>
    %68 = vector.multi_reduction <add>, %67, %cst_39 [1] : vector<6x6xf32> to vector<6xf32>
    %69 = vector.shape_cast %68 : vector<6xf32> to vector<6x1xf32>
    %70 = tpu.reciprocal %69 {approx = true} : vector<6x1xf32> -> vector<6x1xf32>
    %71 = vector.broadcast %70 : vector<6x1xf32> to vector<6x6xf32>
    %72 = arith.mulf %67, %71 : vector<6x6xf32>
    %73 = arith.truncf %72 : vector<6x6xf32> to vector<6x6xbf16>
    %cst_40 = arith.constant dense<0.000000e+00> : vector<6x8xf32>
    %74 = tpu.matmul %73, %57, %cst_40 {dimension_numbers = #tpu.dot_dimension_numbers<[1], [0], [0], [1], [0, 0, 1, 1], [], []>} : vector<6x6xbf16>, vector<6x8xbf16>, vector<6x8xf32> -> vector<6x8xf32>
    %75 = arith.truncf %74 : vector<6x8xf32> to vector<6x8xbf16>
    %c1 = arith.constant 1 : index
    %c0_41 = arith.constant 0 : index
    %c0_42 = arith.constant 0 : index
    %76 = vector.load %arg4[%c1, %c0_41, %c0_42] : memref<4x8x32xbf16, #tpu.memory_space<vmem>>, vector<1x8x32xbf16>
    %77 = vector.shape_cast %76 : vector<1x8x32xbf16> to vector<8x32xbf16>
    %cst_43 = arith.constant dense<0.000000e+00> : vector<6x32xf32>
    %78 = tpu.matmul %75, %77, %cst_43 {dimension_numbers = #tpu.dot_dimension_numbers<[1], [0], [0], [1], [0, 0, 1, 1], [], []>} : vector<6x8xbf16>, vector<8x32xbf16>, vector<6x32xf32> -> vector<6x32xf32>
    %79 = arith.addf %51, %78 : vector<6x32xf32>
    %80 = vector.extract_strided_slice %20 {offsets = [0, 16], sizes = [6, 8], strides = [1, 1]} : vector<6x32xf32> to vector<6x8xf32>
    %81 = arith.truncf %80 : vector<6x8xf32> to vector<6x8xbf16>
    %82 = vector.extract_strided_slice %21 {offsets = [0, 16], sizes = [6, 8], strides = [1, 1]} : vector<6x32xf32> to vector<6x8xf32>
    %83 = arith.truncf %82 : vector<6x8xf32> to vector<6x8xbf16>
    %84 = vector.extract_strided_slice %22 {offsets = [0, 16], sizes = [6, 8], strides = [1, 1]} : vector<6x32xf32> to vector<6x8xf32>
    %85 = arith.truncf %84 : vector<6x8xf32> to vector<6x8xbf16>
    %cst_44 = arith.constant dense<0.000000e+00> : vector<6x6xf32>
    %86 = tpu.matmul %81, %83, %cst_44 {dimension_numbers = #tpu.dot_dimension_numbers<[1], [1], [0], [0], [0, 0, 1, 0], [], []>} : vector<6x8xbf16>, vector<6x8xbf16>, vector<6x6xf32> -> vector<6x6xf32>
    %cst_45 = arith.constant 0.353553385 : f32
    %87 = vector.broadcast %cst_45 : f32 to vector<6x6xf32>
    %88 = arith.mulf %86, %87 : vector<6x6xf32>
    %cst_46 = arith.constant -1.000000e+09 : f32
    %89 = vector.broadcast %cst_46 : f32 to vector<6x6xf32>
    %90 = arith.select %4, %88, %89 : vector<6x6xi1>, vector<6x6xf32>
    %cst_47 = arith.constant dense<0xFF800000> : vector<6xf32>
    %91 = vector.multi_reduction <maximumf>, %90, %cst_47 [1] : vector<6x6xf32> to vector<6xf32>
    %92 = vector.shape_cast %91 : vector<6xf32> to vector<6x1xf32>
    %93 = vector.broadcast %92 : vector<6x1xf32> to vector<6x6xf32>
    %94 = arith.subf %90, %93 : vector<6x6xf32>
    %95 = math.exp %94 : vector<6x6xf32>
    %cst_48 = arith.constant dense<0.000000e+00> : vector<6xf32>
    %96 = vector.multi_reduction <add>, %95, %cst_48 [1] : vector<6x6xf32> to vector<6xf32>
    %97 = vector.shape_cast %96 : vector<6xf32> to vector<6x1xf32>
    %98 = tpu.reciprocal %97 {approx = true} : vector<6x1xf32> -> vector<6x1xf32>
    %99 = vector.broadcast %98 : vector<6x1xf32> to vector<6x6xf32>
    %100 = arith.mulf %95, %99 : vector<6x6xf32>
    %101 = arith.truncf %100 : vector<6x6xf32> to vector<6x6xbf16>
    %cst_49 = arith.constant dense<0.000000e+00> : vector<6x8xf32>
    %102 = tpu.matmul %101, %85, %cst_49 {dimension_numbers = #tpu.dot_dimension_numbers<[1], [0], [0], [1], [0, 0, 1, 1], [], []>} : vector<6x6xbf16>, vector<6x8xbf16>, vector<6x8xf32> -> vector<6x8xf32>
    %103 = arith.truncf %102 : vector<6x8xf32> to vector<6x8xbf16>
    %c2 = arith.constant 2 : index
    %c0_50 = arith.constant 0 : index
    %c0_51 = arith.constant 0 : index
    %104 = vector.load %arg4[%c2, %c0_50, %c0_51] : memref<4x8x32xbf16, #tpu.memory_space<vmem>>, vector<1x8x32xbf16>
    %105 = vector.shape_cast %104 : vector<1x8x32xbf16> to vector<8x32xbf16>
    %cst_52 = arith.constant dense<0.000000e+00> : vector<6x32xf32>
    %106 = tpu.matmul %103, %105, %cst_52 {dimension_numbers = #tpu.dot_dimension_numbers<[1], [0], [0], [1], [0, 0, 1, 1], [], []>} : vector<6x8xbf16>, vector<8x32xbf16>, vector<6x32xf32> -> vector<6x32xf32>
    %107 = arith.addf %79, %106 : vector<6x32xf32>
    %108 = vector.extract_strided_slice %20 {offsets = [0, 24], sizes = [6, 8], strides = [1, 1]} : vector<6x32xf32> to vector<6x8xf32>
    %109 = arith.truncf %108 : vector<6x8xf32> to vector<6x8xbf16>
    %110 = vector.extract_strided_slice %21 {offsets = [0, 24], sizes = [6, 8], strides = [1, 1]} : vector<6x32xf32> to vector<6x8xf32>
    %111 = arith.truncf %110 : vector<6x8xf32> to vector<6x8xbf16>
    %112 = vector.extract_strided_slice %22 {offsets = [0, 24], sizes = [6, 8], strides = [1, 1]} : vector<6x32xf32> to vector<6x8xf32>
    %113 = arith.truncf %112 : vector<6x8xf32> to vector<6x8xbf16>
    %cst_53 = arith.constant dense<0.000000e+00> : vector<6x6xf32>
    %114 = tpu.matmul %109, %111, %cst_53 {dimension_numbers = #tpu.dot_dimension_numbers<[1], [1], [0], [0], [0, 0, 1, 0], [], []>} : vector<6x8xbf16>, vector<6x8xbf16>, vector<6x6xf32> -> vector<6x6xf32>
    %cst_54 = arith.constant 0.353553385 : f32
    %115 = vector.broadcast %cst_54 : f32 to vector<6x6xf32>
    %116 = arith.mulf %114, %115 : vector<6x6xf32>
    %cst_55 = arith.constant -1.000000e+09 : f32
    %117 = vector.broadcast %cst_55 : f32 to vector<6x6xf32>
    %118 = arith.select %4, %116, %117 : vector<6x6xi1>, vector<6x6xf32>
    %cst_56 = arith.constant dense<0xFF800000> : vector<6xf32>
    %119 = vector.multi_reduction <maximumf>, %118, %cst_56 [1] : vector<6x6xf32> to vector<6xf32>
    %120 = vector.shape_cast %119 : vector<6xf32> to vector<6x1xf32>
    %121 = vector.broadcast %120 : vector<6x1xf32> to vector<6x6xf32>
    %122 = arith.subf %118, %121 : vector<6x6xf32>
    %123 = math.exp %122 : vector<6x6xf32>
    %cst_57 = arith.constant dense<0.000000e+00> : vector<6xf32>
    %124 = vector.multi_reduction <add>, %123, %cst_57 [1] : vector<6x6xf32> to vector<6xf32>
    %125 = vector.shape_cast %124 : vector<6xf32> to vector<6x1xf32>
    %126 = tpu.reciprocal %125 {approx = true} : vector<6x1xf32> -> vector<6x1xf32>
    %127 = vector.broadcast %126 : vector<6x1xf32> to vector<6x6xf32>
    %128 = arith.mulf %123, %127 : vector<6x6xf32>
    %129 = arith.truncf %128 : vector<6x6xf32> to vector<6x6xbf16>
    %cst_58 = arith.constant dense<0.000000e+00> : vector<6x8xf32>
    %130 = tpu.matmul %129, %113, %cst_58 {dimension_numbers = #tpu.dot_dimension_numbers<[1], [0], [0], [1], [0, 0, 1, 1], [], []>} : vector<6x6xbf16>, vector<6x8xbf16>, vector<6x8xf32> -> vector<6x8xf32>
    %131 = arith.truncf %130 : vector<6x8xf32> to vector<6x8xbf16>
    %c3 = arith.constant 3 : index
    %c0_59 = arith.constant 0 : index
    %c0_60 = arith.constant 0 : index
    %132 = vector.load %arg4[%c3, %c0_59, %c0_60] : memref<4x8x32xbf16, #tpu.memory_space<vmem>>, vector<1x8x32xbf16>
    %133 = vector.shape_cast %132 : vector<1x8x32xbf16> to vector<8x32xbf16>
    %cst_61 = arith.constant dense<0.000000e+00> : vector<6x32xf32>
    %134 = tpu.matmul %131, %133, %cst_61 {dimension_numbers = #tpu.dot_dimension_numbers<[1], [0], [0], [1], [0, 0, 1, 1], [], []>} : vector<6x8xbf16>, vector<8x32xbf16>, vector<6x32xf32> -> vector<6x32xf32>
    %135 = arith.addf %107, %134 : vector<6x32xf32>
    %136 = vector.broadcast %7 : vector<1x32xf32> to vector<6x32xf32>
    %137 = arith.addf %135, %136 : vector<6x32xf32>
    %138 = arith.addf %1, %137 : vector<6x32xf32>
    %cst_62 = arith.constant dense<0.000000e+00> : vector<6xf32>
    %139 = vector.multi_reduction <add>, %138, %cst_62 [1] : vector<6x32xf32> to vector<6xf32>
    %140 = vector.shape_cast %139 : vector<6xf32> to vector<6x1xf32>
    %cst_63 = arith.constant 3.200000e+01 : f32
    %141 = vector.broadcast %cst_63 : f32 to vector<6x1xf32>
    %142 = arith.divf %140, %141 : vector<6x1xf32>
    %143 = vector.broadcast %142 : vector<6x1xf32> to vector<6x32xf32>
    %144 = arith.subf %138, %143 : vector<6x32xf32>
    %145 = arith.mulf %144, %144 : vector<6x32xf32>
    %cst_64 = arith.constant dense<0.000000e+00> : vector<6xf32>
    %146 = vector.multi_reduction <add>, %145, %cst_64 [1] : vector<6x32xf32> to vector<6xf32>
    %147 = vector.shape_cast %146 : vector<6xf32> to vector<6x1xf32>
    %cst_65 = arith.constant 3.200000e+01 : f32
    %148 = vector.broadcast %cst_65 : f32 to vector<6x1xf32>
    %149 = arith.divf %147, %148 : vector<6x1xf32>
    %150 = vector.broadcast %142 : vector<6x1xf32> to vector<6x32xf32>
    %151 = arith.subf %138, %150 : vector<6x32xf32>
    %cst_66 = arith.constant 9.99999974E-6 : f32
    %152 = vector.broadcast %cst_66 : f32 to vector<6x1xf32>
    %153 = arith.addf %149, %152 : vector<6x1xf32>
    %154 = math.rsqrt %153 : vector<6x1xf32>
    %155 = vector.broadcast %154 : vector<6x1xf32> to vector<6x32xf32>
    %156 = arith.mulf %151, %155 : vector<6x32xf32>
    %157 = vector.broadcast %8 : vector<1x32xf32> to vector<6x32xf32>
    %158 = arith.mulf %156, %157 : vector<6x32xf32>
    %159 = vector.broadcast %9 : vector<1x32xf32> to vector<6x32xf32>
    %160 = arith.addf %158, %159 : vector<6x32xf32>
    %161 = arith.truncf %160 : vector<6x32xf32> to vector<6x32xbf16>
    %cst_67 = arith.constant dense<0.000000e+00> : vector<6x64xf32>
    %162 = tpu.matmul %161, %10, %cst_67 {dimension_numbers = #tpu.dot_dimension_numbers<[1], [0], [0], [1], [0, 0, 1, 1], [], []>} : vector<6x32xbf16>, vector<32x64xbf16>, vector<6x64xf32> -> vector<6x64xf32>
    %163 = vector.broadcast %11 : vector<1x64xf32> to vector<6x64xf32>
    %164 = arith.addf %162, %163 : vector<6x64xf32>
    %cst_68 = arith.constant 0.000000e+00 : f32
    %165 = vector.broadcast %cst_68 : f32 to vector<6x64xf32>
    %166 = arith.maximumf %164, %165 : vector<6x64xf32>
    %167 = arith.truncf %166 : vector<6x64xf32> to vector<6x64xbf16>
    %cst_69 = arith.constant dense<0.000000e+00> : vector<6x32xf32>
    %168 = tpu.matmul %167, %12, %cst_69 {dimension_numbers = #tpu.dot_dimension_numbers<[1], [0], [0], [1], [0, 0, 1, 1], [], []>} : vector<6x64xbf16>, vector<64x32xbf16>, vector<6x32xf32> -> vector<6x32xf32>
    %169 = vector.broadcast %13 : vector<1x32xf32> to vector<6x32xf32>
    %170 = arith.addf %168, %169 : vector<6x32xf32>
    %171 = arith.addf %160, %170 : vector<6x32xf32>
    %cst_70 = arith.constant dense<0.000000e+00> : vector<6xf32>
    %172 = vector.multi_reduction <add>, %171, %cst_70 [1] : vector<6x32xf32> to vector<6xf32>
    %173 = vector.shape_cast %172 : vector<6xf32> to vector<6x1xf32>
    %cst_71 = arith.constant 3.200000e+01 : f32
    %174 = vector.broadcast %cst_71 : f32 to vector<6x1xf32>
    %175 = arith.divf %173, %174 : vector<6x1xf32>
    %176 = vector.broadcast %175 : vector<6x1xf32> to vector<6x32xf32>
    %177 = arith.subf %171, %176 : vector<6x32xf32>
    %178 = arith.mulf %177, %177 : vector<6x32xf32>
    %cst_72 = arith.constant dense<0.000000e+00> : vector<6xf32>
    %179 = vector.multi_reduction <add>, %178, %cst_72 [1] : vector<6x32xf32> to vector<6xf32>
    %180 = vector.shape_cast %179 : vector<6xf32> to vector<6x1xf32>
    %cst_73 = arith.constant 3.200000e+01 : f32
    %181 = vector.broadcast %cst_73 : f32 to vector<6x1xf32>
    %182 = arith.divf %180, %181 : vector<6x1xf32>
    %183 = vector.broadcast %175 : vector<6x1xf32> to vector<6x32xf32>
    %184 = arith.subf %171, %183 : vector<6x32xf32>
    %cst_74 = arith.constant 9.99999974E-6 : f32
    %185 = vector.broadcast %cst_74 : f32 to vector<6x1xf32>
    %186 = arith.addf %182, %185 : vector<6x1xf32>
    %187 = math.rsqrt %186 : vector<6x1xf32>
    %188 = vector.broadcast %187 : vector<6x1xf32> to vector<6x32xf32>
    %189 = arith.mulf %184, %188 : vector<6x32xf32>
    %190 = vector.broadcast %14 : vector<1x32xf32> to vector<6x32xf32>
    %191 = arith.mulf %189, %190 : vector<6x32xf32>
    %192 = vector.broadcast %15 : vector<1x32xf32> to vector<6x32xf32>
    %193 = arith.addf %191, %192 : vector<6x32xf32>
    %194 = vector.extract_strided_slice %193 {offsets = [5, 0], sizes = [1, 32], strides = [1, 1]} : vector<6x32xf32> to vector<1x32xf32>
    %cst_75 = arith.constant dense<0.000000e+00> : vector<1xf32>
    %195 = vector.multi_reduction <add>, %194, %cst_75 [1] : vector<1x32xf32> to vector<1xf32>
    %196 = vector.shape_cast %195 : vector<1xf32> to vector<1x1xf32>
    %cst_76 = arith.constant 3.200000e+01 : f32
    %197 = vector.broadcast %cst_76 : f32 to vector<1x1xf32>
    %198 = arith.divf %196, %197 : vector<1x1xf32>
    %199 = vector.broadcast %198 : vector<1x1xf32> to vector<1x32xf32>
    %200 = arith.subf %194, %199 : vector<1x32xf32>
    %201 = arith.mulf %200, %200 : vector<1x32xf32>
    %cst_77 = arith.constant dense<0.000000e+00> : vector<1xf32>
    %202 = vector.multi_reduction <add>, %201, %cst_77 [1] : vector<1x32xf32> to vector<1xf32>
    %203 = vector.shape_cast %202 : vector<1xf32> to vector<1x1xf32>
    %cst_78 = arith.constant 3.200000e+01 : f32
    %204 = vector.broadcast %cst_78 : f32 to vector<1x1xf32>
    %205 = arith.divf %203, %204 : vector<1x1xf32>
    %206 = vector.broadcast %198 : vector<1x1xf32> to vector<1x32xf32>
    %207 = arith.subf %194, %206 : vector<1x32xf32>
    %cst_79 = arith.constant 9.99999974E-6 : f32
    %208 = vector.broadcast %cst_79 : f32 to vector<1x1xf32>
    %209 = arith.addf %205, %208 : vector<1x1xf32>
    %210 = math.rsqrt %209 : vector<1x1xf32>
    %211 = vector.broadcast %210 : vector<1x1xf32> to vector<1x32xf32>
    %212 = arith.mulf %207, %211 : vector<1x32xf32>
    %c0_80 = arith.constant 0 : index
    %c0_81 = arith.constant 0 : index
    %213 = vector.load %arg14[%c0_80, %c0_81] : memref<1x32xf32, #tpu.memory_space<vmem>>, vector<1x32xf32>
    %214 = arith.mulf %212, %213 : vector<1x32xf32>
    %c0_82 = arith.constant 0 : index
    %c0_83 = arith.constant 0 : index
    %215 = vector.load %arg15[%c0_82, %c0_83] : memref<1x32xf32, #tpu.memory_space<vmem>>, vector<1x32xf32>
    %216 = arith.addf %214, %215 : vector<1x32xf32>
    %217 = arith.truncf %216 : vector<1x32xf32> to vector<1x32xbf16>
    %c0_84 = arith.constant 0 : index
    %c0_85 = arith.constant 0 : index
    %218 = vector.load %arg16[%c0_84, %c0_85] : memref<32x32xbf16, #tpu.memory_space<vmem>>, vector<32x32xbf16>
    %cst_86 = arith.constant dense<0.000000e+00> : vector<1x32xf32>
    %219 = tpu.matmul %217, %218, %cst_86 {dimension_numbers = #tpu.dot_dimension_numbers<[1], [0], [0], [1], [0, 0, 1, 1], [], []>} : vector<1x32xbf16>, vector<32x32xbf16>, vector<1x32xf32> -> vector<1x32xf32>
    %c0_87 = arith.constant 0 : index
    %c0_88 = arith.constant 0 : index
    %c0_89 = arith.constant 0 : index
    %220 = vector.load %arg17[%c0_87, %c0_88, %c0_89] : memref<1x1x32xf32, #tpu.memory_space<vmem>>, vector<1x1x32xf32>
    %221 = vector.shape_cast %220 : vector<1x1x32xf32> to vector<1x32xf32>
    %222 = vector.shape_cast %219 : vector<1x32xf32> to vector<1x1x32xf32>
    tpu.vector_store %arg17[%c0_87, %c0_88, %c0_89], %222 {strides = array<i32>} : memref<1x1x32xf32, #tpu.memory_space<vmem>>, vector<1x1x32xf32>,
    return
  }
  func.func @transform_0(%arg0: i32) -> (i32, i32, i32) {
    %c0_i32 = arith.constant 0 : i32
    %c0_i32_0 = arith.constant 0 : i32
    %c0_i32_1 = arith.constant 0 : i32
    return %arg0, %c0_i32, %c0_i32_0 : i32, i32, i32
  }
  func.func @transform_1(%arg0: i32) -> (i32, i32) {
    %c0_i32 = arith.constant 0 : i32
    %c0_i32_0 = arith.constant 0 : i32
    %c0_i32_1 = arith.constant 0 : i32
    return %c0_i32, %c0_i32_0 : i32, i32
  }
  func.func @transform_2(%arg0: i32) -> (i32, i32) {
    %c0_i32 = arith.constant 0 : i32
    %c0_i32_0 = arith.constant 0 : i32
    %c0_i32_1 = arith.constant 0 : i32
    return %c0_i32, %c0_i32_0 : i32, i32
  }
  func.func @transform_3(%arg0: i32) -> (i32, i32, i32) {
    %c0_i32 = arith.constant 0 : i32
    %c0_i32_0 = arith.constant 0 : i32
    %c0_i32_1 = arith.constant 0 : i32
    %c0_i32_2 = arith.constant 0 : i32
    return %c0_i32, %c0_i32_0, %c0_i32_1 : i32, i32, i32
  }
  func.func @transform_4(%arg0: i32) -> (i32, i32) {
    %c0_i32 = arith.constant 0 : i32
    %c0_i32_0 = arith.constant 0 : i32
    %c0_i32_1 = arith.constant 0 : i32
    return %c0_i32, %c0_i32_0 : i32, i32
  }
  func.func @transform_5(%arg0: i32) -> (i32, i32) {
    %c0_i32 = arith.constant 0 : i32
    %c0_i32_0 = arith.constant 0 : i32
    %c0_i32_1 = arith.constant 0 : i32
    return %c0_i32, %c0_i32_0 : i32, i32
  }
  func.func @transform_6(%arg0: i32) -> (i32, i32) {
    %c0_i32 = arith.constant 0 : i32
    %c0_i32_0 = arith.constant 0 : i32
    %c0_i32_1 = arith.constant 0 : i32
    return %c0_i32, %c0_i32_0 : i32, i32
  }
  func.func @transform_7(%arg0: i32) -> (i32, i32) {
    %c0_i32 = arith.constant 0 : i32
    %c0_i32_0 = arith.constant 0 : i32
    %c0_i32_1 = arith.constant 0 : i32
    return %c0_i32, %c0_i32_0 : i32, i32
  }
  func.func @transform_8(%arg0: i32) -> (i32, i32) {
    %c0_i32 = arith.constant 0 : i32
    %c0_i32_0 = arith.constant 0 : i32
    %c0_i32_1 = arith.constant 0 : i32
    return %c0_i32, %c0_i32_0 : i32, i32
  }
  func.func @transform_9(%arg0: i32) -> (i32, i32) {
    %c0_i32 = arith.constant 0 : i32
    %c0_i32_0 = arith.constant 0 : i32
    %c0_i32_1 = arith.constant 0 : i32
    return %c0_i32, %c0_i32_0 : i32, i32
  }
  func.func @transform_10(%arg0: i32) -> (i32, i32) {
    %c0_i32 = arith.constant 0 : i32
    %c0_i32_0 = arith.constant 0 : i32
    %c0_i32_1 = arith.constant 0 : i32
    return %c0_i32, %c0_i32_0 : i32, i32
  }
  func.func @transform_11(%arg0: i32) -> (i32, i32) {
    %c0_i32 = arith.constant 0 : i32
    %c0_i32_0 = arith.constant 0 : i32
    %c0_i32_1 = arith.constant 0 : i32
    return %c0_i32, %c0_i32_0 : i32, i32
  }
  func.func @transform_12(%arg0: i32) -> (i32, i32) {
    %c0_i32 = arith.constant 0 : i32
    %c0_i32_0 = arith.constant 0 : i32
    %c0_i32_1 = arith.constant 0 : i32
    return %c0_i32, %c0_i32_0 : i32, i32
  }
  func.func @transform_13(%arg0: i32) -> (i32, i32) {
    %c0_i32 = arith.constant 0 : i32
    %c0_i32_0 = arith.constant 0 : i32
    %c0_i32_1 = arith.constant 0 : i32
    return %c0_i32, %c0_i32_0 : i32, i32
  }
  func.func @transform_14(%arg0: i32) -> (i32, i32) {
    %c0_i32 = arith.constant 0 : i32
    %c0_i32_0 = arith.constant 0 : i32
    %c0_i32_1 = arith.constant 0 : i32
    return %c0_i32, %c0_i32_0 : i32, i32
  }
  func.func @transform_15(%arg0: i32) -> (i32, i32) {
    %c0_i32 = arith.constant 0 : i32
    %c0_i32_0 = arith.constant 0 : i32
    %c0_i32_1 = arith.constant 0 : i32
    return %c0_i32, %c0_i32_0 : i32, i32
  }
  func.func @transform_16(%arg0: i32) -> (i32, i32, i32) {
    %c0_i32 = arith.constant 0 : i32
    %c0_i32_0 = arith.constant 0 : i32
    %c0_i32_1 = arith.constant 0 : i32
    return %arg0, %c0_i32, %c0_i32_0 : i32, i32, i32
  }
}

</mosaic_0001>

<llo_original>
// kernel: kw_cascaded_branch_forward.4
$region0: #{kw_cascaded_branch_forward.4}
  #allocation0 [shape = 'u32[]', space=smem, size = 0x4, offset = 0x4, fixed_abs, tag = 'smem constant byte address 0x4 - core index']
  #allocation1 [shape = 'u32[72,128]{1,0:T(1,128)}', space=vmem, size = 0x9000, scoped, tag = 'internal scratch']
  %s0 = inlined_call_operand.vmem [shape: f32[2,4,32], index: 0, kind: input, shape index: {}]
  %s1 = inlined_call_operand.vmem [shape: bf16[32,32], index: 1, kind: input, shape index: {}]
  %s2 = inlined_call_operand.vmem [shape: f32[1,32], index: 2, kind: input, shape index: {}]
  %s3 = inlined_call_operand.vmem [shape: bf16[64,32], index: 3, kind: input, shape index: {}]
  %s4 = inlined_call_operand.vmem [shape: bf16[64,32], index: 4, kind: input, shape index: {}]
  %s5 = inlined_call_operand.hbm [shape: f32[2,4,64], index: 5, kind: output, shape index: {0}]
  %s6 = inlined_call_operand.hbm [shape: f32[2,4,64], index: 6, kind: output, shape index: {1}]
  %s7 = inlined_call_operand.vmem [shape: f32[2,4,32], index: 7, kind: output, shape index: {2}]
  %8 = xla_tuple %s5, %s6, %s7
  %s9 = sld [smem:[#allocation0]]
  $region69: #{kw_cascaded_branch_forward.4} parent=0
    _
  %s11 = ssub.s32 1, %s9
  %s12 = scalar_select 0, %s11, %s9
  $region1: #{kw_cascaded_branch_forward.4} parent=0
    #allocation2 [shape = 'u8[4096]{0}', space=vmem, size = 0x1000, scoped, tag = 'output window, operand 0']
    #allocation3 [shape = 's32[2]{0}', space=sflag, size = 0x8, scoped, tag = 'scoped memory for kw_cascaded_branch_forward.4']
    #allocation4 [shape = 'u8[4096]{0}', space=vmem, size = 0x1000, scoped, tag = 'output window, operand 1']
    #allocation5 [shape = 's32[2]{0}', space=sflag, size = 0x8, scoped, tag = 'scoped memory for kw_cascaded_branch_forward.4']
    %13 = vsyncpa [#allocation3], 0
    %s14 = scalar_lea.sflag [#allocation3], 1
    %15 = vsyncpa %s14, 0
    %16 = vsyncpa [#allocation5], 0
    %s17 = scalar_lea.sflag [#allocation5], 1
    %18 = vsyncpa %s17, 0
    loop: start=0, step=1, limit=4
    $region2: #{kw_cascaded_branch_forward.4} parent=1 // loop_pre_header
      _
    $region3: #{kw_cascaded_branch_forward.4} parent=1 // loop_header
      %s20 = sphi 0, %s24
      %p21 = scmp.ge.s32.totalorder %s20, 4
      %s30 = sphi 0, %s32
      %s33 = sphi 0, %s30
      %s34 = sphi 0, %s33
      %s50 = sphi 0, %s34
      %s54 = sphi 0, %s54
      %s56 = sphi 0, %s54
      %s57 = sphi 0, %s56
      %s71 = sphi 0, %s57
      %s75 = sphi 0, %s75
      %s77 = sphi 0, %s75
      %s78 = sphi 0, %s77
      %s92 = sphi 0, %s78
      %s96 = sphi 0, %s96
      %s98 = sphi 0, %s96
      %s99 = sphi 0, %s98
      %s113 = sphi 0, %s99
      %s117 = sphi 0, %s117
      %s119 = sphi 0, %s117
      %s120 = sphi 0, %s119
      %s134 = sphi 0, %s120
      %s140 = sphi 0, %s142
      %s143 = sphi 0, %s140
      %s144 = sphi 0, %s143
      %s160 = sphi 0, %s144
      %s166 = sphi 0, %s168
      %s169 = sphi 0, %s166
      %s170 = sphi 0, %s169
      %s186 = sphi 0, %s170
      %s192 = sphi 0, %s194
      %s195 = sphi 0, %s192
      %s196 = sphi 0, %s195
      %s212 = sphi 0, %s196
    $region4: #{kw_cascaded_branch_forward.4} parent=1 // loop_header_branch
      %23 = sbr.rel (%p21) target = $region8
    $region5: #{kw_cascaded_branch_forward.4} parent=1 // loop_body
      %s25 = ssub.s32 %s20, 1
      %s26 = ssub.s32 %s20, 2
      %s27 = sadd.s32 %s20, 1
      %s28 = ssub.s32 %s20, %s27
      %p29 = scmp.eq.s32.totalorder %s28, 0
      %s31 = sadd.s32 %s30, 1
      %s32 = scalar_select %p29, %s30, %s31
      %p35 = pneg %p29
      %p36 = scmp.eq.s32.totalorder %s20, 1
      %p37 = por %p35, %p36
      %p38 = scmp.ne.s32.totalorder %s30, %s33
      %p39 = scmp.eq.s32.totalorder %s20, 0
      %p40 = por %p38, %p39
      %p41 = scmp.ne.s32.totalorder %s30, %s33
      %p42 = scmp.eq.s32.totalorder %s25, 1
      %p43 = por %p41, %p42
      %p44 = scmp.ne.s32.totalorder %s33, %s34
      %p45 = scmp.eq.s32.totalorder %s25, 0
      %p46 = por %p44, %p45
      %p47 = scmp.ne.s32.totalorder %s33, %s34
      %p48 = scmp.eq.s32.totalorder %s26, 1
      %p49 = por %p47, %p48
      %p51 = scmp.ne.s32.totalorder %s34, %s50
      %p52 = scmp.eq.s32.totalorder %s26, 0
      %p53 = por %p51, %p52
      %s55 = sadd.s32 %s54, 1
      %p58 = scmp.eq.s32.totalorder %s20, 1
      %p59 = scmp.ne.s32.totalorder %s54, %s56
      %p60 = scmp.eq.s32.totalorder %s20, 0
      %p61 = por %p59, %p60
      %p62 = scmp.ne.s32.totalorder %s54, %s56
      %p63 = scmp.eq.s32.totalorder %s25, 1
      %p64 = por %p62, %p63
      %p65 = scmp.ne.s32.totalorder %s56, %s57
      %p66 = scmp.eq.s32.totalorder %s25, 0
      %p67 = por %p65, %p66
      %p68 = scmp.ne.s32.totalorder %s56, %s57
      %p69 = scmp.eq.s32.totalorder %s26, 1
      %p70 = por %p68, %p69
      %p72 = scmp.ne.s32.totalorder %s57, %s71
      %p73 = scmp.eq.s32.totalorder %s26, 0
      %p74 = por %p72, %p73
      %s76 = sadd.s32 %s75, 1
      %p79 = scmp.eq.s32.totalorder %s20, 1
      %p80 = scmp.ne.s32.totalorder %s75, %s77
      %p81 = scmp.eq.s32.totalorder %s20, 0
      %p82 = por %p80, %p81
      %p83 = scmp.ne.s32.totalorder %s75, %s77
      %p84 = scmp.eq.s32.totalorder %s25, 1
      %p85 = por %p83, %p84
      %p86 = scmp.ne.s32.totalorder %s77, %s78
      %p87 = scmp.eq.s32.totalorder %s25, 0
      %p88 = por %p86, %p87
      %p89 = scmp.ne.s32.totalorder %s77, %s78
      %p90 = scmp.eq.s32.totalorder %s26, 1
      %p91 = por %p89, %p90
      %p93 = scmp.ne.s32.totalorder %s78, %s92
      %p94 = scmp.eq.s32.totalorder %s26, 0
      %p95 = por %p93, %p94
      %s97 = sadd.s32 %s96, 1
      %p100 = scmp.eq.s32.totalorder %s20, 1
      %p101 = scmp.ne.s32.totalorder %s96, %s98
      %p102 = scmp.eq.s32.totalorder %s20, 0
      %p103 = por %p101, %p102
      %p104 = scmp.ne.s32.totalorder %s96, %s98
      %p105 = scmp.eq.s32.totalorder %s25, 1
      %p106 = por %p104, %p105
      %p107 = scmp.ne.s32.totalorder %s98, %s99
      %p108 = scmp.eq.s32.totalorder %s25, 0
      %p109 = por %p107, %p108
      %p110 = scmp.ne.s32.totalorder %s98, %s99
      %p111 = scmp.eq.s32.totalorder %s26, 1
      %p112 = por %p110, %p111
      %p114 = scmp.ne.s32.totalorder %s99, %s113
      %p115 = scmp.eq.s32.totalorder %s26, 0
      %p116 = por %p114, %p115
      %s118 = sadd.s32 %s117, 1
      %p121 = scmp.eq.s32.totalorder %s20, 1
      %p122 = scmp.ne.s32.totalorder %s117, %s119
      %p123 = scmp.eq.s32.totalorder %s20, 0
      %p124 = por %p122, %p123
      %p125 = scmp.ne.s32.totalorder %s117, %s119
      %p126 = scmp.eq.s32.totalorder %s25, 1
      %p127 = por %p125, %p126
      %p128 = scmp.ne.s32.totalorder %s119, %s120
      %p129 = scmp.eq.s32.totalorder %s25, 0
      %p130 = por %p128, %p129
      %p131 = scmp.ne.s32.totalorder %s119, %s120
      %p132 = scmp.eq.s32.totalorder %s26, 1
      %p133 = por %p131, %p132
      %p135 = scmp.ne.s32.totalorder %s120, %s134
      %p136 = scmp.eq.s32.totalorder %s26, 0
      %p137 = por %p135, %p136
      %s138 = ssub.s32 %s20, %s27
      %p139 = scmp.eq.s32.totalorder %s138, 0
      %s141 = sadd.s32 %s140, 1
      %s142 = scalar_select %p139, %s140, %s141
      %p145 = pneg %p139
      %p146 = scmp.eq.s32.totalorder %s20, 1
      %p147 = por %p145, %p146
      %p148 = scmp.ne.s32.totalorder %s140, %s143
      %p149 = scmp.eq.s32.totalorder %s20, 0
      %p150 = por %p148, %p149
      %p151 = scmp.ne.s32.totalorder %s140, %s143
      %p152 = scmp.eq.s32.totalorder %s25, 1
      %p153 = por %p151, %p152
      %p154 = scmp.ne.s32.totalorder %s143, %s144
      %p155 = scmp.eq.s32.totalorder %s25, 0
      %p156 = por %p154, %p155
      %p157 = scmp.ne.s32.totalorder %s143, %s144
      %p158 = scmp.eq.s32.totalorder %s26, 1
      %p159 = por %p157, %p158
      %p161 = scmp.ne.s32.totalorder %s144, %s160
      %p162 = scmp.eq.s32.totalorder %s26, 0
      %p163 = por %p161, %p162
      %s164 = ssub.s32 %s20, %s27
      %p165 = scmp.eq.s32.totalorder %s164, 0
      %s167 = sadd.s32 %s166, 1
      %s168 = scalar_select %p165, %s166, %s167
      %p171 = pneg %p165
      %p172 = scmp.eq.s32.totalorder %s20, 1
      %p173 = por %p171, %p172
      %p174 = scmp.ne.s32.totalorder %s166, %s169
      %p175 = scmp.eq.s32.totalorder %s20, 0
      %p176 = por %p174, %p175
      %p177 = scmp.ne.s32.totalorder %s166, %s169
      %p178 = scmp.eq.s32.totalorder %s25, 1
      %p179 = por %p177, %p178
      %p180 = scmp.ne.s32.totalorder %s169, %s170
      %p181 = scmp.eq.s32.totalorder %s25, 0
      %p182 = por %p180, %p181
      %p183 = scmp.ne.s32.totalorder %s169, %s170
      %p184 = scmp.eq.s32.totalorder %s26, 1
      %p185 = por %p183, %p184
      %p187 = scmp.ne.s32.totalorder %s170, %s186
      %p188 = scmp.eq.s32.totalorder %s26, 0
      %p189 = por %p187, %p188
      %s190 = ssub.s32 %s20, %s27
      %p191 = scmp.eq.s32.totalorder %s190, 0
      %s193 = sadd.s32 %s192, 1
      %s194 = scalar_select %p191, %s192, %s193
      %p197 = pneg %p191
      %p198 = scmp.eq.s32.totalorder %s20, 1
      %p199 = por %p197, %p198
      %p200 = scmp.ne.s32.totalorder %s192, %s195
      %p201 = scmp.eq.s32.totalorder %s20, 0
      %p202 = por %p200, %p201
      %p203 = scmp.ne.s32.totalorder %s192, %s195
      %p204 = scmp.eq.s32.totalorder %s25, 1
      %p205 = por %p203, %p204
      %p206 = scmp.ne.s32.totalorder %s195, %s196
      %p207 = scmp.eq.s32.totalorder %s25, 0
      %p208 = por %p206, %p207
      %p209 = scmp.ne.s32.totalorder %s195, %s196
      %p210 = scmp.eq.s32.totalorder %s26, 1
      %p211 = por %p209, %p210
      %p213 = scmp.ne.s32.totalorder %s196, %s212
      %p214 = scmp.eq.s32.totalorder %s26, 0
      %p215 = por %p213, %p214
      %p216 = scmp.le.s32.totalorder 1, %s20
      %p217 = scmp.lt.s32.totalorder %s20, 3
      %p218 = pnand %p216, %p217
      %p219 = pneg %p218
      // Predicated region
      $region9: #{kw_cascaded_branch_forward.4} parent=5 // pred_check
        _
      $region10: #{kw_cascaded_branch_forward.4} parent=5 // pred_check_branch
        %221 = sbr.rel (%p218) target = $region12
      $region11: #{kw_cascaded_branch_forward.4} parent=5 // pred_region
        %s222 = ssub.s32 %s20, 1
        // Predicated region
        $region13: #{kw_cascaded_branch_forward.4} parent=11 // pred_check
          %p223 = pneg %p67
        $region14: #{kw_cascaded_branch_forward.4} parent=11 // pred_check_branch
          %225 = sbr.rel (%p223) target = $region16
        $region15: #{kw_cascaded_branch_forward.4} parent=11 // pred_region
          _
        $region16: #{kw_cascaded_branch_forward.4} parent=11 // pred_fallthru
          _
        // Predicated region
        $region17: #{kw_cascaded_branch_forward.4} parent=11 // pred_check
          %p226 = pneg %p88
        $region18: #{kw_cascaded_branch_forward.4} parent=11 // pred_check_branch
          %228 = sbr.rel (%p226) target = $region20
        $region19: #{kw_cascaded_branch_forward.4} parent=11 // pred_region
          _
        $region20: #{kw_cascaded_branch_forward.4} parent=11 // pred_fallthru
          _
        // Predicated region
        $region21: #{kw_cascaded_branch_forward.4} parent=11 // pred_check
          %p229 = pneg %p109
        $region22: #{kw_cascaded_branch_forward.4} parent=11 // pred_check_branch
          %231 = sbr.rel (%p229) target = $region24
        $region23: #{kw_cascaded_branch_forward.4} parent=11 // pred_region
          _
        $region24: #{kw_cascaded_branch_forward.4} parent=11 // pred_fallthru
          _
        // Predicated region
        $region25: #{kw_cascaded_branch_forward.4} parent=11 // pred_check
          %p232 = pneg %p130
        $region26: #{kw_cascaded_branch_forward.4} parent=11 // pred_check_branch
          %234 = sbr.rel (%p232) target = $region28
        $region27: #{kw_cascaded_branch_forward.4} parent=11 // pred_region
          _
        $region28: #{kw_cascaded_branch_forward.4} parent=11 // pred_fallthru
          _
      $region12: #{kw_cascaded_branch_forward.4} parent=5 // pred_fallthru
        _
      %p235 = scmp.lt.s32.totalorder %s20, 2
      // Predicated region
      $region29: #{kw_cascaded_branch_forward.4} parent=5 // pred_check
        %p236 = pneg %p235
      $region30: #{kw_cascaded_branch_forward.4} parent=5 // pred_check_branch
        %238 = sbr.rel (%p236) target = $region32
      $region31: #{kw_cascaded_branch_forward.4} parent=5 // pred_region
        // Predicated region
        $region33: #{kw_cascaded_branch_forward.4} parent=31 // pred_check
          %p239 = pneg %p40
        $region34: #{kw_cascaded_branch_forward.4} parent=31 // pred_check_branch
          %241 = sbr.rel (%p239) target = $region36
        $region35: #{kw_cascaded_branch_forward.4} parent=31 // pred_region
          %p242 = scmp.lt.s32.totalorder %s20, 1
          %s243 = scalar_select %p242, %s20, 1
          %s244 = smul.addr %s243, 4
          %s245 = scalar_lea.vmem %s0, %s244
        $region36: #{kw_cascaded_branch_forward.4} parent=31 // pred_fallthru
          _
      $region32: #{kw_cascaded_branch_forward.4} parent=5 // pred_fallthru
        _
      %p246 = scmp.le.s32.totalorder 1, %s20
      %p247 = scmp.lt.s32.totalorder %s20, 3
      %p248 = pnand %p246, %p247
      %p249 = pneg %p248
      // Predicated region
      $region37: #{kw_cascaded_branch_forward.4} parent=5 // pred_check
        _
      $region38: #{kw_cascaded_branch_forward.4} parent=5 // pred_check_branch
        %251 = sbr.rel (%p248) target = $region40
      $region39: #{kw_cascaded_branch_forward.4} parent=5 // pred_region
        %s252 = ssub.s32 %s20, 1
        %p253 = scmp.lt.s32.totalorder %s25, 1
        %s254 = scalar_select %p253, %s25, 1
        %s255 = smul.addr %s254, 4
        %s256 = scalar_lea.vmem %s0, %s255
        %p257 = pneg %p46
        %p258 = pneg %p43
        %p259 = pneg %p67
        %p260 = pneg %p64
        %p261 = pneg %p88
        %p262 = pneg %p85
        %p263 = pneg %p109
        %p264 = pneg %p106
        %p265 = pneg %p130
        %p266 = pneg %p127
        %p267 = pneg %p156
        %p268 = pneg %p153
        %s269 = sand.u32 %s143, 1
        %s270 = scalar_lea.sflag [#allocation3], %s269
        %s271 = sand.u32 %s143, 1
        %s272 = smul.addr %s271, 4
        %s273 = scalar_lea.vmem [#allocation2], %s272
        %p274 = pneg %p182
        %p275 = pneg %p179
        %s276 = sand.u32 %s169, 1
        %s277 = scalar_lea.sflag [#allocation5], %s276
        %s278 = sand.u32 %s169, 1
        %s279 = smul.addr %s278, 4
        %s280 = scalar_lea.vmem [#allocation4], %s279
        %p281 = pneg %p208
        %p282 = pneg %p205
        %p283 = scmp.lt.s32.totalorder %s25, 1
        %s284 = scalar_select %p283, %s25, 1
        %s285 = smul.addr %s284, 4
        %s286 = scalar_lea.vmem %s7, %s285
        %p287 = scmp.lt.s32.totalorder %s25, 1
        %s288 = scalar_select %p287, %s25, 1
        %s289 = smul.addr %s288, 4
        %s290 = scalar_lea.vmem %s0, %s289
        %p291 = scmp.lt.s32.totalorder %s25, 1
        %s292 = scalar_select %p291, %s25, 1
        %s293 = smul.addr %s292, 4
        %s294 = scalar_lea.vmem %s7, %s293
        %v296 = vld [vmem:[%s290] sm:$0xf]
        %v297 = vpack.c.bf16 %v296, %v296
        %v298 = vld [vmem:[%s1] sm:$0xf]
        %v299 = vld [vmem:[%s1 + $0x4] sm:$0xf]
        %v300 = vld [vmem:[%s1 + $0x8] sm:$0xf]
        %v301 = vld [vmem:[%s1 + $0xc] sm:$0xf]
        %v302 = vld [vmem:[%s2] sm:$0x1]
        %v304 = vperm.slane %v302, 0
        %v310 = vunpack.c.l.b16 %v298
        %v311 = vunpack.c.l.b16 %v299
        %v312 = vunpack.c.l.b16 %v300
        %v313 = vunpack.c.l.b16 %v301
        %v314 = vpack.c.b16 %v311, %v310
        %v315 = vpack.c.b16 %v313, %v312
        %vm318 = vcmask 261120
        %v320 = vsel %vm318, %v297, 0
        %322 = vmatpush.bf16.msra.mxu0 0
        %323 = vmatpush.bf16.msra.mxu0 0
        %324 = vmatpush.bf16.msra.mxu0 0
        %325 = vmatpush.bf16.msra.mxu0 0
        %326 = vmatpush.bf16.msra.mxu0 0
        %327 = vmatpush.bf16.msra.mxu0 0
        %328 = vmatpush.bf16.msra.mxu0 %v315
        %329 = vmatpush.bf16.msra.mxu0 %v314
        %330 = vmatmul.bf16.gmra.mxu0 %v320
        %v331 = vpop.f32.mrf.mxu0
        %v332 = vadd.f32 %v304, %v331
        %v333 = vpop.f32.mrf.mxu0
        %334 = vdwg.mxu0
        %v335 = vmul.f32 %v332, %v332
        %vm336 = vcmask 257024
        %v337 = vsel %vm336, %v335, 0.0
        %338 = vadd.xlane.f32.xlu0 %v337
        %v339 = vpop.xlane.xlu0 %338
        %v340 = vmax.f32 %v339, 1e-16
        %v341 = vrsqrt.pop %v340
        %v342 = vmul.f32 %v341, %v340
        %v343 = vmul.f32 %v342, %v341
        %v344 = vmul.f32 0.5, %v343
        %v345 = vsub.f32 1.5, %v344
        %v346 = vmul.f32 %v341, %v345
        %vm347 = vweird.f32 %v340
        %vm348 = vweird.f32 %v341
        %vm349 = vmor %vm347, %vm348
        %v350 = vsel %vm349, %v341, %v346
        %v351 = vmul.f32 %v332, %v350
        %v352 = vpack.c.bf16 %v351, %v351
        %v353 = vld [vmem:[%s4] sm:$0xf]
        %v354 = vld [vmem:[%s4 + $0x4] sm:$0xf]
        %v355 = vld [vmem:[%s4 + $0x8] sm:$0xf]
        %v356 = vld [vmem:[%s4 + $0xc] sm:$0xf]
        %v357 = vld [vmem:[%s4 + $0x10] sm:$0xf]
        %v358 = vld [vmem:[%s4 + $0x14] sm:$0xf]
        %v359 = vld [vmem:[%s4 + $0x18] sm:$0xf]
        %v360 = vld [vmem:[%s4 + $0x1c] sm:$0xf]
        %v369 = vunpack.c.l.b16 %v353
        %v370 = vunpack.c.l.b16 %v354
        %v371 = vunpack.c.l.b16 %v355
        %v372 = vunpack.c.l.b16 %v356
        %v373 = vunpack.c.l.b16 %v357
        %v374 = vunpack.c.l.b16 %v358
        %v375 = vunpack.c.l.b16 %v359
        %v376 = vunpack.c.l.b16 %v360
        %v377 = vpack.c.b16 %v370, %v369
        %v378 = vpack.c.b16 %v372, %v371
        %v379 = vpack.c.b16 %v374, %v373
        %v380 = vpack.c.b16 %v376, %v375
        %v382 = vsel %vm318, %v352, 0
        %v385 = vsel %vm318, %v377, 0
        %v388 = vsel %vm318, %v378, 0
        %v391 = vsel %vm318, %v379, 0
        %v394 = vsel %vm318, %v380, 0
        %396 = vmatpush.bf16.xpose.msra.mxu0 0
        %397 = vmatpush.bf16.xpose.msra.mxu0 0
        %398 = vmatpush.bf16.xpose.msra.mxu0 0
        %399 = vmatpush.bf16.xpose.msra.mxu0 0
        %400 = vmatpush.bf16.xpose.msra.mxu0 %v394
        %401 = vmatpush.bf16.xpose.msra.mxu0 %v391
        %402 = vmatpush.bf16.xpose.msra.mxu0 %v388
        %403 = vmatpush.bf16.xpose.msra.mxu0 %v385
        %404 = vmatmul.bf16.gmra.mxu0 %v382
        %v405 = vpop.f32.mrf.mxu0
        %v406 = vadd.f32 0.0, %v405
        %v407 = vpop.f32.mrf.mxu0
        %408 = vdwg.mxu0
        %v409 = vmul.f32 %v406, 10.0
        %vm410 = vcmask 519168
        %v411 = vsel %vm410, %v409, -inf
        %412 = vmax.xlane.f32.xlu0 %v411
        %v413 = vpop.xlane.xlu0 %412
        %v414 = vsub.f32 %v409, %v413
        %v415 = vmul.f32 %v414, 1.442695
        %v416 = vpow.pop %v415
        %v417 = vsel %vm410, %v416, 0.0
        %418 = vadd.xlane.f32.xlu0 %v417
        %v419 = vpop.xlane.xlu0 %418
        %v420 = vrcp.pop %v419
        %v421 = vmul.f32 %v416, %v420
        %422 = vst.msk [vmem:[%s273] sm:$0xf] %vm410, %v406
        %423 = vst.msk [vmem:[%s280] sm:$0xf] %vm410, %v421
        %v424 = vpack.c.bf16 %v421, %v421
        %v425 = vld [vmem:[%s3] sm:$0xf]
        %v426 = vld [vmem:[%s3 + $0x4] sm:$0xf]
        %v427 = vld [vmem:[%s3 + $0x8] sm:$0xf]
        %v428 = vld [vmem:[%s3 + $0xc] sm:$0xf]
        %v429 = vld [vmem:[%s3 + $0x10] sm:$0xf]
        %v430 = vld [vmem:[%s3 + $0x14] sm:$0xf]
        %v431 = vld [vmem:[%s3 + $0x18] sm:$0xf]
        %v432 = vld [vmem:[%s3 + $0x1c] sm:$0xf]
        %v441 = vunpack.c.l.b16 %v425
        %v442 = vunpack.c.l.b16 %v426
        %v443 = vunpack.c.l.b16 %v427
        %v444 = vunpack.c.l.b16 %v428
        %v445 = vunpack.c.l.b16 %v429
        %v446 = vunpack.c.l.b16 %v430
        %v447 = vunpack.c.l.b16 %v431
        %v448 = vunpack.c.l.b16 %v432
        %v449 = vpack.c.b16 %v442, %v441
        %v450 = vpack.c.b16 %v444, %v443
        %v451 = vpack.c.b16 %v446, %v445
        %v452 = vpack.c.b16 %v448, %v447
        %vm457 = vcmask 523264
        %v459 = vsel %vm457, %v424, 0
        %461 = vmatpush.bf16.msra.mxu0 0
        %462 = vmatpush.bf16.msra.mxu0 0
        %463 = vmatpush.bf16.msra.mxu0 0
        %464 = vmatpush.bf16.msra.mxu0 0
        %465 = vmatpush.bf16.msra.mxu0 %v452
        %466 = vmatpush.bf16.msra.mxu0 %v451
        %467 = vmatpush.bf16.msra.mxu0 %v450
        %468 = vmatpush.bf16.msra.mxu0 %v449
        %469 = vmatmul.bf16.gmra.mxu0 %v459
        %v470 = vpop.f32.mrf.mxu0
        %v471 = vadd.f32 0.0, %v470
        %v472 = vpop.f32.mrf.mxu0
        %473 = vdwg.mxu0
        %474 = vst.msk [vmem:[%s294] sm:$0xf] %vm336, %v471
        %s475 = sand.u32 %s143, 1
        %s476 = scalar_lea.sflag [#allocation3], %s475
        %s477 = sand.u32 %s143, 1
        %s478 = smul.addr %s477, 4
        %s479 = scalar_lea.vmem [#allocation2], %s478
        %s480 = sand.u32 %s169, 1
        %s481 = scalar_lea.sflag [#allocation5], %s480
        %s482 = sand.u32 %s169, 1
        %s483 = smul.addr %s482, 4
        %s484 = scalar_lea.vmem [#allocation4], %s483
        %p485 = scmp.lt.s32.totalorder %s25, 1
        %s486 = scalar_select %p485, %s25, 1
        %s487 = smul.addr %s486, 4
        %s488 = scalar_lea.vmem %s7, %s487
        // Predicated region
        $region41: #{kw_cascaded_branch_forward.4} parent=39 // pred_check
          %p489 = pneg %p153
        $region42: #{kw_cascaded_branch_forward.4} parent=39 // pred_check_branch
          %491 = sbr.rel (%p489) target = $region44
        $region43: #{kw_cascaded_branch_forward.4} parent=39 // pred_region
          %493 = vsyncadd %s476, 0
          %s494 = smul.addr %s25, 4
          %s495 = scalar_lea.hbm %s5, %s494
          %s497 = sshll.u32 %s479, 4
          %s498 = int_to_ptr.vmem [resolvable:$true] %s497
          %s499 = sshll.u32 %s495, 4
          %s500 = int_to_ptr.hbm [resolvable:$true] %s499
          %502 = dma.vmem_to_hbm [thread:$0]  %s498, 64, %s500, %s476
        $region44: #{kw_cascaded_branch_forward.4} parent=39 // pred_fallthru
          _
        // Predicated region
        $region45: #{kw_cascaded_branch_forward.4} parent=39 // pred_check
          %p503 = pneg %p179
        $region46: #{kw_cascaded_branch_forward.4} parent=39 // pred_check_branch
          %505 = sbr.rel (%p503) target = $region48
        $region47: #{kw_cascaded_branch_forward.4} parent=39 // pred_region
          %507 = vsyncadd %s481, 0
          %s508 = smul.addr %s25, 4
          %s509 = scalar_lea.hbm %s6, %s508
          %s511 = sshll.u32 %s484, 4
          %s512 = int_to_ptr.vmem [resolvable:$true] %s511
          %s513 = sshll.u32 %s509, 4
          %s514 = int_to_ptr.hbm [resolvable:$true] %s513
          %516 = dma.vmem_to_hbm [thread:$0]  %s512, 64, %s514, %s481
        $region48: #{kw_cascaded_branch_forward.4} parent=39 // pred_fallthru
          _
        // Predicated region
        $region49: #{kw_cascaded_branch_forward.4} parent=39 // pred_check
          %p517 = pneg %p205
        $region50: #{kw_cascaded_branch_forward.4} parent=39 // pred_check_branch
          %519 = sbr.rel (%p517) target = $region52
        $region51: #{kw_cascaded_branch_forward.4} parent=39 // pred_region
          _
        $region52: #{kw_cascaded_branch_forward.4} parent=39 // pred_fallthru
          _
      $region40: #{kw_cascaded_branch_forward.4} parent=5 // pred_fallthru
        _
      %p520 = scmp.le.s32.totalorder 2, %s20
      // Predicated region
      $region53: #{kw_cascaded_branch_forward.4} parent=5 // pred_check
        %p521 = pneg %p520
      $region54: #{kw_cascaded_branch_forward.4} parent=5 // pred_check_branch
        %523 = sbr.rel (%p521) target = $region56
      $region55: #{kw_cascaded_branch_forward.4} parent=5 // pred_region
        %s524 = ssub.s32 %s20, 2
        // Predicated region
        $region57: #{kw_cascaded_branch_forward.4} parent=55 // pred_check
          %p525 = pneg %p159
        $region58: #{kw_cascaded_branch_forward.4} parent=55 // pred_check_branch
          %527 = sbr.rel (%p525) target = $region60
        $region59: #{kw_cascaded_branch_forward.4} parent=55 // pred_region
          %s528 = sand.u32 %s144, 1
          %s529 = scalar_lea.sflag [#allocation3], %s528
          %s530 = sand.u32 %s144, 1
          %s531 = smul.addr %s530, 4
          %s532 = scalar_lea.vmem [#allocation2], %s531
          %534 = dma.done %s529, 64
        $region60: #{kw_cascaded_branch_forward.4} parent=55 // pred_fallthru
          _
        // Predicated region
        $region61: #{kw_cascaded_branch_forward.4} parent=55 // pred_check
          %p535 = pneg %p185
        $region62: #{kw_cascaded_branch_forward.4} parent=55 // pred_check_branch
          %537 = sbr.rel (%p535) target = $region64
        $region63: #{kw_cascaded_branch_forward.4} parent=55 // pred_region
          %s538 = sand.u32 %s170, 1
          %s539 = scalar_lea.sflag [#allocation5], %s538
          %s540 = sand.u32 %s170, 1
          %s541 = smul.addr %s540, 4
          %s542 = scalar_lea.vmem [#allocation4], %s541
          %544 = dma.done %s539, 64
        $region64: #{kw_cascaded_branch_forward.4} parent=55 // pred_fallthru
          _
        // Predicated region
        $region65: #{kw_cascaded_branch_forward.4} parent=55 // pred_check
          %p545 = pneg %p211
        $region66: #{kw_cascaded_branch_forward.4} parent=55 // pred_check_branch
          %547 = sbr.rel (%p545) target = $region68
        $region67: #{kw_cascaded_branch_forward.4} parent=55 // pred_region
          %p548 = scmp.lt.s32.totalorder %s26, 1
          %s549 = scalar_select %p548, %s26, 1
          %s550 = smul.addr %s549, 4
          %s551 = scalar_lea.vmem %s7, %s550
        $region68: #{kw_cascaded_branch_forward.4} parent=55 // pred_fallthru
          _
      $region56: #{kw_cascaded_branch_forward.4} parent=5 // pred_fallthru
        _
    $region6: #{kw_cascaded_branch_forward.4} parent=1 // loop_footer
      %s24 = sadd.s32 1, %s20
    $region7: #{kw_cascaded_branch_forward.4} parent=1 // loop_footer_branch
      %19 = sbr.rel target = $region3
    $region8: #{kw_cascaded_branch_forward.4} parent=1 // loop_exit
      _
    %552 = vsyncpa [#allocation3], 1
    %s553 = scalar_lea.sflag [#allocation3], 1
    %554 = vsyncpa %s553, 1
    %555 = vsyncpa [#allocation5], 1
    %s556 = scalar_lea.sflag [#allocation5], 1
    %557 = vsyncpa %s556, 1

// kernel: kw_cascaded_branch_forward.3
$region0: #{kw_cascaded_branch_forward.3}
  #allocation0 [shape = 'u32[]', space=smem, size = 0x4, offset = 0x4, fixed_abs, tag = 'smem constant byte address 0x4 - core index']
  #allocation1 [shape = 'u32[72,128]{1,0:T(1,128)}', space=vmem, size = 0x9000, scoped, tag = 'internal scratch']
  #allocation2 [shape = 's32[1]{0}', space=sflag, size = 0x4, scoped, tag = 'scoped memory for kw_cascaded_branch_forward.3']
  #allocation3 [shape = 'u8[512]{0}', space=smem, size = 0x200, scoped, tag = 'prefetched SMEM operand 0']
  %s0 = inlined_call_operand.vmem [shape: s32[2], index: 0, kind: input, shape index: {}]
  %s1 = inlined_call_operand.vmem [shape: f32[2,12,32], index: 1, kind: input, shape index: {}]
  %s2 = inlined_call_operand.vmem [shape: bf16[32,96], index: 2, kind: input, shape index: {}]
  %s3 = inlined_call_operand.vmem [shape: f32[1,96], index: 3, kind: input, shape index: {}]
  %s4 = inlined_call_operand.vmem [shape: bf16[4,8,32], index: 4, kind: input, shape index: {}]
  %s5 = inlined_call_operand.vmem [shape: f32[1,32], index: 5, kind: input, shape index: {}]
  %s6 = inlined_call_operand.vmem [shape: f32[1,32], index: 6, kind: input, shape index: {}]
  %s7 = inlined_call_operand.vmem [shape: f32[1,32], index: 7, kind: input, shape index: {}]
  %s8 = inlined_call_operand.vmem [shape: bf16[32,64], index: 8, kind: input, shape index: {}]
  %s9 = inlined_call_operand.vmem [shape: f32[1,64], index: 9, kind: input, shape index: {}]
  %s10 = inlined_call_operand.vmem [shape: bf16[64,32], index: 10, kind: input, shape index: {}]
  %s11 = inlined_call_operand.vmem [shape: f32[1,32], index: 11, kind: input, shape index: {}]
  %s12 = inlined_call_operand.vmem [shape: f32[1,32], index: 12, kind: input, shape index: {}]
  %s13 = inlined_call_operand.vmem [shape: f32[1,32], index: 13, kind: input, shape index: {}]
  %s14 = inlined_call_operand.vmem [shape: f32[2,12,32], index: 14, kind: output, shape index: {}]
  %s15 = sld [smem:[#allocation0]]
  $region85: #{kw_cascaded_branch_forward.3} parent=0
    _
  %s17 = ssub.s32 1, %s15
  %s18 = scalar_select 0, %s17, %s15
  %s20 = sshll.u32 %s0, 4
  %s21 = int_to_ptr.vmem [resolvable:$true] %s20
  %23 = dma.vmem_to_smem %s21, 16, [#allocation3], [#allocation2]
  %25 = dma.done [#allocation2], 16
  %26 = sfence
  loop: start=0, step=1, limit=4
  $region2: #{kw_cascaded_branch_forward.3} parent=0 // loop_pre_header
    _
  $region3: #{kw_cascaded_branch_forward.3} parent=0 // loop_header
    %s28 = sphi 0, %s32
    %p29 = scmp.ge.s32.totalorder %s28, 4
    %s38 = sphi 0, %s40
    %s41 = sphi 0, %s38
    %s42 = sphi 0, %s41
    %s58 = sphi 0, %s42
    %s62 = sphi 0, %s62
    %s64 = sphi 0, %s62
    %s65 = sphi 0, %s64
    %s79 = sphi 0, %s65
    %s83 = sphi 0, %s83
    %s85 = sphi 0, %s83
    %s86 = sphi 0, %s85
    %s100 = sphi 0, %s86
    %s104 = sphi 0, %s104
    %s106 = sphi 0, %s104
    %s107 = sphi 0, %s106
    %s121 = sphi 0, %s107
    %s125 = sphi 0, %s125
    %s127 = sphi 0, %s125
    %s128 = sphi 0, %s127
    %s142 = sphi 0, %s128
    %s146 = sphi 0, %s146
    %s148 = sphi 0, %s146
    %s149 = sphi 0, %s148
    %s163 = sphi 0, %s149
    %s167 = sphi 0, %s167
    %s169 = sphi 0, %s167
    %s170 = sphi 0, %s169
    %s184 = sphi 0, %s170
    %s188 = sphi 0, %s188
    %s190 = sphi 0, %s188
    %s191 = sphi 0, %s190
    %s205 = sphi 0, %s191
    %s209 = sphi 0, %s209
    %s211 = sphi 0, %s209
    %s212 = sphi 0, %s211
    %s226 = sphi 0, %s212
    %s230 = sphi 0, %s230
    %s232 = sphi 0, %s230
    %s233 = sphi 0, %s232
    %s247 = sphi 0, %s233
    %s251 = sphi 0, %s251
    %s253 = sphi 0, %s251
    %s254 = sphi 0, %s253
    %s268 = sphi 0, %s254
    %s272 = sphi 0, %s272
    %s274 = sphi 0, %s272
    %s275 = sphi 0, %s274
    %s289 = sphi 0, %s275
    %s293 = sphi 0, %s293
    %s295 = sphi 0, %s293
    %s296 = sphi 0, %s295
    %s310 = sphi 0, %s296
    %s316 = sphi 0, %s318
    %s319 = sphi 0, %s316
    %s320 = sphi 0, %s319
    %s336 = sphi 0, %s320
  $region4: #{kw_cascaded_branch_forward.3} parent=0 // loop_header_branch
    %31 = sbr.rel (%p29) target = $region8
  $region5: #{kw_cascaded_branch_forward.3} parent=0 // loop_body
    %s33 = ssub.s32 %s28, 1
    %s34 = ssub.s32 %s28, 2
    %s35 = sadd.s32 %s28, 1
    %s36 = ssub.s32 %s28, %s35
    %p37 = scmp.eq.s32.totalorder %s36, 0
    %s39 = sadd.s32 %s38, 1
    %s40 = scalar_select %p37, %s38, %s39
    %p43 = pneg %p37
    %p44 = scmp.eq.s32.totalorder %s28, 1
    %p45 = por %p43, %p44
    %p46 = scmp.ne.s32.totalorder %s38, %s41
    %p47 = scmp.eq.s32.totalorder %s28, 0
    %p48 = por %p46, %p47
    %p49 = scmp.ne.s32.totalorder %s38, %s41
    %p50 = scmp.eq.s32.totalorder %s33, 1
    %p51 = por %p49, %p50
    %p52 = scmp.ne.s32.totalorder %s41, %s42
    %p53 = scmp.eq.s32.totalorder %s33, 0
    %p54 = por %p52, %p53
    %p55 = scmp.ne.s32.totalorder %s41, %s42
    %p56 = scmp.eq.s32.totalorder %s34, 1
    %p57 = por %p55, %p56
    %p59 = scmp.ne.s32.totalorder %s42, %s58
    %p60 = scmp.eq.s32.totalorder %s34, 0
    %p61 = por %p59, %p60
    %s63 = sadd.s32 %s62, 1
    %p66 = scmp.eq.s32.totalorder %s28, 1
    %p67 = scmp.ne.s32.totalorder %s62, %s64
    %p68 = scmp.eq.s32.totalorder %s28, 0
    %p69 = por %p67, %p68
    %p70 = scmp.ne.s32.totalorder %s62, %s64
    %p71 = scmp.eq.s32.totalorder %s33, 1
    %p72 = por %p70, %p71
    %p73 = scmp.ne.s32.totalorder %s64, %s65
    %p74 = scmp.eq.s32.totalorder %s33, 0
    %p75 = por %p73, %p74
    %p76 = scmp.ne.s32.totalorder %s64, %s65
    %p77 = scmp.eq.s32.totalorder %s34, 1
    %p78 = por %p76, %p77
    %p80 = scmp.ne.s32.totalorder %s65, %s79
    %p81 = scmp.eq.s32.totalorder %s34, 0
    %p82 = por %p80, %p81
    %s84 = sadd.s32 %s83, 1
    %p87 = scmp.eq.s32.totalorder %s28, 1
    %p88 = scmp.ne.s32.totalorder %s83, %s85
    %p89 = scmp.eq.s32.totalorder %s28, 0
    %p90 = por %p88, %p89
    %p91 = scmp.ne.s32.totalorder %s83, %s85
    %p92 = scmp.eq.s32.totalorder %s33, 1
    %p93 = por %p91, %p92
    %p94 = scmp.ne.s32.totalorder %s85, %s86
    %p95 = scmp.eq.s32.totalorder %s33, 0
    %p96 = por %p94, %p95
    %p97 = scmp.ne.s32.totalorder %s85, %s86
    %p98 = scmp.eq.s32.totalorder %s34, 1
    %p99 = por %p97, %p98
    %p101 = scmp.ne.s32.totalorder %s86, %s100
    %p102 = scmp.eq.s32.totalorder %s34, 0
    %p103 = por %p101, %p102
    %s105 = sadd.s32 %s104, 1
    %p108 = scmp.eq.s32.totalorder %s28, 1
    %p109 = scmp.ne.s32.totalorder %s104, %s106
    %p110 = scmp.eq.s32.totalorder %s28, 0
    %p111 = por %p109, %p110
    %p112 = scmp.ne.s32.totalorder %s104, %s106
    %p113 = scmp.eq.s32.totalorder %s33, 1
    %p114 = por %p112, %p113
    %p115 = scmp.ne.s32.totalorder %s106, %s107
    %p116 = scmp.eq.s32.totalorder %s33, 0
    %p117 = por %p115, %p116
    %p118 = scmp.ne.s32.totalorder %s106, %s107
    %p119 = scmp.eq.s32.totalorder %s34, 1
    %p120 = por %p118, %p119
    %p122 = scmp.ne.s32.totalorder %s107, %s121
    %p123 = scmp.eq.s32.totalorder %s34, 0
    %p124 = por %p122, %p123
    %s126 = sadd.s32 %s125, 1
    %p129 = scmp.eq.s32.totalorder %s28, 1
    %p130 = scmp.ne.s32.totalorder %s125, %s127
    %p131 = scmp.eq.s32.totalorder %s28, 0
    %p132 = por %p130, %p131
    %p133 = scmp.ne.s32.totalorder %s125, %s127
    %p134 = scmp.eq.s32.totalorder %s33, 1
    %p135 = por %p133, %p134
    %p136 = scmp.ne.s32.totalorder %s127, %s128
    %p137 = scmp.eq.s32.totalorder %s33, 0
    %p138 = por %p136, %p137
    %p139 = scmp.ne.s32.totalorder %s127, %s128
    %p140 = scmp.eq.s32.totalorder %s34, 1
    %p141 = por %p139, %p140
    %p143 = scmp.ne.s32.totalorder %s128, %s142
    %p144 = scmp.eq.s32.totalorder %s34, 0
    %p145 = por %p143, %p144
    %s147 = sadd.s32 %s146, 1
    %p150 = scmp.eq.s32.totalorder %s28, 1
    %p151 = scmp.ne.s32.totalorder %s146, %s148
    %p152 = scmp.eq.s32.totalorder %s28, 0
    %p153 = por %p151, %p152
    %p154 = scmp.ne.s32.totalorder %s146, %s148
    %p155 = scmp.eq.s32.totalorder %s33, 1
    %p156 = por %p154, %p155
    %p157 = scmp.ne.s32.totalorder %s148, %s149
    %p158 = scmp.eq.s32.totalorder %s33, 0
    %p159 = por %p157, %p158
    %p160 = scmp.ne.s32.totalorder %s148, %s149
    %p161 = scmp.eq.s32.totalorder %s34, 1
    %p162 = por %p160, %p161
    %p164 = scmp.ne.s32.totalorder %s149, %s163
    %p165 = scmp.eq.s32.totalorder %s34, 0
    %p166 = por %p164, %p165
    %s168 = sadd.s32 %s167, 1
    %p171 = scmp.eq.s32.totalorder %s28, 1
    %p172 = scmp.ne.s32.totalorder %s167, %s169
    %p173 = scmp.eq.s32.totalorder %s28, 0
    %p174 = por %p172, %p173
    %p175 = scmp.ne.s32.totalorder %s167, %s169
    %p176 = scmp.eq.s32.totalorder %s33, 1
    %p177 = por %p175, %p176
    %p178 = scmp.ne.s32.totalorder %s169, %s170
    %p179 = scmp.eq.s32.totalorder %s33, 0
    %p180 = por %p178, %p179
    %p181 = scmp.ne.s32.totalorder %s169, %s170
    %p182 = scmp.eq.s32.totalorder %s34, 1
    %p183 = por %p181, %p182
    %p185 = scmp.ne.s32.totalorder %s170, %s184
    %p186 = scmp.eq.s32.totalorder %s34, 0
    %p187 = por %p185, %p186
    %s189 = sadd.s32 %s188, 1
    %p192 = scmp.eq.s32.totalorder %s28, 1
    %p193 = scmp.ne.s32.totalorder %s188, %s190
    %p194 = scmp.eq.s32.totalorder %s28, 0
    %p195 = por %p193, %p194
    %p196 = scmp.ne.s32.totalorder %s188, %s190
    %p197 = scmp.eq.s32.totalorder %s33, 1
    %p198 = por %p196, %p197
    %p199 = scmp.ne.s32.totalorder %s190, %s191
    %p200 = scmp.eq.s32.totalorder %s33, 0
    %p201 = por %p199, %p200
    %p202 = scmp.ne.s32.totalorder %s190, %s191
    %p203 = scmp.eq.s32.totalorder %s34, 1
    %p204 = por %p202, %p203
    %p206 = scmp.ne.s32.totalorder %s191, %s205
    %p207 = scmp.eq.s32.totalorder %s34, 0
    %p208 = por %p206, %p207
    %s210 = sadd.s32 %s209, 1
    %p213 = scmp.eq.s32.totalorder %s28, 1
    %p214 = scmp.ne.s32.totalorder %s209, %s211
    %p215 = scmp.eq.s32.totalorder %s28, 0
    %p216 = por %p214, %p215
    %p217 = scmp.ne.s32.totalorder %s209, %s211
    %p218 = scmp.eq.s32.totalorder %s33, 1
    %p219 = por %p217, %p218
    %p220 = scmp.ne.s32.totalorder %s211, %s212
    %p221 = scmp.eq.s32.totalorder %s33, 0
    %p222 = por %p220, %p221
    %p223 = scmp.ne.s32.totalorder %s211, %s212
    %p224 = scmp.eq.s32.totalorder %s34, 1
    %p225 = por %p223, %p224
    %p227 = scmp.ne.s32.totalorder %s212, %s226
    %p228 = scmp.eq.s32.totalorder %s34, 0
    %p229 = por %p227, %p228
    %s231 = sadd.s32 %s230, 1
    %p234 = scmp.eq.s32.totalorder %s28, 1
    %p235 = scmp.ne.s32.totalorder %s230, %s232
    %p236 = scmp.eq.s32.totalorder %s28, 0
    %p237 = por %p235, %p236
    %p238 = scmp.ne.s32.totalorder %s230, %s232
    %p239 = scmp.eq.s32.totalorder %s33, 1
    %p240 = por %p238, %p239
    %p241 = scmp.ne.s32.totalorder %s232, %s233
    %p242 = scmp.eq.s32.totalorder %s33, 0
    %p243 = por %p241, %p242
    %p244 = scmp.ne.s32.totalorder %s232, %s233
    %p245 = scmp.eq.s32.totalorder %s34, 1
    %p246 = por %p244, %p245
    %p248 = scmp.ne.s32.totalorder %s233, %s247
    %p249 = scmp.eq.s32.totalorder %s34, 0
    %p250 = por %p248, %p249
    %s252 = sadd.s32 %s251, 1
    %p255 = scmp.eq.s32.totalorder %s28, 1
    %p256 = scmp.ne.s32.totalorder %s251, %s253
    %p257 = scmp.eq.s32.totalorder %s28, 0
    %p258 = por %p256, %p257
    %p259 = scmp.ne.s32.totalorder %s251, %s253
    %p260 = scmp.eq.s32.totalorder %s33, 1
    %p261 = por %p259, %p260
    %p262 = scmp.ne.s32.totalorder %s253, %s254
    %p263 = scmp.eq.s32.totalorder %s33, 0
    %p264 = por %p262, %p263
    %p265 = scmp.ne.s32.totalorder %s253, %s254
    %p266 = scmp.eq.s32.totalorder %s34, 1
    %p267 = por %p265, %p266
    %p269 = scmp.ne.s32.totalorder %s254, %s268
    %p270 = scmp.eq.s32.totalorder %s34, 0
    %p271 = por %p269, %p270
    %s273 = sadd.s32 %s272, 1
    %p276 = scmp.eq.s32.totalorder %s28, 1
    %p277 = scmp.ne.s32.totalorder %s272, %s274
    %p278 = scmp.eq.s32.totalorder %s28, 0
    %p279 = por %p277, %p278
    %p280 = scmp.ne.s32.totalorder %s272, %s274
    %p281 = scmp.eq.s32.totalorder %s33, 1
    %p282 = por %p280, %p281
    %p283 = scmp.ne.s32.totalorder %s274, %s275
    %p284 = scmp.eq.s32.totalorder %s33, 0
    %p285 = por %p283, %p284
    %p286 = scmp.ne.s32.totalorder %s274, %s275
    %p287 = scmp.eq.s32.totalorder %s34, 1
    %p288 = por %p286, %p287
    %p290 = scmp.ne.s32.totalorder %s275, %s289
    %p291 = scmp.eq.s32.totalorder %s34, 0
    %p292 = por %p290, %p291
    %s294 = sadd.s32 %s293, 1
    %p297 = scmp.eq.s32.totalorder %s28, 1
    %p298 = scmp.ne.s32.totalorder %s293, %s295
    %p299 = scmp.eq.s32.totalorder %s28, 0
    %p300 = por %p298, %p299
    %p301 = scmp.ne.s32.totalorder %s293, %s295
    %p302 = scmp.eq.s32.totalorder %s33, 1
    %p303 = por %p301, %p302
    %p304 = scmp.ne.s32.totalorder %s295, %s296
    %p305 = scmp.eq.s32.totalorder %s33, 0
    %p306 = por %p304, %p305
    %p307 = scmp.ne.s32.totalorder %s295, %s296
    %p308 = scmp.eq.s32.totalorder %s34, 1
    %p309 = por %p307, %p308
    %p311 = scmp.ne.s32.totalorder %s296, %s310
    %p312 = scmp.eq.s32.totalorder %s34, 0
    %p313 = por %p311, %p312
    %s314 = ssub.s32 %s28, %s35
    %p315 = scmp.eq.s32.totalorder %s314, 0
    %s317 = sadd.s32 %s316, 1
    %s318 = scalar_select %p315, %s316, %s317
    %p321 = pneg %p315
    %p322 = scmp.eq.s32.totalorder %s28, 1
    %p323 = por %p321, %p322
    %p324 = scmp.ne.s32.totalorder %s316, %s319
    %p325 = scmp.eq.s32.totalorder %s28, 0
    %p326 = por %p324, %p325
    %p327 = scmp.ne.s32.totalorder %s316, %s319
    %p328 = scmp.eq.s32.totalorder %s33, 1
    %p329 = por %p327, %p328
    %p330 = scmp.ne.s32.totalorder %s319, %s320
    %p331 = scmp.eq.s32.totalorder %s33, 0
    %p332 = por %p330, %p331
    %p333 = scmp.ne.s32.totalorder %s319, %s320
    %p334 = scmp.eq.s32.totalorder %s34, 1
    %p335 = por %p333, %p334
    %p337 = scmp.ne.s32.totalorder %s320, %s336
    %p338 = scmp.eq.s32.totalorder %s34, 0
    %p339 = por %p337, %p338
    %p340 = scmp.le.s32.totalorder 1, %s28
    %p341 = scmp.lt.s32.totalorder %s28, 3
    %p342 = pnand %p340, %p341
    %p343 = pneg %p342
    // Predicated region
    $region9: #{kw_cascaded_branch_forward.3} parent=5 // pred_check
      _
    $region10: #{kw_cascaded_branch_forward.3} parent=5 // pred_check_branch
      %345 = sbr.rel (%p342) target = $region12
    $region11: #{kw_cascaded_branch_forward.3} parent=5 // pred_region
      %s346 = ssub.s32 %s28, 1
      // Predicated region
      $region13: #{kw_cascaded_branch_forward.3} parent=11 // pred_check
        %p347 = pneg %p75
      $region14: #{kw_cascaded_branch_forward.3} parent=11 // pred_check_branch
        %349 = sbr.rel (%p347) target = $region16
      $region15: #{kw_cascaded_branch_forward.3} parent=11 // pred_region
        _
      $region16: #{kw_cascaded_branch_forward.3} parent=11 // pred_fallthru
        _
      // Predicated region
      $region17: #{kw_cascaded_branch_forward.3} parent=11 // pred_check
        %p350 = pneg %p96
      $region18: #{kw_cascaded_branch_forward.3} parent=11 // pred_check_branch
        %352 = sbr.rel (%p350) target = $region20
      $region19: #{kw_cascaded_branch_forward.3} parent=11 // pred_region
        _
      $region20: #{kw_cascaded_branch_forward.3} parent=11 // pred_fallthru
        _
      // Predicated region
      $region21: #{kw_cascaded_branch_forward.3} parent=11 // pred_check
        %p353 = pneg %p117
      $region22: #{kw_cascaded_branch_forward.3} parent=11 // pred_check_branch
        %355 = sbr.rel (%p353) target = $region24
      $region23: #{kw_cascaded_branch_forward.3} parent=11 // pred_region
        _
      $region24: #{kw_cascaded_branch_forward.3} parent=11 // pred_fallthru
        _
      // Predicated region
      $region25: #{kw_cascaded_branch_forward.3} parent=11 // pred_check
        %p356 = pneg %p138
      $region26: #{kw_cascaded_branch_forward.3} parent=11 // pred_check_branch
        %358 = sbr.rel (%p356) target = $region28
      $region27: #{kw_cascaded_branch_forward.3} parent=11 // pred_region
        _
      $region28: #{kw_cascaded_branch_forward.3} parent=11 // pred_fallthru
        _
      // Predicated region
      $region29: #{kw_cascaded_branch_forward.3} parent=11 // pred_check
        %p359 = pneg %p159
      $region30: #{kw_cascaded_branch_forward.3} parent=11 // pred_check_branch
        %361 = sbr.rel (%p359) target = $region32
      $region31: #{kw_cascaded_branch_forward.3} parent=11 // pred_region
        _
      $region32: #{kw_cascaded_branch_forward.3} parent=11 // pred_fallthru
        _
      // Predicated region
      $region33: #{kw_cascaded_branch_forward.3} parent=11 // pred_check
        %p362 = pneg %p180
      $region34: #{kw_cascaded_branch_forward.3} parent=11 // pred_check_branch
        %364 = sbr.rel (%p362) target = $region36
      $region35: #{kw_cascaded_branch_forward.3} parent=11 // pred_region
        _
      $region36: #{kw_cascaded_branch_forward.3} parent=11 // pred_fallthru
        _
      // Predicated region
      $region37: #{kw_cascaded_branch_forward.3} parent=11 // pred_check
        %p365 = pneg %p201
      $region38: #{kw_cascaded_branch_forward.3} parent=11 // pred_check_branch
        %367 = sbr.rel (%p365) target = $region40
      $region39: #{kw_cascaded_branch_forward.3} parent=11 // pred_region
        _
      $region40: #{kw_cascaded_branch_forward.3} parent=11 // pred_fallthru
        _
      // Predicated region
      $region41: #{kw_cascaded_branch_forward.3} parent=11 // pred_check
        %p368 = pneg %p222
      $region42: #{kw_cascaded_branch_forward.3} parent=11 // pred_check_branch
        %370 = sbr.rel (%p368) target = $region44
      $region43: #{kw_cascaded_branch_forward.3} parent=11 // pred_region
        _
      $region44: #{kw_cascaded_branch_forward.3} parent=11 // pred_fallthru
        _
      // Predicated region
      $region45: #{kw_cascaded_branch_forward.3} parent=11 // pred_check
        %p371 = pneg %p243
      $region46: #{kw_cascaded_branch_forward.3} parent=11 // pred_check_branch
        %373 = sbr.rel (%p371) target = $region48
      $region47: #{kw_cascaded_branch_forward.3} parent=11 // pred_region
        _
      $region48: #{kw_cascaded_branch_forward.3} parent=11 // pred_fallthru
        _
      // Predicated region
      $region49: #{kw_cascaded_branch_forward.3} parent=11 // pred_check
        %p374 = pneg %p264
      $region50: #{kw_cascaded_branch_forward.3} parent=11 // pred_check_branch
        %376 = sbr.rel (%p374) target = $region52
      $region51: #{kw_cascaded_branch_forward.3} parent=11 // pred_region
        _
      $region52: #{kw_cascaded_branch_forward.3} parent=11 // pred_fallthru
        _
      // Predicated region
      $region53: #{kw_cascaded_branch_forward.3} parent=11 // pred_check
        %p377 = pneg %p285
      $region54: #{kw_cascaded_branch_forward.3} parent=11 // pred_check_branch
        %379 = sbr.rel (%p377) target = $region56
      $region55: #{kw_cascaded_branch_forward.3} parent=11 // pred_region
        _
      $region56: #{kw_cascaded_branch_forward.3} parent=11 // pred_fallthru
        _
      // Predicated region
      $region57: #{kw_cascaded_branch_forward.3} parent=11 // pred_check
        %p380 = pneg %p306
      $region58: #{kw_cascaded_branch_forward.3} parent=11 // pred_check_branch
        %382 = sbr.rel (%p380) target = $region60
      $region59: #{kw_cascaded_branch_forward.3} parent=11 // pred_region
        _
      $region60: #{kw_cascaded_branch_forward.3} parent=11 // pred_fallthru
        _
    $region12: #{kw_cascaded_branch_forward.3} parent=5 // pred_fallthru
      _
    %p383 = scmp.lt.s32.totalorder %s28, 2
    // Predicated region
    $region61: #{kw_cascaded_branch_forward.3} parent=5 // pred_check
      %p384 = pneg %p383
    $region62: #{kw_cascaded_branch_forward.3} parent=5 // pred_check_branch
      %386 = sbr.rel (%p384) target = $region64
    $region63: #{kw_cascaded_branch_forward.3} parent=5 // pred_region
      // Predicated region
      $region65: #{kw_cascaded_branch_forward.3} parent=63 // pred_check
        %p387 = pneg %p48
      $region66: #{kw_cascaded_branch_forward.3} parent=63 // pred_check_branch
        %389 = sbr.rel (%p387) target = $region68
      $region67: #{kw_cascaded_branch_forward.3} parent=63 // pred_region
        %p390 = scmp.lt.s32.totalorder %s28, 1
        %s391 = scalar_select %p390, %s28, 1
        %s392 = smul.addr %s391, 2
        %s393 = smul.addr %s392, 8
        %s394 = scalar_lea.vmem %s1, %s393
      $region68: #{kw_cascaded_branch_forward.3} parent=63 // pred_fallthru
        _
    $region64: #{kw_cascaded_branch_forward.3} parent=5 // pred_fallthru
      _
    %p395 = scmp.le.s32.totalorder 1, %s28
    %p396 = scmp.lt.s32.totalorder %s28, 3
    %p397 = pnand %p395, %p396
    %p398 = pneg %p397
    // Predicated region
    $region69: #{kw_cascaded_branch_forward.3} parent=5 // pred_check
      _
    $region70: #{kw_cascaded_branch_forward.3} parent=5 // pred_check_branch
      %400 = sbr.rel (%p397) target = $region72
    $region71: #{kw_cascaded_branch_forward.3} parent=5 // pred_region
      %s401 = ssub.s32 %s28, 1
      %p402 = scmp.lt.s32.totalorder %s33, 1
      %s403 = scalar_select %p402, %s33, 1
      %s404 = smul.addr %s403, 2
      %s405 = smul.addr %s404, 8
      %s406 = scalar_lea.vmem %s1, %s405
      %p407 = pneg %p54
      %p408 = pneg %p51
      %p409 = pneg %p75
      %p410 = pneg %p72
      %p411 = pneg %p96
      %p412 = pneg %p93
      %p413 = pneg %p117
      %p414 = pneg %p114
      %p415 = pneg %p138
      %p416 = pneg %p135
      %p417 = pneg %p159
      %p418 = pneg %p156
      %p419 = pneg %p180
      %p420 = pneg %p177
      %p421 = pneg %p201
      %p422 = pneg %p198
      %p423 = pneg %p222
      %p424 = pneg %p219
      %p425 = pneg %p243
      %p426 = pneg %p240
      %p427 = pneg %p264
      %p428 = pneg %p261
      %p429 = pneg %p285
      %p430 = pneg %p282
      %p431 = pneg %p306
      %p432 = pneg %p303
      %p433 = pneg %p332
      %p434 = pneg %p329
      %p435 = scmp.lt.s32.totalorder %s33, 1
      %s436 = scalar_select %p435, %s33, 1
      %s437 = smul.addr %s436, 2
      %s438 = smul.addr %s437, 8
      %s439 = scalar_lea.vmem %s14, %s438
      %p440 = scmp.lt.s32.totalorder %s33, 1
      %s441 = scalar_select %p440, %s33, 1
      %s442 = smul.addr %s441, 2
      %s443 = smul.addr %s442, 8
      %s444 = scalar_lea.vmem %s1, %s443
      %p445 = scmp.lt.s32.totalorder %s33, 1
      %s446 = scalar_select %p445, %s33, 1
      %s447 = smul.addr %s446, 2
      %s448 = smul.addr %s447, 8
      %s449 = scalar_lea.vmem %s14, %s448
      %v451 = vld [vmem:[%s444] sm:$0xff]
      %v452 = vld [vmem:[%s444 + $0x8] sm:$0xf]
      %v453 = vlaneseq
      %v454 = vand.u32 %v453, 127
      %s455 = sld [smem:[#allocation3 + %s33]]
      %v456 = vstv %s455
      %vm457 = vcmp.lt.s32.totalorder %v454, %v456
      %v458 = vld [vmem:[%s2] sm:$0xf]
      %v459 = vld [vmem:[%s2 + $0x4] sm:$0xf]
      %v460 = vld [vmem:[%s2 + $0x8] sm:$0xf]
      %v461 = vld [vmem:[%s2 + $0xc] sm:$0xf]
      %v462 = vld [vmem:[%s3] sm:$0x1]
      %v463 = vld [vmem:[%s5] sm:$0x1]
      %v464 = vld [vmem:[%s6] sm:$0x1]
      %v465 = vld [vmem:[%s7] sm:$0x1]
      %v466 = vld [vmem:[%s8] sm:$0xf]
      %v467 = vld [vmem:[%s8 + $0x4] sm:$0xf]
      %v468 = vld [vmem:[%s8 + $0x8] sm:$0xf]
      %v469 = vld [vmem:[%s8 + $0xc] sm:$0xf]
      %v470 = vld [vmem:[%s9] sm:$0x1]
      %v471 = vld [vmem:[%s10] sm:$0xf]
      %v472 = vld [vmem:[%s10 + $0x4] sm:$0xf]
      %v473 = vld [vmem:[%s10 + $0x8] sm:$0xf]
      %v474 = vld [vmem:[%s10 + $0xc] sm:$0xf]
      %v475 = vld [vmem:[%s10 + $0x10] sm:$0xf]
      %v476 = vld [vmem:[%s10 + $0x14] sm:$0xf]
      %v477 = vld [vmem:[%s10 + $0x18] sm:$0xf]
      %v478 = vld [vmem:[%s10 + $0x1c] sm:$0xf]
      %v479 = vld [vmem:[%s11] sm:$0x1]
      %v480 = vld [vmem:[%s12] sm:$0x1]
      %v481 = vld [vmem:[%s13] sm:$0x1]
      %v482 = vpack.c.bf16 %v452, %v451
      %v484 = vperm.slane %v462, 0
      %v490 = vunpack.c.l.b16 %v458
      %v491 = vunpack.c.l.b16 %v459
      %v492 = vunpack.c.l.b16 %v460
      %v493 = vunpack.c.l.b16 %v461
      %v494 = vpack.c.b16 %v491, %v490
      %v495 = vpack.c.b16 %v493, %v492
      %vm498 = vcmask 261120
      %v500 = vsel %vm498, %v482, 0
      %502 = vmatpush.bf16.msra.mxu0 0
      %503 = vmatpush.bf16.msra.mxu0 0
      %504 = vmatpush.bf16.msra.mxu0 0
      %505 = vmatpush.bf16.msra.mxu0 0
      %506 = vmatpush.bf16.msra.mxu0 0
      %507 = vmatpush.bf16.msra.mxu0 0
      %508 = vmatpush.bf16.msra.mxu0 %v495
      %509 = vmatpush.bf16.msra.mxu0 %v494
      %510 = vmatmul.bf16.gmra.mxu0 %v500
      %v511 = vpop.f32.mrf.mxu0
      %v512 = vadd.f32 %v484, %v511
      %v513 = vpop.f32.mrf.mxu0
      %v514 = vadd.f32 %v484, %v513
      %515 = vdwg.mxu0
      %v516 = vpack.c.bf16 %v514, %v512
      %518 = vrot.lane.b32.xlu0 %v516, 96
      %v519 = vpop.permute.xlu0 %518
      %vm520 = vcmask 64512
      %v522 = vsel %vm520, %v516, 0
      %v525 = vsel %vm520, %v519, 0
      %527 = vmatpush.bf16.xpose.msra.mxu0 0
      %528 = vmatpush.bf16.xpose.msra.mxu0 0
      %529 = vmatpush.bf16.xpose.msra.mxu0 0
      %530 = vmatpush.bf16.xpose.msra.mxu0 0
      %531 = vmatpush.bf16.xpose.msra.mxu0 0
      %532 = vmatpush.bf16.xpose.msra.mxu0 0
      %533 = vmatpush.bf16.xpose.msra.mxu0 0
      %534 = vmatpush.bf16.xpose.msra.mxu0 %v525
      %535 = vmatmul.bf16.gmra.mxu0 %v522
      %v536 = vpop.f32.mrf.mxu0
      %v537 = vadd.f32 0.0, %v536
      %v538 = vpop.f32.mrf.mxu0
      %v539 = vadd.f32 0.0, %v538
      %540 = vdwg.mxu0
      %v541 = vmul.f32 %v537, 0.35355338
      %v542 = vmul.f32 %v539, 0.35355338
      %v543 = vsel %vm457, %v541, -1e+09
      %v544 = vsel %vm457, %v542, -1e+09
      %vm545 = vcmask 97280
      %v546 = vsel %vm545, %v543, -inf
      %547 = vmax.xlane.f32.xlu0 %v546
      %v548 = vpop.xlane.xlu0 %547
      %vm549 = vcmask 93184
      %v550 = vsel %vm549, %v544, -inf
      %551 = vmax.xlane.f32.xlu0 %v550
      %v552 = vpop.xlane.xlu0 %551
      %v553 = vsub.f32 %v543, %v548
      %v554 = vsub.f32 %v544, %v552
      %v555 = vmul.f32 %v553, 1.442695
      %v556 = vpow.pop %v555
      %v557 = vmul.f32 %v554, 1.442695
      %v558 = vpow.pop %v557
      %v559 = vsel %vm545, %v556, 0.0
      %560 = vadd.xlane.f32.xlu0 %v559
      %v561 = vpop.xlane.xlu0 %560
      %v562 = vsel %vm549, %v558, 0.0
      %563 = vadd.xlane.f32.xlu0 %v562
      %v564 = vpop.xlane.xlu0 %563
      %v565 = vrcp.pop %v561
      %v566 = vrcp.pop %v564
      %v567 = vmul.f32 %v556, %v565
      %v568 = vmul.f32 %v558, %v566
      %v569 = vpack.c.bf16 %v568, %v567
      %570 = vrot.lane.b32.xlu0 %v516, 64
      %v571 = vpop.permute.xlu0 %570
      %v573 = vsel %vm545, %v569, 0
      %vm575 = vcmask 1045504
      %v577 = vsel %vm575, %v571, 0
      %579 = vmatpush.bf16.msra.mxu0 0
      %580 = vmatpush.bf16.msra.mxu0 0
      %581 = vmatpush.bf16.msra.mxu0 0
      %582 = vmatpush.bf16.msra.mxu0 0
      %583 = vmatpush.bf16.msra.mxu0 0
      %584 = vmatpush.bf16.msra.mxu0 0
      %585 = vmatpush.bf16.msra.mxu0 0
      %586 = vmatpush.bf16.msra.mxu0 %v577
      %587 = vmatmul.bf16.gmra.mxu0 %v573
      %v588 = vpop.f32.mrf.mxu0
      %v589 = vadd.f32 0.0, %v588
      %v590 = vpop.f32.mrf.mxu0
      %v591 = vadd.f32 0.0, %v590
      %592 = vdwg.mxu0
      %v593 = vpack.c.bf16 %v591, %v589
      %v594 = vld [vmem:[%s4] sm:$0xf]
      %595 = vrot.lane.b32.xlu0 %v516, 120
      %v596 = vpop.permute.xlu0 %595
      %597 = vrot.lane.b32.xlu0 %v516, 88
      %v598 = vpop.permute.xlu0 %597
      %v600 = vsel %vm520, %v596, 0
      %v603 = vsel %vm520, %v598, 0
      %605 = vmatpush.bf16.xpose.msra.mxu0 0
      %606 = vmatpush.bf16.xpose.msra.mxu0 0
      %607 = vmatpush.bf16.xpose.msra.mxu0 0
      %608 = vmatpush.bf16.xpose.msra.mxu0 0
      %609 = vmatpush.bf16.xpose.msra.mxu0 0
      %610 = vmatpush.bf16.xpose.msra.mxu0 0
      %611 = vmatpush.bf16.xpose.msra.mxu0 0
      %612 = vmatpush.bf16.xpose.msra.mxu0 %v603
      %613 = vmatmul.bf16.gmra.mxu0 %v600
      %v614 = vpop.f32.mrf.mxu0
      %v615 = vadd.f32 0.0, %v614
      %v616 = vpop.f32.mrf.mxu0
      %v617 = vadd.f32 0.0, %v616
      %618 = vdwg.mxu0
      %v619 = vmul.f32 %v615, 0.35355338
      %v620 = vmul.f32 %v617, 0.35355338
      %v621 = vsel %vm457, %v619, -1e+09
      %v622 = vsel %vm457, %v620, -1e+09
      %v623 = vsel %vm545, %v621, -inf
      %624 = vmax.xlane.f32.xlu0 %v623
      %v625 = vpop.xlane.xlu0 %624
      %v626 = vsel %vm549, %v622, -inf
      %627 = vmax.xlane.f32.xlu0 %v626
      %v628 = vpop.xlane.xlu0 %627
      %v629 = vsub.f32 %v621, %v625
      %v630 = vsub.f32 %v622, %v628
      %v631 = vmul.f32 %v629, 1.442695
      %v632 = vpow.pop %v631
      %v633 = vmul.f32 %v630, 1.442695
      %v634 = vpow.pop %v633
      %v635 = vsel %vm545, %v632, 0.0
      %636 = vadd.xlane.f32.xlu0 %v635
      %v637 = vpop.xlane.xlu0 %636
      %v638 = vsel %vm549, %v634, 0.0
      %639 = vadd.xlane.f32.xlu0 %v638
      %v640 = vpop.xlane.xlu0 %639
      %v641 = vrcp.pop %v637
      %v642 = vrcp.pop %v640
      %v643 = vmul.f32 %v632, %v641
      %v644 = vmul.f32 %v634, %v642
      %v645 = vpack.c.bf16 %v644, %v643
      %646 = vrot.lane.b32.xlu0 %v516, 56
      %v647 = vpop.permute.xlu0 %646
      %v649 = vsel %vm545, %v645, 0
      %v652 = vsel %vm575, %v647, 0
      %654 = vmatpush.bf16.msra.mxu0 0
      %655 = vmatpush.bf16.msra.mxu0 0
      %656 = vmatpush.bf16.msra.mxu0 0
      %657 = vmatpush.bf16.msra.mxu0 0
      %658 = vmatpush.bf16.msra.mxu0 0
      %659 = vmatpush.bf16.msra.mxu0 0
      %660 = vmatpush.bf16.msra.mxu0 0
      %661 = vmatpush.bf16.msra.mxu0 %v652
      %662 = vmatmul.bf16.gmra.mxu0 %v649
      %v663 = vpop.f32.mrf.mxu0
      %v664 = vadd.f32 0.0, %v663
      %v665 = vpop.f32.mrf.mxu0
      %v666 = vadd.f32 0.0, %v665
      %667 = vdwg.mxu0
      %v668 = vpack.c.bf16 %v666, %v664
      %s669 = scalar_lea.vmem %s4, 4
      %v670 = vld [vmem:[%s669] sm:$0xf]
      %v672 = vsel %vm520, %v668, 0
      %vm674 = vcmask 1043456
      %v676 = vsel %vm674, %v670, 0
      %678 = vmatpush.bf16.msra.mxu0 0
      %679 = vmatpush.bf16.msra.mxu0 0
      %680 = vmatpush.bf16.msra.mxu0 0
      %681 = vmatpush.bf16.msra.mxu0 0
      %682 = vmatpush.bf16.msra.mxu0 0
      %683 = vmatpush.bf16.msra.mxu0 0
      %684 = vmatpush.bf16.msra.mxu0 0
      %685 = vmatpush.bf16.msra.mxu0 %v676
      %686 = vmatmul.bf16.gmra.mxu0 %v672
      %v687 = vpop.f32.mrf.mxu0
      %v688 = vadd.f32 0.0, %v687
      %v689 = vpop.f32.mrf.mxu0
      %v690 = vadd.f32 0.0, %v689
      %691 = vdwg.mxu0
      %v693 = vsel %vm520, %v593, 0
      %v696 = vsel %vm674, %v594, 0
      %698 = vmatpush.bf16.msra.mxu0 0
      %699 = vmatpush.bf16.msra.mxu0 0
      %700 = vmatpush.bf16.msra.mxu0 0
      %701 = vmatpush.bf16.msra.mxu0 0
      %702 = vmatpush.bf16.msra.mxu0 0
      %703 = vmatpush.bf16.msra.mxu0 0
      %704 = vmatpush.bf16.msra.mxu0 0
      %705 = vmatpush.bf16.msra.mxu0 %v696
      %706 = vmatmul.bf16.gmra.mxu0 %v693
      %v707 = vpop.f32.mrf.mxu0
      %v708 = vadd.f32 %v688, %v707
      %v709 = vpop.f32.mrf.mxu0
      %v710 = vadd.f32 %v690, %v709
      %711 = vdwg.mxu0
      %712 = vrot.lane.b32.xlu0 %v516, 112
      %v713 = vpop.permute.xlu0 %712
      %714 = vrot.lane.b32.xlu0 %v516, 80
      %v715 = vpop.permute.xlu0 %714
      %v717 = vsel %vm520, %v713, 0
      %v720 = vsel %vm520, %v715, 0
      %722 = vmatpush.bf16.xpose.msra.mxu0 0
      %723 = vmatpush.bf16.xpose.msra.mxu0 0
      %724 = vmatpush.bf16.xpose.msra.mxu0 0
      %725 = vmatpush.bf16.xpose.msra.mxu0 0
      %726 = vmatpush.bf16.xpose.msra.mxu0 0
      %727 = vmatpush.bf16.xpose.msra.mxu0 0
      %728 = vmatpush.bf16.xpose.msra.mxu0 0
      %729 = vmatpush.bf16.xpose.msra.mxu0 %v720
      %730 = vmatmul.bf16.gmra.mxu0 %v717
      %v731 = vpop.f32.mrf.mxu0
      %v732 = vadd.f32 0.0, %v731
      %v733 = vpop.f32.mrf.mxu0
      %v734 = vadd.f32 0.0, %v733
      %735 = vdwg.mxu0
      %v736 = vmul.f32 %v732, 0.35355338
      %v737 = vmul.f32 %v734, 0.35355338
      %v738 = vsel %vm457, %v736, -1e+09
      %v739 = vsel %vm457, %v737, -1e+09
      %v740 = vsel %vm545, %v738, -inf
      %741 = vmax.xlane.f32.xlu0 %v740
      %v742 = vpop.xlane.xlu0 %741
      %v743 = vsel %vm549, %v739, -inf
      %744 = vmax.xlane.f32.xlu0 %v743
      %v745 = vpop.xlane.xlu0 %744
      %v746 = vsub.f32 %v738, %v742
      %v747 = vsub.f32 %v739, %v745
      %v748 = vmul.f32 %v746, 1.442695
      %v749 = vpow.pop %v748
      %v750 = vmul.f32 %v747, 1.442695
      %v751 = vpow.pop %v750
      %v752 = vsel %vm545, %v749, 0.0
      %753 = vadd.xlane.f32.xlu0 %v752
      %v754 = vpop.xlane.xlu0 %753
      %v755 = vsel %vm549, %v751, 0.0
      %756 = vadd.xlane.f32.xlu0 %v755
      %v757 = vpop.xlane.xlu0 %756
      %v758 = vrcp.pop %v754
      %v759 = vrcp.pop %v757
      %v760 = vmul.f32 %v749, %v758
      %v761 = vmul.f32 %v751, %v759
      %v762 = vpack.c.bf16 %v761, %v760
      %763 = vrot.lane.b32.xlu0 %v516, 48
      %v764 = vpop.permute.xlu0 %763
      %v766 = vsel %vm545, %v762, 0
      %v769 = vsel %vm575, %v764, 0
      %771 = vmatpush.bf16.msra.mxu0 0
      %772 = vmatpush.bf16.msra.mxu0 0
      %773 = vmatpush.bf16.msra.mxu0 0
      %774 = vmatpush.bf16.msra.mxu0 0
      %775 = vmatpush.bf16.msra.mxu0 0
      %776 = vmatpush.bf16.msra.mxu0 0
      %777 = vmatpush.bf16.msra.mxu0 0
      %778 = vmatpush.bf16.msra.mxu0 %v769
      %779 = vmatmul.bf16.gmra.mxu0 %v766
      %v780 = vpop.f32.mrf.mxu0
      %v781 = vadd.f32 0.0, %v780
      %v782 = vpop.f32.mrf.mxu0
      %v783 = vadd.f32 0.0, %v782
      %784 = vdwg.mxu0
      %v785 = vpack.c.bf16 %v783, %v781
      %s786 = scalar_lea.vmem %s4, 8
      %v787 = vld [vmem:[%s786] sm:$0xf]
      %v789 = vsel %vm520, %v785, 0
      %v792 = vsel %vm674, %v787, 0
      %794 = vmatpush.bf16.msra.mxu0 0
      %795 = vmatpush.bf16.msra.mxu0 0
      %796 = vmatpush.bf16.msra.mxu0 0
      %797 = vmatpush.bf16.msra.mxu0 0
      %798 = vmatpush.bf16.msra.mxu0 0
      %799 = vmatpush.bf16.msra.mxu0 0
      %800 = vmatpush.bf16.msra.mxu0 0
      %801 = vmatpush.bf16.msra.mxu0 %v792
      %802 = vmatmul.bf16.gmra.mxu0 %v789
      %v803 = vpop.f32.mrf.mxu0
      %v804 = vadd.f32 0.0, %v803
      %v805 = vpop.f32.mrf.mxu0
      %v806 = vadd.f32 0.0, %v805
      %807 = vdwg.mxu0
      %v808 = vadd.f32 %v708, %v804
      %v809 = vadd.f32 %v710, %v806
      %810 = vrot.lane.b32.xlu0 %v516, 104
      %v811 = vpop.permute.xlu0 %810
      %812 = vrot.lane.b32.xlu0 %v516, 72
      %v813 = vpop.permute.xlu0 %812
      %v815 = vsel %vm520, %v811, 0
      %v818 = vsel %vm520, %v813, 0
      %820 = vmatpush.bf16.xpose.msra.mxu0 0
      %821 = vmatpush.bf16.xpose.msra.mxu0 0
      %822 = vmatpush.bf16.xpose.msra.mxu0 0
      %823 = vmatpush.bf16.xpose.msra.mxu0 0
      %824 = vmatpush.bf16.xpose.msra.mxu0 0
      %825 = vmatpush.bf16.xpose.msra.mxu0 0
      %826 = vmatpush.bf16.xpose.msra.mxu0 0
      %827 = vmatpush.bf16.xpose.msra.mxu0 %v818
      %828 = vmatmul.bf16.gmra.mxu0 %v815
      %v829 = vpop.f32.mrf.mxu0
      %v830 = vadd.f32 0.0, %v829
      %v831 = vpop.f32.mrf.mxu0
      %v832 = vadd.f32 0.0, %v831
      %833 = vdwg.mxu0
      %v834 = vmul.f32 %v830, 0.35355338
      %v835 = vmul.f32 %v832, 0.35355338
      %v836 = vsel %vm457, %v834, -1e+09
      %v837 = vsel %vm457, %v835, -1e+09
      %v838 = vsel %vm545, %v836, -inf
      %839 = vmax.xlane.f32.xlu0 %v838
      %v840 = vpop.xlane.xlu0 %839
      %v841 = vsel %vm549, %v837, -inf
      %842 = vmax.xlane.f32.xlu0 %v841
      %v843 = vpop.xlane.xlu0 %842
      %v844 = vsub.f32 %v836, %v840
      %v845 = vsub.f32 %v837, %v843
      %v846 = vmul.f32 %v844, 1.442695
      %v847 = vpow.pop %v846
      %v848 = vmul.f32 %v845, 1.442695
      %v849 = vpow.pop %v848
      %v850 = vsel %vm545, %v847, 0.0
      %851 = vadd.xlane.f32.xlu0 %v850
      %v852 = vpop.xlane.xlu0 %851
      %v853 = vsel %vm549, %v849, 0.0
      %854 = vadd.xlane.f32.xlu0 %v853
      %v855 = vpop.xlane.xlu0 %854
      %v856 = vrcp.pop %v852
      %v857 = vrcp.pop %v855
      %v858 = vmul.f32 %v847, %v856
      %v859 = vmul.f32 %v849, %v857
      %v860 = vpack.c.bf16 %v859, %v858
      %861 = vrot.lane.b32.xlu0 %v516, 40
      %v862 = vpop.permute.xlu0 %861
      %v864 = vsel %vm545, %v860, 0
      %v867 = vsel %vm575, %v862, 0
      %869 = vmatpush.bf16.msra.mxu0 0
      %870 = vmatpush.bf16.msra.mxu0 0
      %871 = vmatpush.bf16.msra.mxu0 0
      %872 = vmatpush.bf16.msra.mxu0 0
      %873 = vmatpush.bf16.msra.mxu0 0
      %874 = vmatpush.bf16.msra.mxu0 0
      %875 = vmatpush.bf16.msra.mxu0 0
      %876 = vmatpush.bf16.msra.mxu0 %v867
      %877 = vmatmul.bf16.gmra.mxu0 %v864
      %v878 = vpop.f32.mrf.mxu0
      %v879 = vadd.f32 0.0, %v878
      %v880 = vpop.f32.mrf.mxu0
      %v881 = vadd.f32 0.0, %v880
      %882 = vdwg.mxu0
      %v883 = vpack.c.bf16 %v881, %v879
      %s884 = scalar_lea.vmem %s4, 12
      %v885 = vld [vmem:[%s884] sm:$0xf]
      %v887 = vsel %vm520, %v883, 0
      %v890 = vsel %vm674, %v885, 0
      %892 = vmatpush.bf16.msra.mxu0 0
      %893 = vmatpush.bf16.msra.mxu0 0
      %894 = vmatpush.bf16.msra.mxu0 0
      %895 = vmatpush.bf16.msra.mxu0 0
      %896 = vmatpush.bf16.msra.mxu0 0
      %897 = vmatpush.bf16.msra.mxu0 0
      %898 = vmatpush.bf16.msra.mxu0 0
      %899 = vmatpush.bf16.msra.mxu0 %v890
      %900 = vmatmul.bf16.gmra.mxu0 %v887
      %v901 = vpop.f32.mrf.mxu0
      %v902 = vadd.f32 0.0, %v901
      %v903 = vpop.f32.mrf.mxu0
      %v904 = vadd.f32 0.0, %v903
      %905 = vdwg.mxu0
      %v906 = vadd.f32 %v808, %v902
      %v907 = vadd.f32 %v809, %v904
      %v909 = vperm.slane %v463, 0
      %v911 = vadd.f32 %v906, %v909
      %v912 = vadd.f32 %v907, %v909
      %v913 = vadd.f32 %v451, %v911
      %v914 = vadd.f32 %v452, %v912
      %v915 = vsel %vm498, %v913, 0.0
      %916 = vadd.xlane.f32.xlu0 %v915
      %v917 = vpop.xlane.xlu0 %916
      %vm918 = vcmask 257024
      %v919 = vsel %vm918, %v914, 0.0
      %920 = vadd.xlane.f32.xlu0 %v919
      %v921 = vpop.xlane.xlu0 %920
      %v922 = vrcp.pop 32.0
      %v923 = vmul.f32 32.0, %v922
      %v924 = vsub.f32 1.0, %v923
      %v925 = vmul.f32 %v922, %v924
      %v926 = vadd.f32 %v922, %v925
      %vm927 = vweird.f32 %v922
      %v928 = vsel %vm927, %v922, %v926
      %v929 = vmul.f32 %v917, %v928
      %v930 = vmul.f32 %v921, %v928
      %v931 = vsub.f32 %v913, %v929
      %v932 = vsub.f32 %v914, %v930
      %v933 = vmul.f32 %v931, %v931
      %v934 = vmul.f32 %v932, %v932
      %v935 = vsel %vm498, %v933, 0.0
      %936 = vadd.xlane.f32.xlu0 %v935
      %v937 = vpop.xlane.xlu0 %936
      %v938 = vsel %vm918, %v934, 0.0
      %939 = vadd.xlane.f32.xlu0 %v938
      %v940 = vpop.xlane.xlu0 %939
      %v941 = vmul.f32 %v937, %v928
      %v942 = vmul.f32 %v940, %v928
      %v943 = vadd.f32 %v941, 1e-05
      %v944 = vadd.f32 %v942, 1e-05
      %v945 = vrsqrt.pop %v943
      %v946 = vmul.f32 %v945, %v943
      %v947 = vmul.f32 %v946, %v945
      %v948 = vmul.f32 0.5, %v947
      %v949 = vsub.f32 1.5, %v948
      %v950 = vmul.f32 %v945, %v949
      %vm951 = vweird.f32 %v943
      %vm952 = vweird.f32 %v945
      %vm953 = vmor %vm951, %vm952
      %v954 = vsel %vm953, %v945, %v950
      %v955 = vrsqrt.pop %v944
      %v956 = vmul.f32 %v955, %v944
      %v957 = vmul.f32 %v956, %v955
      %v958 = vmul.f32 0.5, %v957
      %v959 = vsub.f32 1.5, %v958
      %v960 = vmul.f32 %v955, %v959
      %vm961 = vweird.f32 %v944
      %vm962 = vweird.f32 %v955
      %vm963 = vmor %vm961, %vm962
      %v964 = vsel %vm963, %v955, %v960
      %v965 = vmul.f32 %v931, %v954
      %v966 = vmul.f32 %v932, %v964
      %v968 = vperm.slane %v464, 0
      %v970 = vmul.f32 %v965, %v968
      %v971 = vmul.f32 %v966, %v968
      %v973 = vperm.slane %v465, 0
      %v975 = vadd.f32 %v970, %v973
      %v976 = vadd.f32 %v971, %v973
      %v977 = vpack.c.bf16 %v976, %v975
      %v979 = vperm.slane %v470, 0
      %v985 = vunpack.c.l.b16 %v466
      %v986 = vunpack.c.l.b16 %v467
      %v987 = vunpack.c.l.b16 %v468
      %v988 = vunpack.c.l.b16 %v469
      %v989 = vpack.c.b16 %v986, %v985
      %v990 = vpack.c.b16 %v988, %v987
      %v994 = vsel %vm498, %v977, 0
      %996 = vmatpush.bf16.msra.mxu0 0
      %997 = vmatpush.bf16.msra.mxu0 0
      %998 = vmatpush.bf16.msra.mxu0 0
      %999 = vmatpush.bf16.msra.mxu0 0
      %1000 = vmatpush.bf16.msra.mxu0 0
      %1001 = vmatpush.bf16.msra.mxu0 0
      %1002 = vmatpush.bf16.msra.mxu0 %v990
      %1003 = vmatpush.bf16.msra.mxu0 %v989
      %1004 = vmatmul.bf16.gmra.mxu0 %v994
      %v1005 = vpop.f32.mrf.mxu0
      %v1006 = vadd.f32 %v979, %v1005
      %v1007 = vpop.f32.mrf.mxu0
      %v1008 = vadd.f32 %v979, %v1007
      %1009 = vdwg.mxu0
      %v1010 = vmax.f32 %v1006, 0.0
      %v1011 = vmax.f32 %v1008, 0.0
      %v1012 = vpack.c.bf16 %v1011, %v1010
      %v1014 = vperm.slane %v479, 0
      %v1024 = vunpack.c.l.b16 %v471
      %v1025 = vunpack.c.l.b16 %v472
      %v1026 = vunpack.c.l.b16 %v473
      %v1027 = vunpack.c.l.b16 %v474
      %v1028 = vunpack.c.l.b16 %v475
      %v1029 = vunpack.c.l.b16 %v476
      %v1030 = vunpack.c.l.b16 %v477
      %v1031 = vunpack.c.l.b16 %v478
      %v1032 = vpack.c.b16 %v1025, %v1024
      %v1033 = vpack.c.b16 %v1027, %v1026
      %v1034 = vpack.c.b16 %v1029, %v1028
      %v1035 = vpack.c.b16 %v1031, %v1030
      %vm1040 = vcmask 523264
      %v1042 = vsel %vm1040, %v1012, 0
      %1044 = vmatpush.bf16.msra.mxu0 0
      %1045 = vmatpush.bf16.msra.mxu0 0
      %1046 = vmatpush.bf16.msra.mxu0 0
      %1047 = vmatpush.bf16.msra.mxu0 0
      %1048 = vmatpush.bf16.msra.mxu0 %v1035
      %1049 = vmatpush.bf16.msra.mxu0 %v1034
      %1050 = vmatpush.bf16.msra.mxu0 %v1033
      %1051 = vmatpush.bf16.msra.mxu0 %v1032
      %1052 = vmatmul.bf16.gmra.mxu0 %v1042
      %v1053 = vpop.f32.mrf.mxu0
      %v1054 = vadd.f32 %v1014, %v1053
      %v1055 = vpop.f32.mrf.mxu0
      %v1056 = vadd.f32 %v1014, %v1055
      %1057 = vdwg.mxu0
      %v1058 = vadd.f32 %v975, %v1054
      %v1059 = vadd.f32 %v976, %v1056
      %v1060 = vsel %vm498, %v1058, 0.0
      %1061 = vadd.xlane.f32.xlu0 %v1060
      %v1062 = vpop.xlane.xlu0 %1061
      %v1063 = vsel %vm918, %v1059, 0.0
      %1064 = vadd.xlane.f32.xlu0 %v1063
      %v1065 = vpop.xlane.xlu0 %1064
      %v1066 = vmul.f32 %v1062, %v928
      %v1067 = vmul.f32 %v1065, %v928
      %v1068 = vsub.f32 %v1058, %v1066
      %v1069 = vsub.f32 %v1059, %v1067
      %v1070 = vmul.f32 %v1068, %v1068
      %v1071 = vmul.f32 %v1069, %v1069
      %v1072 = vsel %vm498, %v1070, 0.0
      %1073 = vadd.xlane.f32.xlu0 %v1072
      %v1074 = vpop.xlane.xlu0 %1073
      %v1075 = vsel %vm918, %v1071, 0.0
      %1076 = vadd.xlane.f32.xlu0 %v1075
      %v1077 = vpop.xlane.xlu0 %1076
      %v1078 = vmul.f32 %v1074, %v928
      %v1079 = vmul.f32 %v1077, %v928
      %v1080 = vadd.f32 %v1078, 1e-05
      %v1081 = vadd.f32 %v1079, 1e-05
      %v1082 = vrsqrt.pop %v1080
      %v1083 = vmul.f32 %v1082, %v1080
      %v1084 = vmul.f32 %v1083, %v1082
      %v1085 = vmul.f32 0.5, %v1084
      %v1086 = vsub.f32 1.5, %v1085
      %v1087 = vmul.f32 %v1082, %v1086
      %vm1088 = vweird.f32 %v1080
      %vm1089 = vweird.f32 %v1082
      %vm1090 = vmor %vm1088, %vm1089
      %v1091 = vsel %vm1090, %v1082, %v1087
      %v1092 = vrsqrt.pop %v1081
      %v1093 = vmul.f32 %v1092, %v1081
      %v1094 = vmul.f32 %v1093, %v1092
      %v1095 = vmul.f32 0.5, %v1094
      %v1096 = vsub.f32 1.5, %v1095
      %v1097 = vmul.f32 %v1092, %v1096
      %vm1098 = vweird.f32 %v1081
      %vm1099 = vweird.f32 %v1092
      %vm1100 = vmor %vm1098, %vm1099
      %v1101 = vsel %vm1100, %v1092, %v1097
      %v1102 = vmul.f32 %v1068, %v1091
      %v1103 = vmul.f32 %v1069, %v1101
      %v1105 = vperm.slane %v480, 0
      %v1107 = vmul.f32 %v1102, %v1105
      %v1108 = vmul.f32 %v1103, %v1105
      %v1110 = vperm.slane %v481, 0
      %v1112 = vadd.f32 %v1107, %v1110
      %v1113 = vadd.f32 %v1108, %v1110
      %1114 = vst.msk [vmem:[%s449] sm:$0xff] %vm498, %v1112
      %1115 = vst.msk [vmem:[%s449 + $0x8] sm:$0xf] %vm918, %v1113
      %p1116 = scmp.lt.s32.totalorder %s33, 1
      %s1117 = scalar_select %p1116, %s33, 1
      %s1118 = smul.addr %s1117, 2
      %s1119 = smul.addr %s1118, 8
      %s1120 = scalar_lea.vmem %s14, %s1119
      // Predicated region
      $region73: #{kw_cascaded_branch_forward.3} parent=71 // pred_check
        %p1121 = pneg %p329
      $region74: #{kw_cascaded_branch_forward.3} parent=71 // pred_check_branch
        %1123 = sbr.rel (%p1121) target = $region76
      $region75: #{kw_cascaded_branch_forward.3} parent=71 // pred_region
        _
      $region76: #{kw_cascaded_branch_forward.3} parent=71 // pred_fallthru
        _
    $region72: #{kw_cascaded_branch_forward.3} parent=5 // pred_fallthru
      _
    %p1124 = scmp.le.s32.totalorder 2, %s28
    // Predicated region
    $region77: #{kw_cascaded_branch_forward.3} parent=5 // pred_check
      %p1125 = pneg %p1124
    $region78: #{kw_cascaded_branch_forward.3} parent=5 // pred_check_branch
      %1127 = sbr.rel (%p1125) target = $region80
    $region79: #{kw_cascaded_branch_forward.3} parent=5 // pred_region
      %s1128 = ssub.s32 %s28, 2
      // Predicated region
      $region81: #{kw_cascaded_branch_forward.3} parent=79 // pred_check
        %p1129 = pneg %p335
      $region82: #{kw_cascaded_branch_forward.3} parent=79 // pred_check_branch
        %1131 = sbr.rel (%p1129) target = $region84
      $region83: #{kw_cascaded_branch_forward.3} parent=79 // pred_region
        %p1132 = scmp.lt.s32.totalorder %s34, 1
        %s1133 = scalar_select %p1132, %s34, 1
        %s1134 = smul.addr %s1133, 2
        %s1135 = smul.addr %s1134, 8
        %s1136 = scalar_lea.vmem %s14, %s1135
      $region84: #{kw_cascaded_branch_forward.3} parent=79 // pred_fallthru
        _
    $region80: #{kw_cascaded_branch_forward.3} parent=5 // pred_fallthru
      _
  $region6: #{kw_cascaded_branch_forward.3} parent=0 // loop_footer
    %s32 = sadd.s32 1, %s28
  $region7: #{kw_cascaded_branch_forward.3} parent=0 // loop_footer_branch
    %27 = sbr.rel target = $region3
  $region8: #{kw_cascaded_branch_forward.3} parent=0 // loop_exit
    _

// kernel: kw_cascaded_branch_forward.5
$region0: #{kw_cascaded_branch_forward.5}
  #allocation0 [shape = 'u32[]', space=smem, size = 0x4, offset = 0x4, fixed_abs, tag = 'smem constant byte address 0x4 - core index']
  #allocation1 [shape = 'u32[72,128]{1,0:T(1,128)}', space=vmem, size = 0x9000, scoped, tag = 'internal scratch']
  %s0 = inlined_call_operand.vmem [shape: f32[2,6,32], index: 0, kind: input, shape index: {}]
  %s1 = inlined_call_operand.vmem [shape: bf16[32,96], index: 1, kind: input, shape index: {}]
  %s2 = inlined_call_operand.vmem [shape: f32[1,96], index: 2, kind: input, shape index: {}]
  %s3 = inlined_call_operand.vmem [shape: bf16[4,8,32], index: 3, kind: input, shape index: {}]
  %s4 = inlined_call_operand.vmem [shape: f32[1,32], index: 4, kind: input, shape index: {}]
  %s5 = inlined_call_operand.vmem [shape: f32[1,32], index: 5, kind: input, shape index: {}]
  %s6 = inlined_call_operand.vmem [shape: f32[1,32], index: 6, kind: input, shape index: {}]
  %s7 = inlined_call_operand.vmem [shape: bf16[32,64], index: 7, kind: input, shape index: {}]
  %s8 = inlined_call_operand.vmem [shape: f32[1,64], index: 8, kind: input, shape index: {}]
  %s9 = inlined_call_operand.vmem [shape: bf16[64,32], index: 9, kind: input, shape index: {}]
  %s10 = inlined_call_operand.vmem [shape: f32[1,32], index: 10, kind: input, shape index: {}]
  %s11 = inlined_call_operand.vmem [shape: f32[1,32], index: 11, kind: input, shape index: {}]
  %s12 = inlined_call_operand.vmem [shape: f32[1,32], index: 12, kind: input, shape index: {}]
  %s13 = inlined_call_operand.vmem [shape: f32[1,32], index: 13, kind: input, shape index: {}]
  %s14 = inlined_call_operand.vmem [shape: f32[1,32], index: 14, kind: input, shape index: {}]
  %s15 = inlined_call_operand.vmem [shape: bf16[32,32], index: 15, kind: input, shape index: {}]
  %s16 = inlined_call_operand.hbm [shape: f32[2,1,32], index: 16, kind: output, shape index: {}]
  %s17 = sld [smem:[#allocation0]]
  $region97: #{kw_cascaded_branch_forward.5} parent=0
    _
  %s19 = ssub.s32 1, %s17
  %s20 = scalar_select 0, %s19, %s17
  $region1: #{kw_cascaded_branch_forward.5} parent=0
    #allocation2 [shape = 'u8[1024]{0}', space=vmem, size = 0x400, scoped, tag = 'output window, operand 0']
    #allocation3 [shape = 's32[2]{0}', space=sflag, size = 0x8, scoped, tag = 'scoped memory for kw_cascaded_branch_forward.5']
    %21 = vsyncpa [#allocation3], 0
    %s22 = scalar_lea.sflag [#allocation3], 1
    %23 = vsyncpa %s22, 0
    loop: start=0, step=1, limit=4
    $region2: #{kw_cascaded_branch_forward.5} parent=1 // loop_pre_header
      _
    $region3: #{kw_cascaded_branch_forward.5} parent=1 // loop_header
      %s25 = sphi 0, %s29
      %p26 = scmp.ge.s32.totalorder %s25, 4
      %s35 = sphi 0, %s37
      %s38 = sphi 0, %s35
      %s39 = sphi 0, %s38
      %s55 = sphi 0, %s39
      %s59 = sphi 0, %s59
      %s61 = sphi 0, %s59
      %s62 = sphi 0, %s61
      %s76 = sphi 0, %s62
      %s80 = sphi 0, %s80
      %s82 = sphi 0, %s80
      %s83 = sphi 0, %s82
      %s97 = sphi 0, %s83
      %s101 = sphi 0, %s101
      %s103 = sphi 0, %s101
      %s104 = sphi 0, %s103
      %s118 = sphi 0, %s104
      %s122 = sphi 0, %s122
      %s124 = sphi 0, %s122
      %s125 = sphi 0, %s124
      %s139 = sphi 0, %s125
      %s143 = sphi 0, %s143
      %s145 = sphi 0, %s143
      %s146 = sphi 0, %s145
      %s160 = sphi 0, %s146
      %s164 = sphi 0, %s164
      %s166 = sphi 0, %s164
      %s167 = sphi 0, %s166
      %s181 = sphi 0, %s167
      %s185 = sphi 0, %s185
      %s187 = sphi 0, %s185
      %s188 = sphi 0, %s187
      %s202 = sphi 0, %s188
      %s206 = sphi 0, %s206
      %s208 = sphi 0, %s206
      %s209 = sphi 0, %s208
      %s223 = sphi 0, %s209
      %s227 = sphi 0, %s227
      %s229 = sphi 0, %s227
      %s230 = sphi 0, %s229
      %s244 = sphi 0, %s230
      %s248 = sphi 0, %s248
      %s250 = sphi 0, %s248
      %s251 = sphi 0, %s250
      %s265 = sphi 0, %s251
      %s269 = sphi 0, %s269
      %s271 = sphi 0, %s269
      %s272 = sphi 0, %s271
      %s286 = sphi 0, %s272
      %s290 = sphi 0, %s290
      %s292 = sphi 0, %s290
      %s293 = sphi 0, %s292
      %s307 = sphi 0, %s293
      %s311 = sphi 0, %s311
      %s313 = sphi 0, %s311
      %s314 = sphi 0, %s313
      %s328 = sphi 0, %s314
      %s332 = sphi 0, %s332
      %s334 = sphi 0, %s332
      %s335 = sphi 0, %s334
      %s349 = sphi 0, %s335
      %s353 = sphi 0, %s353
      %s355 = sphi 0, %s353
      %s356 = sphi 0, %s355
      %s370 = sphi 0, %s356
      %s376 = sphi 0, %s378
      %s379 = sphi 0, %s376
      %s380 = sphi 0, %s379
      %s396 = sphi 0, %s380
    $region4: #{kw_cascaded_branch_forward.5} parent=1 // loop_header_branch
      %28 = sbr.rel (%p26) target = $region8
    $region5: #{kw_cascaded_branch_forward.5} parent=1 // loop_body
      %s30 = ssub.s32 %s25, 1
      %s31 = ssub.s32 %s25, 2
      %s32 = sadd.s32 %s25, 1
      %s33 = ssub.s32 %s25, %s32
      %p34 = scmp.eq.s32.totalorder %s33, 0
      %s36 = sadd.s32 %s35, 1
      %s37 = scalar_select %p34, %s35, %s36
      %p40 = pneg %p34
      %p41 = scmp.eq.s32.totalorder %s25, 1
      %p42 = por %p40, %p41
      %p43 = scmp.ne.s32.totalorder %s35, %s38
      %p44 = scmp.eq.s32.totalorder %s25, 0
      %p45 = por %p43, %p44
      %p46 = scmp.ne.s32.totalorder %s35, %s38
      %p47 = scmp.eq.s32.totalorder %s30, 1
      %p48 = por %p46, %p47
      %p49 = scmp.ne.s32.totalorder %s38, %s39
      %p50 = scmp.eq.s32.totalorder %s30, 0
      %p51 = por %p49, %p50
      %p52 = scmp.ne.s32.totalorder %s38, %s39
      %p53 = scmp.eq.s32.totalorder %s31, 1
      %p54 = por %p52, %p53
      %p56 = scmp.ne.s32.totalorder %s39, %s55
      %p57 = scmp.eq.s32.totalorder %s31, 0
      %p58 = por %p56, %p57
      %s60 = sadd.s32 %s59, 1
      %p63 = scmp.eq.s32.totalorder %s25, 1
      %p64 = scmp.ne.s32.totalorder %s59, %s61
      %p65 = scmp.eq.s32.totalorder %s25, 0
      %p66 = por %p64, %p65
      %p67 = scmp.ne.s32.totalorder %s59, %s61
      %p68 = scmp.eq.s32.totalorder %s30, 1
      %p69 = por %p67, %p68
      %p70 = scmp.ne.s32.totalorder %s61, %s62
      %p71 = scmp.eq.s32.totalorder %s30, 0
      %p72 = por %p70, %p71
      %p73 = scmp.ne.s32.totalorder %s61, %s62
      %p74 = scmp.eq.s32.totalorder %s31, 1
      %p75 = por %p73, %p74
      %p77 = scmp.ne.s32.totalorder %s62, %s76
      %p78 = scmp.eq.s32.totalorder %s31, 0
      %p79 = por %p77, %p78
      %s81 = sadd.s32 %s80, 1
      %p84 = scmp.eq.s32.totalorder %s25, 1
      %p85 = scmp.ne.s32.totalorder %s80, %s82
      %p86 = scmp.eq.s32.totalorder %s25, 0
      %p87 = por %p85, %p86
      %p88 = scmp.ne.s32.totalorder %s80, %s82
      %p89 = scmp.eq.s32.totalorder %s30, 1
      %p90 = por %p88, %p89
      %p91 = scmp.ne.s32.totalorder %s82, %s83
      %p92 = scmp.eq.s32.totalorder %s30, 0
      %p93 = por %p91, %p92
      %p94 = scmp.ne.s32.totalorder %s82, %s83
      %p95 = scmp.eq.s32.totalorder %s31, 1
      %p96 = por %p94, %p95
      %p98 = scmp.ne.s32.totalorder %s83, %s97
      %p99 = scmp.eq.s32.totalorder %s31, 0
      %p100 = por %p98, %p99
      %s102 = sadd.s32 %s101, 1
      %p105 = scmp.eq.s32.totalorder %s25, 1
      %p106 = scmp.ne.s32.totalorder %s101, %s103
      %p107 = scmp.eq.s32.totalorder %s25, 0
      %p108 = por %p106, %p107
      %p109 = scmp.ne.s32.totalorder %s101, %s103
      %p110 = scmp.eq.s32.totalorder %s30, 1
      %p111 = por %p109, %p110
      %p112 = scmp.ne.s32.totalorder %s103, %s104
      %p113 = scmp.eq.s32.totalorder %s30, 0
      %p114 = por %p112, %p113
      %p115 = scmp.ne.s32.totalorder %s103, %s104
      %p116 = scmp.eq.s32.totalorder %s31, 1
      %p117 = por %p115, %p116
      %p119 = scmp.ne.s32.totalorder %s104, %s118
      %p120 = scmp.eq.s32.totalorder %s31, 0
      %p121 = por %p119, %p120
      %s123 = sadd.s32 %s122, 1
      %p126 = scmp.eq.s32.totalorder %s25, 1
      %p127 = scmp.ne.s32.totalorder %s122, %s124
      %p128 = scmp.eq.s32.totalorder %s25, 0
      %p129 = por %p127, %p128
      %p130 = scmp.ne.s32.totalorder %s122, %s124
      %p131 = scmp.eq.s32.totalorder %s30, 1
      %p132 = por %p130, %p131
      %p133 = scmp.ne.s32.totalorder %s124, %s125
      %p134 = scmp.eq.s32.totalorder %s30, 0
      %p135 = por %p133, %p134
      %p136 = scmp.ne.s32.totalorder %s124, %s125
      %p137 = scmp.eq.s32.totalorder %s31, 1
      %p138 = por %p136, %p137
      %p140 = scmp.ne.s32.totalorder %s125, %s139
      %p141 = scmp.eq.s32.totalorder %s31, 0
      %p142 = por %p140, %p141
      %s144 = sadd.s32 %s143, 1
      %p147 = scmp.eq.s32.totalorder %s25, 1
      %p148 = scmp.ne.s32.totalorder %s143, %s145
      %p149 = scmp.eq.s32.totalorder %s25, 0
      %p150 = por %p148, %p149
      %p151 = scmp.ne.s32.totalorder %s143, %s145
      %p152 = scmp.eq.s32.totalorder %s30, 1
      %p153 = por %p151, %p152
      %p154 = scmp.ne.s32.totalorder %s145, %s146
      %p155 = scmp.eq.s32.totalorder %s30, 0
      %p156 = por %p154, %p155
      %p157 = scmp.ne.s32.totalorder %s145, %s146
      %p158 = scmp.eq.s32.totalorder %s31, 1
      %p159 = por %p157, %p158
      %p161 = scmp.ne.s32.totalorder %s146, %s160
      %p162 = scmp.eq.s32.totalorder %s31, 0
      %p163 = por %p161, %p162
      %s165 = sadd.s32 %s164, 1
      %p168 = scmp.eq.s32.totalorder %s25, 1
      %p169 = scmp.ne.s32.totalorder %s164, %s166
      %p170 = scmp.eq.s32.totalorder %s25, 0
      %p171 = por %p169, %p170
      %p172 = scmp.ne.s32.totalorder %s164, %s166
      %p173 = scmp.eq.s32.totalorder %s30, 1
      %p174 = por %p172, %p173
      %p175 = scmp.ne.s32.totalorder %s166, %s167
      %p176 = scmp.eq.s32.totalorder %s30, 0
      %p177 = por %p175, %p176
      %p178 = scmp.ne.s32.totalorder %s166, %s167
      %p179 = scmp.eq.s32.totalorder %s31, 1
      %p180 = por %p178, %p179
      %p182 = scmp.ne.s32.totalorder %s167, %s181
      %p183 = scmp.eq.s32.totalorder %s31, 0
      %p184 = por %p182, %p183
      %s186 = sadd.s32 %s185, 1
      %p189 = scmp.eq.s32.totalorder %s25, 1
      %p190 = scmp.ne.s32.totalorder %s185, %s187
      %p191 = scmp.eq.s32.totalorder %s25, 0
      %p192 = por %p190, %p191
      %p193 = scmp.ne.s32.totalorder %s185, %s187
      %p194 = scmp.eq.s32.totalorder %s30, 1
      %p195 = por %p193, %p194
      %p196 = scmp.ne.s32.totalorder %s187, %s188
      %p197 = scmp.eq.s32.totalorder %s30, 0
      %p198 = por %p196, %p197
      %p199 = scmp.ne.s32.totalorder %s187, %s188
      %p200 = scmp.eq.s32.totalorder %s31, 1
      %p201 = por %p199, %p200
      %p203 = scmp.ne.s32.totalorder %s188, %s202
      %p204 = scmp.eq.s32.totalorder %s31, 0
      %p205 = por %p203, %p204
      %s207 = sadd.s32 %s206, 1
      %p210 = scmp.eq.s32.totalorder %s25, 1
      %p211 = scmp.ne.s32.totalorder %s206, %s208
      %p212 = scmp.eq.s32.totalorder %s25, 0
      %p213 = por %p211, %p212
      %p214 = scmp.ne.s32.totalorder %s206, %s208
      %p215 = scmp.eq.s32.totalorder %s30, 1
      %p216 = por %p214, %p215
      %p217 = scmp.ne.s32.totalorder %s208, %s209
      %p218 = scmp.eq.s32.totalorder %s30, 0
      %p219 = por %p217, %p218
      %p220 = scmp.ne.s32.totalorder %s208, %s209
      %p221 = scmp.eq.s32.totalorder %s31, 1
      %p222 = por %p220, %p221
      %p224 = scmp.ne.s32.totalorder %s209, %s223
      %p225 = scmp.eq.s32.totalorder %s31, 0
      %p226 = por %p224, %p225
      %s228 = sadd.s32 %s227, 1
      %p231 = scmp.eq.s32.totalorder %s25, 1
      %p232 = scmp.ne.s32.totalorder %s227, %s229
      %p233 = scmp.eq.s32.totalorder %s25, 0
      %p234 = por %p232, %p233
      %p235 = scmp.ne.s32.totalorder %s227, %s229
      %p236 = scmp.eq.s32.totalorder %s30, 1
      %p237 = por %p235, %p236
      %p238 = scmp.ne.s32.totalorder %s229, %s230
      %p239 = scmp.eq.s32.totalorder %s30, 0
      %p240 = por %p238, %p239
      %p241 = scmp.ne.s32.totalorder %s229, %s230
      %p242 = scmp.eq.s32.totalorder %s31, 1
      %p243 = por %p241, %p242
      %p245 = scmp.ne.s32.totalorder %s230, %s244
      %p246 = scmp.eq.s32.totalorder %s31, 0
      %p247 = por %p245, %p246
      %s249 = sadd.s32 %s248, 1
      %p252 = scmp.eq.s32.totalorder %s25, 1
      %p253 = scmp.ne.s32.totalorder %s248, %s250
      %p254 = scmp.eq.s32.totalorder %s25, 0
      %p255 = por %p253, %p254
      %p256 = scmp.ne.s32.totalorder %s248, %s250
      %p257 = scmp.eq.s32.totalorder %s30, 1
      %p258 = por %p256, %p257
      %p259 = scmp.ne.s32.totalorder %s250, %s251
      %p260 = scmp.eq.s32.totalorder %s30, 0
      %p261 = por %p259, %p260
      %p262 = scmp.ne.s32.totalorder %s250, %s251
      %p263 = scmp.eq.s32.totalorder %s31, 1
      %p264 = por %p262, %p263
      %p266 = scmp.ne.s32.totalorder %s251, %s265
      %p267 = scmp.eq.s32.totalorder %s31, 0
      %p268 = por %p266, %p267
      %s270 = sadd.s32 %s269, 1
      %p273 = scmp.eq.s32.totalorder %s25, 1
      %p274 = scmp.ne.s32.totalorder %s269, %s271
      %p275 = scmp.eq.s32.totalorder %s25, 0
      %p276 = por %p274, %p275
      %p277 = scmp.ne.s32.totalorder %s269, %s271
      %p278 = scmp.eq.s32.totalorder %s30, 1
      %p279 = por %p277, %p278
      %p280 = scmp.ne.s32.totalorder %s271, %s272
      %p281 = scmp.eq.s32.totalorder %s30, 0
      %p282 = por %p280, %p281
      %p283 = scmp.ne.s32.totalorder %s271, %s272
      %p284 = scmp.eq.s32.totalorder %s31, 1
      %p285 = por %p283, %p284
      %p287 = scmp.ne.s32.totalorder %s272, %s286
      %p288 = scmp.eq.s32.totalorder %s31, 0
      %p289 = por %p287, %p288
      %s291 = sadd.s32 %s290, 1
      %p294 = scmp.eq.s32.totalorder %s25, 1
      %p295 = scmp.ne.s32.totalorder %s290, %s292
      %p296 = scmp.eq.s32.totalorder %s25, 0
      %p297 = por %p295, %p296
      %p298 = scmp.ne.s32.totalorder %s290, %s292
      %p299 = scmp.eq.s32.totalorder %s30, 1
      %p300 = por %p298, %p299
      %p301 = scmp.ne.s32.totalorder %s292, %s293
      %p302 = scmp.eq.s32.totalorder %s30, 0
      %p303 = por %p301, %p302
      %p304 = scmp.ne.s32.totalorder %s292, %s293
      %p305 = scmp.eq.s32.totalorder %s31, 1
      %p306 = por %p304, %p305
      %p308 = scmp.ne.s32.totalorder %s293, %s307
      %p309 = scmp.eq.s32.totalorder %s31, 0
      %p310 = por %p308, %p309
      %s312 = sadd.s32 %s311, 1
      %p315 = scmp.eq.s32.totalorder %s25, 1
      %p316 = scmp.ne.s32.totalorder %s311, %s313
      %p317 = scmp.eq.s32.totalorder %s25, 0
      %p318 = por %p316, %p317
      %p319 = scmp.ne.s32.totalorder %s311, %s313
      %p320 = scmp.eq.s32.totalorder %s30, 1
      %p321 = por %p319, %p320
      %p322 = scmp.ne.s32.totalorder %s313, %s314
      %p323 = scmp.eq.s32.totalorder %s30, 0
      %p324 = por %p322, %p323
      %p325 = scmp.ne.s32.totalorder %s313, %s314
      %p326 = scmp.eq.s32.totalorder %s31, 1
      %p327 = por %p325, %p326
      %p329 = scmp.ne.s32.totalorder %s314, %s328
      %p330 = scmp.eq.s32.totalorder %s31, 0
      %p331 = por %p329, %p330
      %s333 = sadd.s32 %s332, 1
      %p336 = scmp.eq.s32.totalorder %s25, 1
      %p337 = scmp.ne.s32.totalorder %s332, %s334
      %p338 = scmp.eq.s32.totalorder %s25, 0
      %p339 = por %p337, %p338
      %p340 = scmp.ne.s32.totalorder %s332, %s334
      %p341 = scmp.eq.s32.totalorder %s30, 1
      %p342 = por %p340, %p341
      %p343 = scmp.ne.s32.totalorder %s334, %s335
      %p344 = scmp.eq.s32.totalorder %s30, 0
      %p345 = por %p343, %p344
      %p346 = scmp.ne.s32.totalorder %s334, %s335
      %p347 = scmp.eq.s32.totalorder %s31, 1
      %p348 = por %p346, %p347
      %p350 = scmp.ne.s32.totalorder %s335, %s349
      %p351 = scmp.eq.s32.totalorder %s31, 0
      %p352 = por %p350, %p351
      %s354 = sadd.s32 %s353, 1
      %p357 = scmp.eq.s32.totalorder %s25, 1
      %p358 = scmp.ne.s32.totalorder %s353, %s355
      %p359 = scmp.eq.s32.totalorder %s25, 0
      %p360 = por %p358, %p359
      %p361 = scmp.ne.s32.totalorder %s353, %s355
      %p362 = scmp.eq.s32.totalorder %s30, 1
      %p363 = por %p361, %p362
      %p364 = scmp.ne.s32.totalorder %s355, %s356
      %p365 = scmp.eq.s32.totalorder %s30, 0
      %p366 = por %p364, %p365
      %p367 = scmp.ne.s32.totalorder %s355, %s356
      %p368 = scmp.eq.s32.totalorder %s31, 1
      %p369 = por %p367, %p368
      %p371 = scmp.ne.s32.totalorder %s356, %s370
      %p372 = scmp.eq.s32.totalorder %s31, 0
      %p373 = por %p371, %p372
      %s374 = ssub.s32 %s25, %s32
      %p375 = scmp.eq.s32.totalorder %s374, 0
      %s377 = sadd.s32 %s376, 1
      %s378 = scalar_select %p375, %s376, %s377
      %p381 = pneg %p375
      %p382 = scmp.eq.s32.totalorder %s25, 1
      %p383 = por %p381, %p382
      %p384 = scmp.ne.s32.totalorder %s376, %s379
      %p385 = scmp.eq.s32.totalorder %s25, 0
      %p386 = por %p384, %p385
      %p387 = scmp.ne.s32.totalorder %s376, %s379
      %p388 = scmp.eq.s32.totalorder %s30, 1
      %p389 = por %p387, %p388
      %p390 = scmp.ne.s32.totalorder %s379, %s380
      %p391 = scmp.eq.s32.totalorder %s30, 0
      %p392 = por %p390, %p391
      %p393 = scmp.ne.s32.totalorder %s379, %s380
      %p394 = scmp.eq.s32.totalorder %s31, 1
      %p395 = por %p393, %p394
      %p397 = scmp.ne.s32.totalorder %s380, %s396
      %p398 = scmp.eq.s32.totalorder %s31, 0
      %p399 = por %p397, %p398
      %p400 = scmp.le.s32.totalorder 1, %s25
      %p401 = scmp.lt.s32.totalorder %s25, 3
      %p402 = pnand %p400, %p401
      %p403 = pneg %p402
      // Predicated region
      $region9: #{kw_cascaded_branch_forward.5} parent=5 // pred_check
        _
      $region10: #{kw_cascaded_branch_forward.5} parent=5 // pred_check_branch
        %405 = sbr.rel (%p402) target = $region12
      $region11: #{kw_cascaded_branch_forward.5} parent=5 // pred_region
        %s406 = ssub.s32 %s25, 1
        // Predicated region
        $region13: #{kw_cascaded_branch_forward.5} parent=11 // pred_check
          %p407 = pneg %p72
        $region14: #{kw_cascaded_branch_forward.5} parent=11 // pred_check_branch
          %409 = sbr.rel (%p407) target = $region16
        $region15: #{kw_cascaded_branch_forward.5} parent=11 // pred_region
          _
        $region16: #{kw_cascaded_branch_forward.5} parent=11 // pred_fallthru
          _
        // Predicated region
        $region17: #{kw_cascaded_branch_forward.5} parent=11 // pred_check
          %p410 = pneg %p93
        $region18: #{kw_cascaded_branch_forward.5} parent=11 // pred_check_branch
          %412 = sbr.rel (%p410) target = $region20
        $region19: #{kw_cascaded_branch_forward.5} parent=11 // pred_region
          _
        $region20: #{kw_cascaded_branch_forward.5} parent=11 // pred_fallthru
          _
        // Predicated region
        $region21: #{kw_cascaded_branch_forward.5} parent=11 // pred_check
          %p413 = pneg %p114
        $region22: #{kw_cascaded_branch_forward.5} parent=11 // pred_check_branch
          %415 = sbr.rel (%p413) target = $region24
        $region23: #{kw_cascaded_branch_forward.5} parent=11 // pred_region
          _
        $region24: #{kw_cascaded_branch_forward.5} parent=11 // pred_fallthru
          _
        // Predicated region
        $region25: #{kw_cascaded_branch_forward.5} parent=11 // pred_check
          %p416 = pneg %p135
        $region26: #{kw_cascaded_branch_forward.5} parent=11 // pred_check_branch
          %418 = sbr.rel (%p416) target = $region28
        $region27: #{kw_cascaded_branch_forward.5} parent=11 // pred_region
          _
        $region28: #{kw_cascaded_branch_forward.5} parent=11 // pred_fallthru
          _
        // Predicated region
        $region29: #{kw_cascaded_branch_forward.5} parent=11 // pred_check
          %p419 = pneg %p156
        $region30: #{kw_cascaded_branch_forward.5} parent=11 // pred_check_branch
          %421 = sbr.rel (%p419) target = $region32
        $region31: #{kw_cascaded_branch_forward.5} parent=11 // pred_region
          _
        $region32: #{kw_cascaded_branch_forward.5} parent=11 // pred_fallthru
          _
        // Predicated region
        $region33: #{kw_cascaded_branch_forward.5} parent=11 // pred_check
          %p422 = pneg %p177
        $region34: #{kw_cascaded_branch_forward.5} parent=11 // pred_check_branch
          %424 = sbr.rel (%p422) target = $region36
        $region35: #{kw_cascaded_branch_forward.5} parent=11 // pred_region
          _
        $region36: #{kw_cascaded_branch_forward.5} parent=11 // pred_fallthru
          _
        // Predicated region
        $region37: #{kw_cascaded_branch_forward.5} parent=11 // pred_check
          %p425 = pneg %p198
        $region38: #{kw_cascaded_branch_forward.5} parent=11 // pred_check_branch
          %427 = sbr.rel (%p425) target = $region40
        $region39: #{kw_cascaded_branch_forward.5} parent=11 // pred_region
          _
        $region40: #{kw_cascaded_branch_forward.5} parent=11 // pred_fallthru
          _
        // Predicated region
        $region41: #{kw_cascaded_branch_forward.5} parent=11 // pred_check
          %p428 = pneg %p219
        $region42: #{kw_cascaded_branch_forward.5} parent=11 // pred_check_branch
          %430 = sbr.rel (%p428) target = $region44
        $region43: #{kw_cascaded_branch_forward.5} parent=11 // pred_region
          _
        $region44: #{kw_cascaded_branch_forward.5} parent=11 // pred_fallthru
          _
        // Predicated region
        $region45: #{kw_cascaded_branch_forward.5} parent=11 // pred_check
          %p431 = pneg %p240
        $region46: #{kw_cascaded_branch_forward.5} parent=11 // pred_check_branch
          %433 = sbr.rel (%p431) target = $region48
        $region47: #{kw_cascaded_branch_forward.5} parent=11 // pred_region
          _
        $region48: #{kw_cascaded_branch_forward.5} parent=11 // pred_fallthru
          _
        // Predicated region
        $region49: #{kw_cascaded_branch_forward.5} parent=11 // pred_check
          %p434 = pneg %p261
        $region50: #{kw_cascaded_branch_forward.5} parent=11 // pred_check_branch
          %436 = sbr.rel (%p434) target = $region52
        $region51: #{kw_cascaded_branch_forward.5} parent=11 // pred_region
          _
        $region52: #{kw_cascaded_branch_forward.5} parent=11 // pred_fallthru
          _
        // Predicated region
        $region53: #{kw_cascaded_branch_forward.5} parent=11 // pred_check
          %p437 = pneg %p282
        $region54: #{kw_cascaded_branch_forward.5} parent=11 // pred_check_branch
          %439 = sbr.rel (%p437) target = $region56
        $region55: #{kw_cascaded_branch_forward.5} parent=11 // pred_region
          _
        $region56: #{kw_cascaded_branch_forward.5} parent=11 // pred_fallthru
          _
        // Predicated region
        $region57: #{kw_cascaded_branch_forward.5} parent=11 // pred_check
          %p440 = pneg %p303
        $region58: #{kw_cascaded_branch_forward.5} parent=11 // pred_check_branch
          %442 = sbr.rel (%p440) target = $region60
        $region59: #{kw_cascaded_branch_forward.5} parent=11 // pred_region
          _
        $region60: #{kw_cascaded_branch_forward.5} parent=11 // pred_fallthru
          _
        // Predicated region
        $region61: #{kw_cascaded_branch_forward.5} parent=11 // pred_check
          %p443 = pneg %p324
        $region62: #{kw_cascaded_branch_forward.5} parent=11 // pred_check_branch
          %445 = sbr.rel (%p443) target = $region64
        $region63: #{kw_cascaded_branch_forward.5} parent=11 // pred_region
          _
        $region64: #{kw_cascaded_branch_forward.5} parent=11 // pred_fallthru
          _
        // Predicated region
        $region65: #{kw_cascaded_branch_forward.5} parent=11 // pred_check
          %p446 = pneg %p345
        $region66: #{kw_cascaded_branch_forward.5} parent=11 // pred_check_branch
          %448 = sbr.rel (%p446) target = $region68
        $region67: #{kw_cascaded_branch_forward.5} parent=11 // pred_region
          _
        $region68: #{kw_cascaded_branch_forward.5} parent=11 // pred_fallthru
          _
        // Predicated region
        $region69: #{kw_cascaded_branch_forward.5} parent=11 // pred_check
          %p449 = pneg %p366
        $region70: #{kw_cascaded_branch_forward.5} parent=11 // pred_check_branch
          %451 = sbr.rel (%p449) target = $region72
        $region71: #{kw_cascaded_branch_forward.5} parent=11 // pred_region
          _
        $region72: #{kw_cascaded_branch_forward.5} parent=11 // pred_fallthru
          _
      $region12: #{kw_cascaded_branch_forward.5} parent=5 // pred_fallthru
        _
      %p452 = scmp.lt.s32.totalorder %s25, 2
      // Predicated region
      $region73: #{kw_cascaded_branch_forward.5} parent=5 // pred_check
        %p453 = pneg %p452
      $region74: #{kw_cascaded_branch_forward.5} parent=5 // pred_check_branch
        %455 = sbr.rel (%p453) target = $region76
      $region75: #{kw_cascaded_branch_forward.5} parent=5 // pred_region
        // Predicated region
        $region77: #{kw_cascaded_branch_forward.5} parent=75 // pred_check
          %p456 = pneg %p45
        $region78: #{kw_cascaded_branch_forward.5} parent=75 // pred_check_branch
          %458 = sbr.rel (%p456) target = $region80
        $region79: #{kw_cascaded_branch_forward.5} parent=75 // pred_region
          %p459 = scmp.lt.s32.totalorder %s25, 1
          %s460 = scalar_select %p459, %s25, 1
          %s461 = smul.addr %s460, 8
          %s462 = scalar_lea.vmem %s0, %s461
        $region80: #{kw_cascaded_branch_forward.5} parent=75 // pred_fallthru
          _
      $region76: #{kw_cascaded_branch_forward.5} parent=5 // pred_fallthru
        _
      %p463 = scmp.le.s32.totalorder 1, %s25
      %p464 = scmp.lt.s32.totalorder %s25, 3
      %p465 = pnand %p463, %p464
      %p466 = pneg %p465
      // Predicated region
      $region81: #{kw_cascaded_branch_forward.5} parent=5 // pred_check
        _
      $region82: #{kw_cascaded_branch_forward.5} parent=5 // pred_check_branch
        %468 = sbr.rel (%p465) target = $region84
      $region83: #{kw_cascaded_branch_forward.5} parent=5 // pred_region
        %s469 = ssub.s32 %s25, 1
        %p470 = scmp.lt.s32.totalorder %s30, 1
        %s471 = scalar_select %p470, %s30, 1
        %s472 = smul.addr %s471, 8
        %s473 = scalar_lea.vmem %s0, %s472
        %p474 = pneg %p51
        %p475 = pneg %p48
        %p476 = pneg %p72
        %p477 = pneg %p69
        %p478 = pneg %p93
        %p479 = pneg %p90
        %p480 = pneg %p114
        %p481 = pneg %p111
        %p482 = pneg %p135
        %p483 = pneg %p132
        %p484 = pneg %p156
        %p485 = pneg %p153
        %p486 = pneg %p177
        %p487 = pneg %p174
        %p488 = pneg %p198
        %p489 = pneg %p195
        %p490 = pneg %p219
        %p491 = pneg %p216
        %p492 = pneg %p240
        %p493 = pneg %p237
        %p494 = pneg %p261
        %p495 = pneg %p258
        %p496 = pneg %p282
        %p497 = pneg %p279
        %p498 = pneg %p303
        %p499 = pneg %p300
        %p500 = pneg %p324
        %p501 = pneg %p321
        %p502 = pneg %p345
        %p503 = pneg %p342
        %p504 = pneg %p366
        %p505 = pneg %p363
        %p506 = pneg %p392
        %p507 = pneg %p389
        %s508 = sand.u32 %s379, 1
        %s509 = scalar_lea.sflag [#allocation3], %s508
        %s510 = sand.u32 %s379, 1
        %s511 = scalar_lea.vmem [#allocation2], %s510
        %p512 = scmp.lt.s32.totalorder %s30, 1
        %s513 = scalar_select %p512, %s30, 1
        %s514 = smul.addr %s513, 8
        %s515 = scalar_lea.vmem %s0, %s514
        %v517 = vld [vmem:[%s515] sm:$0x3f]
        %v518 = vlaneseq
        %v519 = vshrl.u32 %v518, 7
        %v520 = vlaneseq
        %v521 = vand.u32 %v520, 127
        %vm522 = vcmp.le.s32.totalorder %v521, %v519
        %v523 = vld [vmem:[%s1] sm:$0xf]
        %v524 = vld [vmem:[%s1 + $0x4] sm:$0xf]
        %v525 = vld [vmem:[%s1 + $0x8] sm:$0xf]
        %v526 = vld [vmem:[%s1 + $0xc] sm:$0xf]
        %v527 = vld [vmem:[%s2] sm:$0x1]
        %v528 = vld [vmem:[%s4] sm:$0x1]
        %v529 = vld [vmem:[%s5] sm:$0x1]
        %v530 = vld [vmem:[%s6] sm:$0x1]
        %v531 = vld [vmem:[%s7] sm:$0xf]
        %v532 = vld [vmem:[%s7 + $0x4] sm:$0xf]
        %v533 = vld [vmem:[%s7 + $0x8] sm:$0xf]
        %v534 = vld [vmem:[%s7 + $0xc] sm:$0xf]
        %v535 = vld [vmem:[%s8] sm:$0x1]
        %v536 = vld [vmem:[%s9] sm:$0xf]
        %v537 = vld [vmem:[%s9 + $0x4] sm:$0xf]
        %v538 = vld [vmem:[%s9 + $0x8] sm:$0xf]
        %v539 = vld [vmem:[%s9 + $0xc] sm:$0xf]
        %v540 = vld [vmem:[%s9 + $0x10] sm:$0xf]
        %v541 = vld [vmem:[%s9 + $0x14] sm:$0xf]
        %v542 = vld [vmem:[%s9 + $0x18] sm:$0xf]
        %v543 = vld [vmem:[%s9 + $0x1c] sm:$0xf]
        %v544 = vld [vmem:[%s10] sm:$0x1]
        %v545 = vld [vmem:[%s11] sm:$0x1]
        %v546 = vld [vmem:[%s12] sm:$0x1]
        %v547 = vpack.c.bf16 %v517, %v517
        %v549 = vperm.slane %v527, 0
        %v555 = vunpack.c.l.b16 %v523
        %v556 = vunpack.c.l.b16 %v524
        %v557 = vunpack.c.l.b16 %v525
        %v558 = vunpack.c.l.b16 %v526
        %v559 = vpack.c.b16 %v556, %v555
        %v560 = vpack.c.b16 %v558, %v557
        %vm563 = vcmask 261120
        %v565 = vsel %vm563, %v547, 0
        %567 = vmatpush.bf16.msra.mxu0 0
        %568 = vmatpush.bf16.msra.mxu0 0
        %569 = vmatpush.bf16.msra.mxu0 0
        %570 = vmatpush.bf16.msra.mxu0 0
        %571 = vmatpush.bf16.msra.mxu0 0
        %572 = vmatpush.bf16.msra.mxu0 0
        %573 = vmatpush.bf16.msra.mxu0 %v560
        %574 = vmatpush.bf16.msra.mxu0 %v559
        %575 = vmatmul.bf16.gmra.mxu0 %v565
        %v576 = vpop.f32.mrf.mxu0
        %v577 = vadd.f32 %v549, %v576
        %v578 = vpop.f32.mrf.mxu0
        %579 = vdwg.mxu0
        %v580 = vpack.c.bf16 %v577, %v577
        %582 = vrot.lane.b32.xlu0 %v580, 96
        %v583 = vpop.permute.xlu0 %582
        %vm584 = vcmask 64512
        %v586 = vsel %vm584, %v580, 0
        %v589 = vsel %vm584, %v583, 0
        %591 = vmatpush.bf16.xpose.msra.mxu0 0
        %592 = vmatpush.bf16.xpose.msra.mxu0 0
        %593 = vmatpush.bf16.xpose.msra.mxu0 0
        %594 = vmatpush.bf16.xpose.msra.mxu0 0
        %595 = vmatpush.bf16.xpose.msra.mxu0 0
        %596 = vmatpush.bf16.xpose.msra.mxu0 0
        %597 = vmatpush.bf16.xpose.msra.mxu0 0
        %598 = vmatpush.bf16.xpose.msra.mxu0 %v589
        %599 = vmatmul.bf16.gmra.mxu0 %v586
        %v600 = vpop.f32.mrf.mxu0
        %v601 = vadd.f32 0.0, %v600
        %v602 = vpop.f32.mrf.mxu0
        %603 = vdwg.mxu0
        %v604 = vmul.f32 %v601, 0.35355338
        %v605 = vsel %vm522, %v604, -1e+09
        %vm606 = vcmask 46080
        %v607 = vsel %vm606, %v605, -inf
        %608 = vmax.xlane.f32.xlu0 %v607
        %v609 = vpop.xlane.xlu0 %608
        %v610 = vsub.f32 %v605, %v609
        %v611 = vmul.f32 %v610, 1.442695
        %v612 = vpow.pop %v611
        %v613 = vsel %vm606, %v612, 0.0
        %614 = vadd.xlane.f32.xlu0 %v613
        %v615 = vpop.xlane.xlu0 %614
        %v616 = vrcp.pop %v615
        %v617 = vmul.f32 %v612, %v616
        %v618 = vpack.c.bf16 %v617, %v617
        %619 = vrot.lane.b32.xlu0 %v580, 64
        %v620 = vpop.permute.xlu0 %619
        %vm621 = vcmask 48128
        %v623 = vsel %vm621, %v618, 0
        %vm625 = vcmask 1042432
        %v627 = vsel %vm625, %v620, 0
        %629 = vmatpush.bf16.msra.mxu0 0
        %630 = vmatpush.bf16.msra.mxu0 0
        %631 = vmatpush.bf16.msra.mxu0 0
        %632 = vmatpush.bf16.msra.mxu0 0
        %633 = vmatpush.bf16.msra.mxu0 0
        %634 = vmatpush.bf16.msra.mxu0 0
        %635 = vmatpush.bf16.msra.mxu0 0
        %636 = vmatpush.bf16.msra.mxu0 %v627
        %637 = vmatmul.bf16.gmra.mxu0 %v623
        %v638 = vpop.f32.mrf.mxu0
        %v639 = vadd.f32 0.0, %v638
        %v640 = vpop.f32.mrf.mxu0
        %641 = vdwg.mxu0
        %v642 = vpack.c.bf16 %v639, %v639
        %v643 = vld [vmem:[%s3] sm:$0xf]
        %644 = vrot.lane.b32.xlu0 %v580, 120
        %v645 = vpop.permute.xlu0 %644
        %646 = vrot.lane.b32.xlu0 %v580, 88
        %v647 = vpop.permute.xlu0 %646
        %v649 = vsel %vm584, %v645, 0
        %v652 = vsel %vm584, %v647, 0
        %654 = vmatpush.bf16.xpose.msra.mxu0 0
        %655 = vmatpush.bf16.xpose.msra.mxu0 0
        %656 = vmatpush.bf16.xpose.msra.mxu0 0
        %657 = vmatpush.bf16.xpose.msra.mxu0 0
        %658 = vmatpush.bf16.xpose.msra.mxu0 0
        %659 = vmatpush.bf16.xpose.msra.mxu0 0
        %660 = vmatpush.bf16.xpose.msra.mxu0 0
        %661 = vmatpush.bf16.xpose.msra.mxu0 %v652
        %662 = vmatmul.bf16.gmra.mxu0 %v649
        %v663 = vpop.f32.mrf.mxu0
        %v664 = vadd.f32 0.0, %v663
        %v665 = vpop.f32.mrf.mxu0
        %666 = vdwg.mxu0
        %v667 = vmul.f32 %v664, 0.35355338
        %v668 = vsel %vm522, %v667, -1e+09
        %v669 = vsel %vm606, %v668, -inf
        %670 = vmax.xlane.f32.xlu0 %v669
        %v671 = vpop.xlane.xlu0 %670
        %v672 = vsub.f32 %v668, %v671
        %v673 = vmul.f32 %v672, 1.442695
        %v674 = vpow.pop %v673
        %v675 = vsel %vm606, %v674, 0.0
        %676 = vadd.xlane.f32.xlu0 %v675
        %v677 = vpop.xlane.xlu0 %676
        %v678 = vrcp.pop %v677
        %v679 = vmul.f32 %v674, %v678
        %v680 = vpack.c.bf16 %v679, %v679
        %681 = vrot.lane.b32.xlu0 %v580, 56
        %v682 = vpop.permute.xlu0 %681
        %v684 = vsel %vm621, %v680, 0
        %v687 = vsel %vm625, %v682, 0
        %689 = vmatpush.bf16.msra.mxu0 0
        %690 = vmatpush.bf16.msra.mxu0 0
        %691 = vmatpush.bf16.msra.mxu0 0
        %692 = vmatpush.bf16.msra.mxu0 0
        %693 = vmatpush.bf16.msra.mxu0 0
        %694 = vmatpush.bf16.msra.mxu0 0
        %695 = vmatpush.bf16.msra.mxu0 0
        %696 = vmatpush.bf16.msra.mxu0 %v687
        %697 = vmatmul.bf16.gmra.mxu0 %v684
        %v698 = vpop.f32.mrf.mxu0
        %v699 = vadd.f32 0.0, %v698
        %v700 = vpop.f32.mrf.mxu0
        %701 = vdwg.mxu0
        %v702 = vpack.c.bf16 %v699, %v699
        %s703 = scalar_lea.vmem %s3, 4
        %v704 = vld [vmem:[%s703] sm:$0xf]
        %v706 = vsel %vm584, %v702, 0
        %vm708 = vcmask 1043456
        %v710 = vsel %vm708, %v704, 0
        %712 = vmatpush.bf16.msra.mxu0 0
        %713 = vmatpush.bf16.msra.mxu0 0
        %714 = vmatpush.bf16.msra.mxu0 0
        %715 = vmatpush.bf16.msra.mxu0 0
        %716 = vmatpush.bf16.msra.mxu0 0
        %717 = vmatpush.bf16.msra.mxu0 0
        %718 = vmatpush.bf16.msra.mxu0 0
        %719 = vmatpush.bf16.msra.mxu0 %v710
        %720 = vmatmul.bf16.gmra.mxu0 %v706
        %v721 = vpop.f32.mrf.mxu0
        %v722 = vadd.f32 0.0, %v721
        %v723 = vpop.f32.mrf.mxu0
        %724 = vdwg.mxu0
        %v726 = vsel %vm584, %v642, 0
        %v729 = vsel %vm708, %v643, 0
        %731 = vmatpush.bf16.msra.mxu0 0
        %732 = vmatpush.bf16.msra.mxu0 0
        %733 = vmatpush.bf16.msra.mxu0 0
        %734 = vmatpush.bf16.msra.mxu0 0
        %735 = vmatpush.bf16.msra.mxu0 0
        %736 = vmatpush.bf16.msra.mxu0 0
        %737 = vmatpush.bf16.msra.mxu0 0
        %738 = vmatpush.bf16.msra.mxu0 %v729
        %739 = vmatmul.bf16.gmra.mxu0 %v726
        %v740 = vpop.f32.mrf.mxu0
        %v741 = vadd.f32 %v722, %v740
        %v742 = vpop.f32.mrf.mxu0
        %743 = vdwg.mxu0
        %744 = vrot.lane.b32.xlu0 %v580, 112
        %v745 = vpop.permute.xlu0 %744
        %746 = vrot.lane.b32.xlu0 %v580, 80
        %v747 = vpop.permute.xlu0 %746
        %v749 = vsel %vm584, %v745, 0
        %v752 = vsel %vm584, %v747, 0
        %754 = vmatpush.bf16.xpose.msra.mxu0 0
        %755 = vmatpush.bf16.xpose.msra.mxu0 0
        %756 = vmatpush.bf16.xpose.msra.mxu0 0
        %757 = vmatpush.bf16.xpose.msra.mxu0 0
        %758 = vmatpush.bf16.xpose.msra.mxu0 0
        %759 = vmatpush.bf16.xpose.msra.mxu0 0
        %760 = vmatpush.bf16.xpose.msra.mxu0 0
        %761 = vmatpush.bf16.xpose.msra.mxu0 %v752
        %762 = vmatmul.bf16.gmra.mxu0 %v749
        %v763 = vpop.f32.mrf.mxu0
        %v764 = vadd.f32 0.0, %v763
        %v765 = vpop.f32.mrf.mxu0
        %766 = vdwg.mxu0
        %v767 = vmul.f32 %v764, 0.35355338
        %v768 = vsel %vm522, %v767, -1e+09
        %v769 = vsel %vm606, %v768, -inf
        %770 = vmax.xlane.f32.xlu0 %v769
        %v771 = vpop.xlane.xlu0 %770
        %v772 = vsub.f32 %v768, %v771
        %v773 = vmul.f32 %v772, 1.442695
        %v774 = vpow.pop %v773
        %v775 = vsel %vm606, %v774, 0.0
        %776 = vadd.xlane.f32.xlu0 %v775
        %v777 = vpop.xlane.xlu0 %776
        %v778 = vrcp.pop %v777
        %v779 = vmul.f32 %v774, %v778
        %v780 = vpack.c.bf16 %v779, %v779
        %781 = vrot.lane.b32.xlu0 %v580, 48
        %v782 = vpop.permute.xlu0 %781
        %v784 = vsel %vm621, %v780, 0
        %v787 = vsel %vm625, %v782, 0
        %789 = vmatpush.bf16.msra.mxu0 0
        %790 = vmatpush.bf16.msra.mxu0 0
        %791 = vmatpush.bf16.msra.mxu0 0
        %792 = vmatpush.bf16.msra.mxu0 0
        %793 = vmatpush.bf16.msra.mxu0 0
        %794 = vmatpush.bf16.msra.mxu0 0
        %795 = vmatpush.bf16.msra.mxu0 0
        %796 = vmatpush.bf16.msra.mxu0 %v787
        %797 = vmatmul.bf16.gmra.mxu0 %v784
        %v798 = vpop.f32.mrf.mxu0
        %v799 = vadd.f32 0.0, %v798
        %v800 = vpop.f32.mrf.mxu0
        %801 = vdwg.mxu0
        %v802 = vpack.c.bf16 %v799, %v799
        %s803 = scalar_lea.vmem %s3, 8
        %v804 = vld [vmem:[%s803] sm:$0xf]
        %v806 = vsel %vm584, %v802, 0
        %v809 = vsel %vm708, %v804, 0
        %811 = vmatpush.bf16.msra.mxu0 0
        %812 = vmatpush.bf16.msra.mxu0 0
        %813 = vmatpush.bf16.msra.mxu0 0
        %814 = vmatpush.bf16.msra.mxu0 0
        %815 = vmatpush.bf16.msra.mxu0 0
        %816 = vmatpush.bf16.msra.mxu0 0
        %817 = vmatpush.bf16.msra.mxu0 0
        %818 = vmatpush.bf16.msra.mxu0 %v809
        %819 = vmatmul.bf16.gmra.mxu0 %v806
        %v820 = vpop.f32.mrf.mxu0
        %v821 = vadd.f32 0.0, %v820
        %v822 = vpop.f32.mrf.mxu0
        %823 = vdwg.mxu0
        %v824 = vadd.f32 %v741, %v821
        %825 = vrot.lane.b32.xlu0 %v580, 104
        %v826 = vpop.permute.xlu0 %825
        %827 = vrot.lane.b32.xlu0 %v580, 72
        %v828 = vpop.permute.xlu0 %827
        %v830 = vsel %vm584, %v826, 0
        %v833 = vsel %vm584, %v828, 0
        %835 = vmatpush.bf16.xpose.msra.mxu0 0
        %836 = vmatpush.bf16.xpose.msra.mxu0 0
        %837 = vmatpush.bf16.xpose.msra.mxu0 0
        %838 = vmatpush.bf16.xpose.msra.mxu0 0
        %839 = vmatpush.bf16.xpose.msra.mxu0 0
        %840 = vmatpush.bf16.xpose.msra.mxu0 0
        %841 = vmatpush.bf16.xpose.msra.mxu0 0
        %842 = vmatpush.bf16.xpose.msra.mxu0 %v833
        %843 = vmatmul.bf16.gmra.mxu0 %v830
        %v844 = vpop.f32.mrf.mxu0
        %v845 = vadd.f32 0.0, %v844
        %v846 = vpop.f32.mrf.mxu0
        %847 = vdwg.mxu0
        %v848 = vmul.f32 %v845, 0.35355338
        %v849 = vsel %vm522, %v848, -1e+09
        %v850 = vsel %vm606, %v849, -inf
        %851 = vmax.xlane.f32.xlu0 %v850
        %v852 = vpop.xlane.xlu0 %851
        %v853 = vsub.f32 %v849, %v852
        %v854 = vmul.f32 %v853, 1.442695
        %v855 = vpow.pop %v854
        %v856 = vsel %vm606, %v855, 0.0
        %857 = vadd.xlane.f32.xlu0 %v856
        %v858 = vpop.xlane.xlu0 %857
        %v859 = vrcp.pop %v858
        %v860 = vmul.f32 %v855, %v859
        %v861 = vpack.c.bf16 %v860, %v860
        %862 = vrot.lane.b32.xlu0 %v580, 40
        %v863 = vpop.permute.xlu0 %862
        %v865 = vsel %vm621, %v861, 0
        %v868 = vsel %vm625, %v863, 0
        %870 = vmatpush.bf16.msra.mxu0 0
        %871 = vmatpush.bf16.msra.mxu0 0
        %872 = vmatpush.bf16.msra.mxu0 0
        %873 = vmatpush.bf16.msra.mxu0 0
        %874 = vmatpush.bf16.msra.mxu0 0
        %875 = vmatpush.bf16.msra.mxu0 0
        %876 = vmatpush.bf16.msra.mxu0 0
        %877 = vmatpush.bf16.msra.mxu0 %v868
        %878 = vmatmul.bf16.gmra.mxu0 %v865
        %v879 = vpop.f32.mrf.mxu0
        %v880 = vadd.f32 0.0, %v879
        %v881 = vpop.f32.mrf.mxu0
        %882 = vdwg.mxu0
        %v883 = vpack.c.bf16 %v880, %v880
        %s884 = scalar_lea.vmem %s3, 12
        %v885 = vld [vmem:[%s884] sm:$0xf]
        %v887 = vsel %vm584, %v883, 0
        %v890 = vsel %vm708, %v885, 0
        %892 = vmatpush.bf16.msra.mxu0 0
        %893 = vmatpush.bf16.msra.mxu0 0
        %894 = vmatpush.bf16.msra.mxu0 0
        %895 = vmatpush.bf16.msra.mxu0 0
        %896 = vmatpush.bf16.msra.mxu0 0
        %897 = vmatpush.bf16.msra.mxu0 0
        %898 = vmatpush.bf16.msra.mxu0 0
        %899 = vmatpush.bf16.msra.mxu0 %v890
        %900 = vmatmul.bf16.gmra.mxu0 %v887
        %v901 = vpop.f32.mrf.mxu0
        %v902 = vadd.f32 0.0, %v901
        %v903 = vpop.f32.mrf.mxu0
        %904 = vdwg.mxu0
        %v905 = vadd.f32 %v824, %v902
        %v907 = vperm.slane %v528, 0
        %v909 = vadd.f32 %v905, %v907
        %v910 = vadd.f32 %v517, %v909
        %vm911 = vcmask 259072
        %v912 = vsel %vm911, %v910, 0.0
        %913 = vadd.xlane.f32.xlu0 %v912
        %v914 = vpop.xlane.xlu0 %913
        %v915 = vrcp.pop 32.0
        %v916 = vmul.f32 32.0, %v915
        %v917 = vsub.f32 1.0, %v916
        %v918 = vmul.f32 %v915, %v917
        %v919 = vadd.f32 %v915, %v918
        %vm920 = vweird.f32 %v915
        %v921 = vsel %vm920, %v915, %v919
        %v922 = vmul.f32 %v914, %v921
        %v923 = vsub.f32 %v910, %v922
        %v924 = vmul.f32 %v923, %v923
        %v925 = vsel %vm911, %v924, 0.0
        %926 = vadd.xlane.f32.xlu0 %v925
        %v927 = vpop.xlane.xlu0 %926
        %v928 = vmul.f32 %v927, %v921
        %v929 = vadd.f32 %v928, 1e-05
        %v930 = vrsqrt.pop %v929
        %v931 = vmul.f32 %v930, %v929
        %v932 = vmul.f32 %v931, %v930
        %v933 = vmul.f32 0.5, %v932
        %v934 = vsub.f32 1.5, %v933
        %v935 = vmul.f32 %v930, %v934
        %vm936 = vweird.f32 %v929
        %vm937 = vweird.f32 %v930
        %vm938 = vmor %vm936, %vm937
        %v939 = vsel %vm938, %v930, %v935
        %v940 = vmul.f32 %v923, %v939
        %v942 = vperm.slane %v529, 0
        %v944 = vmul.f32 %v940, %v942
        %v946 = vperm.slane %v530, 0
        %v948 = vadd.f32 %v944, %v946
        %v949 = vpack.c.bf16 %v948, %v948
        %v951 = vperm.slane %v535, 0
        %v957 = vunpack.c.l.b16 %v531
        %v958 = vunpack.c.l.b16 %v532
        %v959 = vunpack.c.l.b16 %v533
        %v960 = vunpack.c.l.b16 %v534
        %v961 = vpack.c.b16 %v958, %v957
        %v962 = vpack.c.b16 %v960, %v959
        %v966 = vsel %vm563, %v949, 0
        %968 = vmatpush.bf16.msra.mxu0 0
        %969 = vmatpush.bf16.msra.mxu0 0
        %970 = vmatpush.bf16.msra.mxu0 0
        %971 = vmatpush.bf16.msra.mxu0 0
        %972 = vmatpush.bf16.msra.mxu0 0
        %973 = vmatpush.bf16.msra.mxu0 0
        %974 = vmatpush.bf16.msra.mxu0 %v962
        %975 = vmatpush.bf16.msra.mxu0 %v961
        %976 = vmatmul.bf16.gmra.mxu0 %v966
        %v977 = vpop.f32.mrf.mxu0
        %v978 = vadd.f32 %v951, %v977
        %v979 = vpop.f32.mrf.mxu0
        %980 = vdwg.mxu0
        %v981 = vmax.f32 %v978, 0.0
        %v982 = vpack.c.bf16 %v981, %v981
        %v984 = vperm.slane %v544, 0
        %v994 = vunpack.c.l.b16 %v536
        %v995 = vunpack.c.l.b16 %v537
        %v996 = vunpack.c.l.b16 %v538
        %v997 = vunpack.c.l.b16 %v539
        %v998 = vunpack.c.l.b16 %v540
        %v999 = vunpack.c.l.b16 %v541
        %v1000 = vunpack.c.l.b16 %v542
        %v1001 = vunpack.c.l.b16 %v543
        %v1002 = vpack.c.b16 %v995, %v994
        %v1003 = vpack.c.b16 %v997, %v996
        %v1004 = vpack.c.b16 %v999, %v998
        %v1005 = vpack.c.b16 %v1001, %v1000
        %vm1010 = vcmask 523264
        %v1012 = vsel %vm1010, %v982, 0
        %1014 = vmatpush.bf16.msra.mxu0 0
        %1015 = vmatpush.bf16.msra.mxu0 0
        %1016 = vmatpush.bf16.msra.mxu0 0
        %1017 = vmatpush.bf16.msra.mxu0 0
        %1018 = vmatpush.bf16.msra.mxu0 %v1005
        %1019 = vmatpush.bf16.msra.mxu0 %v1004
        %1020 = vmatpush.bf16.msra.mxu0 %v1003
        %1021 = vmatpush.bf16.msra.mxu0 %v1002
        %1022 = vmatmul.bf16.gmra.mxu0 %v1012
        %v1023 = vpop.f32.mrf.mxu0
        %v1024 = vadd.f32 %v984, %v1023
        %v1025 = vpop.f32.mrf.mxu0
        %1026 = vdwg.mxu0
        %v1027 = vadd.f32 %v948, %v1024
        %v1028 = vsel %vm911, %v1027, 0.0
        %1029 = vadd.xlane.f32.xlu0 %v1028
        %v1030 = vpop.xlane.xlu0 %1029
        %v1031 = vmul.f32 %v1030, %v921
        %v1032 = vsub.f32 %v1027, %v1031
        %v1033 = vmul.f32 %v1032, %v1032
        %v1034 = vsel %vm911, %v1033, 0.0
        %1035 = vadd.xlane.f32.xlu0 %v1034
        %v1036 = vpop.xlane.xlu0 %1035
        %v1037 = vmul.f32 %v1036, %v921
        %v1038 = vadd.f32 %v1037, 1e-05
        %v1039 = vrsqrt.pop %v1038
        %v1040 = vmul.f32 %v1039, %v1038
        %v1041 = vmul.f32 %v1040, %v1039
        %v1042 = vmul.f32 0.5, %v1041
        %v1043 = vsub.f32 1.5, %v1042
        %v1044 = vmul.f32 %v1039, %v1043
        %vm1045 = vweird.f32 %v1038
        %vm1046 = vweird.f32 %v1039
        %vm1047 = vmor %vm1045, %vm1046
        %v1048 = vsel %vm1047, %v1039, %v1044
        %v1049 = vmul.f32 %v1032, %v1048
        %v1051 = vperm.slane %v545, 0
        %v1053 = vmul.f32 %v1049, %v1051
        %v1055 = vperm.slane %v546, 0
        %v1057 = vadd.f32 %v1053, %v1055
        %vm1058 = vcmask 259077
        %v1059 = vsel %vm1058, %v1057, 0.0
        %1060 = vadd.xlane.f32.xlu0 %v1059
        %v1061 = vpop.xlane.xlu0 %1060
        %v1062 = vmul.f32 %v1061, %v921
        %v1063 = vsub.f32 %v1057, %v1062
        %v1064 = vmul.f32 %v1063, %v1063
        %v1065 = vsel %vm1058, %v1064, 0.0
        %1066 = vadd.xlane.f32.xlu0 %v1065
        %v1067 = vpop.xlane.xlu0 %1066
        %v1068 = vmul.f32 %v1067, %v921
        %v1069 = vadd.f32 %v1068, 1e-05
        %v1070 = vrsqrt.pop %v1069
        %v1071 = vmul.f32 %v1070, %v1069
        %v1072 = vmul.f32 %v1071, %v1070
        %v1073 = vmul.f32 0.5, %v1072
        %v1074 = vsub.f32 1.5, %v1073
        %v1075 = vmul.f32 %v1070, %v1074
        %vm1076 = vweird.f32 %v1069
        %vm1077 = vweird.f32 %v1070
        %vm1078 = vmor %vm1076, %vm1077
        %v1079 = vsel %vm1078, %v1070, %v1075
        %v1080 = vmul.f32 %v1063, %v1079
        %v1081 = vld [vmem:[%s13] sm:$0x1]
        %v1083 = vperm.slane %v1081, 0
        %v1085 = vmul.f32 %v1080, %v1083
        %v1086 = vld [vmem:[%s14] sm:$0x1]
        %v1088 = vperm.slane %v1086, 0
        %v1090 = vadd.f32 %v1085, %v1088
        %v1091 = vpack.c.bf16 %v1090, %v1090
        %v1092 = vld [vmem:[%s15] sm:$0xf]
        %v1093 = vld [vmem:[%s15 + $0x4] sm:$0xf]
        %v1094 = vld [vmem:[%s15 + $0x8] sm:$0xf]
        %v1095 = vld [vmem:[%s15 + $0xc] sm:$0xf]
        %v1097 = vshrl.u32 %v1091, 16
        %v1099 = vrot.slane %v1097, 2
        %v1104 = vunpack.c.l.b16 %v1092
        %v1105 = vunpack.c.l.b16 %v1093
        %v1106 = vunpack.c.l.b16 %v1094
        %v1107 = vunpack.c.l.b16 %v1095
        %v1108 = vpack.c.b16 %v1105, %v1104
        %v1109 = vpack.c.b16 %v1107, %v1106
        %v1113 = vsel %vm563, %v1099, 0
        %1115 = vmatpush.bf16.msra.mxu0 0
        %1116 = vmatpush.bf16.msra.mxu0 0
        %1117 = vmatpush.bf16.msra.mxu0 0
        %1118 = vmatpush.bf16.msra.mxu0 0
        %1119 = vmatpush.bf16.msra.mxu0 0
        %1120 = vmatpush.bf16.msra.mxu0 0
        %1121 = vmatpush.bf16.msra.mxu0 %v1109
        %1122 = vmatpush.bf16.msra.mxu0 %v1108
        %1123 = vmatmul.bf16.gmra.mxu0 %v1113
        %v1124 = vpop.f32.mrf.mxu0
        %v1125 = vadd.f32 0.0, %v1124
        %v1126 = vpop.f32.mrf.mxu0
        %1127 = vdwg.mxu0
        %vm1128 = vcmask 253952
        %1129 = vst.msk [vmem:[%s511] sm:$0x1] %vm1128, %v1125
        %s1130 = sand.u32 %s379, 1
        %s1131 = scalar_lea.sflag [#allocation3], %s1130
        %s1132 = sand.u32 %s379, 1
        %s1133 = scalar_lea.vmem [#allocation2], %s1132
        // Predicated region
        $region85: #{kw_cascaded_branch_forward.5} parent=83 // pred_check
          %p1134 = pneg %p389
        $region86: #{kw_cascaded_branch_forward.5} parent=83 // pred_check_branch
          %1136 = sbr.rel (%p1134) target = $region88
        $region87: #{kw_cascaded_branch_forward.5} parent=83 // pred_region
          %1138 = vsyncadd %s1131, 0
          %s1139 = scalar_lea.hbm %s16, %s30
          %s1141 = sshll.u32 %s1133, 4
          %s1142 = int_to_ptr.vmem [resolvable:$true] %s1141
          %s1143 = sshll.u32 %s1139, 4
          %s1144 = int_to_ptr.hbm [resolvable:$true] %s1143
          %1146 = dma.vmem_to_hbm [thread:$0]  %s1142, 16, %s1144, %s1131
        $region88: #{kw_cascaded_branch_forward.5} parent=83 // pred_fallthru
          _
      $region84: #{kw_cascaded_branch_forward.5} parent=5 // pred_fallthru
        _
      %p1147 = scmp.le.s32.totalorder 2, %s25
      // Predicated region
      $region89: #{kw_cascaded_branch_forward.5} parent=5 // pred_check
        %p1148 = pneg %p1147
      $region90: #{kw_cascaded_branch_forward.5} parent=5 // pred_check_branch
        %1150 = sbr.rel (%p1148) target = $region92
      $region91: #{kw_cascaded_branch_forward.5} parent=5 // pred_region
        %s1151 = ssub.s32 %s25, 2
        // Predicated region
        $region93: #{kw_cascaded_branch_forward.5} parent=91 // pred_check
          %p1152 = pneg %p395
        $region94: #{kw_cascaded_branch_forward.5} parent=91 // pred_check_branch
          %1154 = sbr.rel (%p1152) target = $region96
        $region95: #{kw_cascaded_branch_forward.5} parent=91 // pred_region
          %s1155 = sand.u32 %s380, 1
          %s1156 = scalar_lea.sflag [#allocation3], %s1155
          %s1157 = sand.u32 %s380, 1
          %s1158 = scalar_lea.vmem [#allocation2], %s1157
          %1160 = dma.done %s1156, 16
        $region96: #{kw_cascaded_branch_forward.5} parent=91 // pred_fallthru
          _
      $region92: #{kw_cascaded_branch_forward.5} parent=5 // pred_fallthru
        _
    $region6: #{kw_cascaded_branch_forward.5} parent=1 // loop_footer
      %s29 = sadd.s32 1, %s25
    $region7: #{kw_cascaded_branch_forward.5} parent=1 // loop_footer_branch
      %24 = sbr.rel target = $region3
    $region8: #{kw_cascaded_branch_forward.5} parent=1 // loop_exit
      _
    %1161 = vsyncpa [#allocation3], 1
    %s1162 = scalar_lea.sflag [#allocation3], 1
    %1163 = vsyncpa %s1162, 1

</llo_original>
